<compile_context>
chip_gen: v5e
topology: v5e:2x2
jax: 0.10.0
libtpu: 0.0.40
codegen_flags: <defaults>
</compile_context>

<pallas_src>
import jax
import jax.numpy as jnp
from jax import lax
from jax.experimental import pallas as pl
from jax.experimental.pallas import tpu as pltpu

LANE = 128
# MXU operand dtype. Set to jnp.bfloat16 on v6e/v7x for ~2-4x MXU throughput and
# halved operand/weight-slab traffic (the tolerance in __main__ is loosened
# automatically when you do).
MXU_DTYPE = jnp.float32
VMEM_LIMIT_BYTES = 32 * 1024 * 1024   # safe on v5e/v6e/v7x; re-sweep per gen.


def _ceil_to(x, m):
    return -(-x // m) * m


# ------------------------- in-kernel helpers -------------------------

def _conv_taps(read_tap, w_ref, H, W, cin_p):
    """3x3 conv as 3 MXU matmuls with the kw taps packed into the K dim.

    read_tap(dy, dx) -> [H, W, cin_p] view of the halo-padded activation
    (a plain VMEM ref-slice load, no in-register padding copies).
    w_ref: [3, 3*cin_p, cout_p] per-dy weight slabs (kw folded into K).
    """
    acc = None
    for dy in range(3):                                   # static unroll
        op = jnp.concatenate([read_tap(dy, dx) for dx in range(3)], axis=-1)
        # W is kept a multiple of 8 so this reshape is layout-preserving.
        op = op.reshape(H * W, 3 * cin_p).astype(MXU_DTYPE)
        contrib = jnp.dot(op, w_ref[dy], preferred_element_type=jnp.float32)
        acc = contrib if acc is None else acc + contrib
    return acc                                            # [H*W, cout_p] f32


# ------------------------- Pallas kernels -------------------------

def _conv1_stats_kernel(xp_ref, w_ref, z_ref, sum_ref, ssq_ref):
    """z = conv3x3(x_padded); per-sample bn1 partial stats (sum, sum^2)."""
    _, H2, W2, cin_p = xp_ref.shape
    H, W = H2 - 2, W2 - 2

    def read_tap(dy, dx):
        return xp_ref[0, pl.ds(dy, H), pl.ds(dx, W), :]

    acc = _conv_taps(read_tap, w_ref, H, W, cin_p)        # [H*W, cout_p] f32
    sum_ref[0] = jnp.sum(acc, axis=0, keepdims=True)
    ssq_ref[0] = jnp.sum(acc * acc, axis=0, keepdims=True)
    z_ref[0] = acc.reshape(H, W, acc.shape[1])


def _bn1_conv2_res_stats_kernel(z1_ref, xp_ref, sc_ref, sh_ref, w_ref,
                                z2_ref, sum_ref, ssq_ref, pbuf_ref):
    """z2 = conv3x3(bn1(z1)) + identity; per-sample bn2 partial stats."""
    H2, W2, cmid_p = pbuf_ref.shape
    H, W = H2 - 2, W2 - 2

    # bn1 affine (training-mode batch stats folded into scale/shift by host).
    a = (z1_ref[0] * sc_ref[...].reshape(1, 1, cmid_p)
         + sh_ref[...].reshape(1, 1, cmid_p))

    # Halo-padded staging buffer, fully re-initialized every grid step so the
    # batch axis can stay "parallel" (megacore-safe, no cross-step carry).
    pbuf_ref[...] = jnp.zeros_like(pbuf_ref)
    pbuf_ref[pl.ds(1, H), pl.ds(1, W), :] = a.astype(pbuf_ref.dtype)

    def read_tap(dy, dx):
        return pbuf_ref[pl.ds(dy, H), pl.ds(dx, W), :]

    acc = _conv_taps(read_tap, w_ref, H, W, cmid_p)       # [H*W, cout_p] f32
    cout_p = acc.shape[1]
    # Residual identity = interior of the same spatially pre-padded input.
    ident = xp_ref[0, pl.ds(1, H), pl.ds(1, W), :].reshape(H * W, cout_p)
    acc = acc + ident
    sum_ref[0] = jnp.sum(acc, axis=0, keepdims=True)
    ssq_ref[0] = jnp.sum(acc * acc, axis=0, keepdims=True)
    z2_ref[0] = acc.reshape(H, W, cout_p)


# ------------------------- pallas_call wrappers -------------------------

def conv1_stats(xp, w_taps, cout_p):
    """conv1 + per-sample bn1 partial stats. xp: [N,H+2,W+2,Cin_p] f32."""
    N, H2, W2, cin_p = xp.shape
    H, W = H2 - 2, W2 - 2
    flops = 2 * N * H * W * 9 * cin_p * cout_p
    bytes_accessed = (xp.size * 4 + w_taps.size * w_taps.dtype.itemsize
                      + N * H * W * cout_p * 4 + 2 * N * cout_p * 4)
    return pl.pallas_call(
        _conv1_stats_kernel,
        out_shape=(jax.ShapeDtypeStruct((N, H, W, cout_p), jnp.float32),
                   jax.ShapeDtypeStruct((N, 1, cout_p), jnp.float32),
                   jax.ShapeDtypeStruct((N, 1, cout_p), jnp.float32)),
        grid_spec=pltpu.PrefetchScalarGridSpec(
            num_scalar_prefetch=0,
            grid=(N,),
            in_specs=[
                pl.BlockSpec((1, H2, W2, cin_p), lambda n: (n, 0, 0, 0)),
                # TODO(synk): at real ResNet channel counts, single-buffer this
                # constant slab (pl.Buffered(1)) and cast to bf16 to cut its
                # VMEM footprint 4x on v5e/v7x.
                pl.BlockSpec((3, 3 * cin_p, cout_p), lambda n: (0, 0, 0)),
            ],
            out_specs=(pl.BlockSpec((1, H, W, cout_p), lambda n: (n, 0, 0, 0)),
                       pl.BlockSpec((1, 1, cout_p), lambda n: (n, 0, 0)),
                       pl.BlockSpec((1, 1, cout_p), lambda n: (n, 0, 0)))),
        compiler_params=pltpu.CompilerParams(
            dimension_semantics=("parallel",),
            vmem_limit_bytes=VMEM_LIMIT_BYTES),
        cost_estimate=pl.CostEstimate(flops=flops, transcendentals=0,
                                      bytes_accessed=bytes_accessed),
    )(xp, w_taps)


def bn1_conv2_res_stats(z1, xp, scale1, shift1, w_taps, cout_p):
    """bn1-apply + conv2 + residual add + per-sample bn2 partial stats, fused."""
    N, H, W, cmid_p = z1.shape
    H2, W2 = H + 2, W + 2
    flops = 2 * N * H * W * 9 * cmid_p * cout_p
    bytes_accessed = ((z1.size + xp.size) * 4 + w_taps.size * w_taps.dtype.itemsize
                      + N * H * W * cout_p * 4 + 2 * N * cout_p * 4)
    return pl.pallas_call(
        _bn1_conv2_res_stats_kernel,
        out_shape=(jax.ShapeDtypeStruct((N, H, W, cout_p), jnp.float32),
                   jax.ShapeDtypeStruct((N, 1, cout_p), jnp.float32),
                   jax.ShapeDtypeStruct((N, 1, cout_p), jnp.float32)),
        grid_spec=pltpu.PrefetchScalarGridSpec(
            num_scalar_prefetch=0,
            grid=(N,),
            in_specs=[
                pl.BlockSpec((1, H, W, cmid_p), lambda n: (n, 0, 0, 0)),
                pl.BlockSpec((1, H2, W2, cout_p), lambda n: (n, 0, 0, 0)),
                pl.BlockSpec((1, cmid_p), lambda n: (0, 0)),
                pl.BlockSpec((1, cmid_p), lambda n: (0, 0)),
                pl.BlockSpec((3, 3 * cmid_p, cout_p), lambda n: (0, 0, 0)),
            ],
            out_specs=(pl.BlockSpec((1, H, W, cout_p), lambda n: (n, 0, 0, 0)),
                       pl.BlockSpec((1, 1, cout_p), lambda n: (n, 0, 0)),
                       pl.BlockSpec((1, 1, cout_p), lambda n: (n, 0, 0))),
            scratch_shapes=[pltpu.VMEM((H2, W2, cmid_p), MXU_DTYPE)]),
        compiler_params=pltpu.CompilerParams(
            dimension_semantics=("parallel",),
            vmem_limit_bytes=VMEM_LIMIT_BYTES),
        cost_estimate=pl.CostEstimate(flops=flops, transcendentals=0,
                                      bytes_accessed=bytes_accessed),
    )(z1, xp, scale1, shift1, w_taps)


# ------------------------- JAX glue -------------------------

def _prep_weight(w_oihw, cin_p, cout_p):
    """[Cout, Cin, 3, 3] -> [3, 3*Cin_p, Cout_p]: kw taps packed into K."""
    cout, cin = w_oihw.shape[0], w_oihw.shape[1]
    w = jnp.transpose(w_oihw, (2, 3, 1, 0))               # [kh, kw, Cin, Cout]
    w = jnp.pad(w, ((0, 0), (0, 0), (0, cin_p - cin), (0, cout_p - cout)))
    return w.reshape(3, 3 * cin_p, cout_p).astype(MXU_DTYPE)


def _bn_affine(s, ss, gamma, beta, count, cp, eps):
    """Per-channel scale/shift for training-mode BN from (sum, sum^2)."""
    mean = s / count
    # TODO(synk): single-pass E[z^2]-E[z]^2 can cancel catastrophically when
    # |mean| >> std; switch to a shifted/two-pass form if that regime matters.
    var = jnp.maximum(ss / count - mean * mean, 0.0)
    scale = gamma * lax.rsqrt(var + eps)
    shift = beta - mean * scale
    pad = cp - scale.shape[0]
    return (jnp.pad(scale, (0, pad)).reshape(1, cp).astype(jnp.float32),
            jnp.pad(shift, (0, pad)).reshape(1, cp).astype(jnp.float32))


def basic_block_forward(x_nchw, params, eps=1e-5):
    # downsample is None in this configuration => stride 1, inplanes == planes.
    # The zero-halo tap matmul assumes stride=1, padding=1, dilation=1.
    x = jnp.transpose(x_nchw, (0, 2, 3, 1)).astype(jnp.float32)     # NHWC
    N, H, W, cin = x.shape
    cmid, cout = params["w1"].shape[0], params["w2"].shape[0]
    assert params["w1"].shape[2:] == (3, 3) and params["w2"].shape[2:] == (3, 3)
    assert cout == cin, "identity add requires inplanes == planes (stride 1)"
    # TODO(synk): for ResNet stages with W=7/14, pad W to a multiple of 8 inside
    # the block so the (H*W, C) reshapes stay layout-preserving.
    assert W % 8 == 0, "keep W a multiple of 8 for layout-preserving reshapes"
    M = N * H * W
    cin_p, cmid_p, cout_p = (_ceil_to(c, LANE) for c in (cin, cmid, cout))
    assert cin_p == cout_p

    # Pre-pad the conv halo (and channels to 128 lanes) once in HBM: kernels
    # then read every tap as a plain VMEM ref slice (no in-kernel pad copies).
    xp = jnp.pad(x, ((0, 0), (1, 1), (1, 1), (0, cin_p - cin)))
    w1 = _prep_weight(params["w1"], cin_p, cmid_p)
    w2 = _prep_weight(params["w2"], cmid_p, cout_p)

    # conv1 + per-sample bn1 partial stats (batch axis fully parallel)
    z1, s1, ss1 = conv1_stats(xp, w1, cmid_p)
    s1 = jnp.sum(s1, axis=0)[0]
    ss1 = jnp.sum(ss1, axis=0)[0]
    sc1, sh1 = _bn_affine(s1[:cmid], ss1[:cmid], params["g1"], params["b1"],
                          M, cmid_p, eps)

    # bn1 apply + conv2 + residual add + per-sample bn2 partial stats, fused
    z2, s2, ss2 = bn1_conv2_res_stats(z1, xp, sc1, sh1, w2, cout_p)
    s2 = jnp.sum(s2, axis=0)[0]
    ss2 = jnp.sum(ss2, axis=0)[0]
    sc2, sh2 = _bn_affine(s2[:cout], ss2[:cout], params["g2"], params["b2"],
                          M, cout_p, eps)

    # bn2 apply in plain JAX: XLA fuses the per-channel affine into the
    # channel slice + NHWC->NCHW transpose (no extra HBM round trip).
    y = z2[..., :cout] * sc2[0, :cout] + sh2[0, :cout]
    return jnp.transpose(y, (0, 3, 1, 2))                           # NCHW


# ------------------------- pure-JAX reference -------------------------

def _ref_conv(x, w, stride):
    return lax.conv_general_dilated(
        x, w, window_strides=(stride, stride), padding=((1, 1), (1, 1)),
        dimension_numbers=("NCHW", "OIHW", "NCHW"))


def _ref_bn(x, g, b, eps=1e-5):
    mean = jnp.mean(x, axis=(0, 2, 3), keepdims=True)
    var = jnp.mean((x - mean) ** 2, axis=(0, 2, 3), keepdims=True)
    return (x - mean) / jnp.sqrt(var + eps) * g.reshape(1, -1, 1, 1) + b.reshape(1, -1, 1, 1)


def ref_forward(x, params):
    out = _ref_conv(x, params["w1"], 1)
    out = _ref_bn(out, params["g1"], params["b1"])
    out = _ref_conv(out, params["w2"], 1)
    out = out + x
    out = _ref_bn(out, params["g2"], params["b2"])
    return out


# ------------------------- main -------------------------

if __name__ == "__main__":
    key = jax.random.PRNGKey(0)
    k1, k2, k3, k4, k5 = jax.random.split(key, 5)

    N, C, H, W = 2, 4, 16, 16           # inplanes = midplanes = planes = 4, stride = 1
    x = jax.random.normal(k1, (N, C, H, W), dtype=jnp.float32)

    params = {
        "w1": 0.1 * jax.random.normal(k2, (C, C, 3, 3), dtype=jnp.float32),
        "w2": 0.1 * jax.random.normal(k3, (C, C, 3, 3), dtype=jnp.float32),
        "g1": 1.0 + 0.1 * jax.random.normal(k4, (C,), dtype=jnp.float32),
        "b1": 0.1 * jax.random.normal(k5, (C,), dtype=jnp.float32),
        "g2": jnp.ones((C,), jnp.float32),
        "b2": jnp.zeros((C,), jnp.float32),
    }

    fwd = jax.jit(basic_block_forward)
    y = jax.block_until_ready(fwd(x, params))
    y_ref = jax.block_until_ready(ref_forward(x, params))

    assert y.shape == (N, C, H, W), y.shape
    tol = 1e-4 if MXU_DTYPE == jnp.float32 else 2e-2
    err = float(jnp.max(jnp.abs(y - y_ref)))
    assert jnp.allclose(y, y_ref, rtol=tol, atol=tol), err
    print("KERNEL_OK")
</pallas_src>

<mosaic_0001>
module attributes {stable_mosaic.version = 11 : i64} {
  func.func @_conv1_stats_kernel(%arg0: i32, %arg1: memref<1x18x18x128xf32, #tpu.memory_space<vmem>>, %arg2: memref<3x384x128xf32, #tpu.memory_space<vmem>>, %arg3: memref<1x16x16x128xf32, #tpu.memory_space<vmem>>, %arg4: memref<1x1x128xf32, #tpu.memory_space<vmem>>, %arg5: memref<1x1x128xf32, #tpu.memory_space<vmem>>) attributes {dimension_semantics = [#tpu.dimension_semantics<parallel>], iteration_bounds = array<i64: 2>, scalar_prefetch = 0 : i64, scratch_operands = 0 : i64, tpu.core_type = #tpu.core_type<tc>, window_params = [{transform_indices = @transform_0, window_bounds = array<i64: 1, 18, 18, 128>}, {pipeline_mode = #tpu.pipeline_mode<synchronous>, transform_indices = @transform_1, window_bounds = array<i64: 3, 384, 128>}, {transform_indices = @transform_2, window_bounds = array<i64: 1, 16, 16, 128>}, {transform_indices = @transform_3, window_bounds = array<i64: 1, 1, 128>}, {transform_indices = @transform_4, window_bounds = array<i64: 1, 1, 128>}]} {
    %c0 = arith.constant 0 : index
    %c0_0 = arith.constant 0 : index
    %c0_1 = arith.constant 0 : index
    %c0_2 = arith.constant 0 : index
    %0 = vector.load %arg1[%c0, %c0_0, %c0_1, %c0_2] : memref<1x18x18x128xf32, #tpu.memory_space<vmem>>, vector<1x16x16x128xf32>
    %1 = vector.shape_cast %0 : vector<1x16x16x128xf32> to vector<16x16x128xf32>
    %c0_3 = arith.constant 0 : index
    %c0_4 = arith.constant 0 : index
    %c1 = arith.constant 1 : index
    %c0_5 = arith.constant 0 : index
    %2 = vector.load %arg1[%c0_3, %c0_4, %c1, %c0_5] : memref<1x18x18x128xf32, #tpu.memory_space<vmem>>, vector<1x16x16x128xf32>
    %3 = vector.shape_cast %2 : vector<1x16x16x128xf32> to vector<16x16x128xf32>
    %c0_6 = arith.constant 0 : index
    %c0_7 = arith.constant 0 : index
    %c2 = arith.constant 2 : index
    %c0_8 = arith.constant 0 : index
    %4 = vector.load %arg1[%c0_6, %c0_7, %c2, %c0_8] : memref<1x18x18x128xf32, #tpu.memory_space<vmem>>, vector<1x16x16x128xf32>
    %5 = vector.shape_cast %4 : vector<1x16x16x128xf32> to vector<16x16x128xf32>
    %6 = tpu.concatenate %1, %3, %5 in 2 : vector<16x16x128xf32>, vector<16x16x128xf32>, vector<16x16x128xf32> -> vector<16x16x384xf32>
    %7 = vector.shape_cast %6 : vector<16x16x384xf32> to vector<256x384xf32>
    %c0_9 = arith.constant 0 : index
    %c0_10 = arith.constant 0 : index
    %c0_11 = arith.constant 0 : index
    %8 = vector.load %arg2[%c0_9, %c0_10, %c0_11] : memref<3x384x128xf32, #tpu.memory_space<vmem>>, vector<1x384x128xf32>
    %9 = vector.shape_cast %8 : vector<1x384x128xf32> to vector<384x128xf32>
    %cst = arith.constant dense<0.000000e+00> : vector<256x128xf32>
    %10 = tpu.matmul %7, %9, %cst {dimension_numbers = #tpu.dot_dimension_numbers<[1], [0], [0], [1], [0, 0, 1, 1], [], []>} : vector<256x384xf32>, vector<384x128xf32>, vector<256x128xf32> -> vector<256x128xf32>
    %c0_12 = arith.constant 0 : index
    %c1_13 = arith.constant 1 : index
    %c0_14 = arith.constant 0 : index
    %c0_15 = arith.constant 0 : index
    %11 = vector.load %arg1[%c0_12, %c1_13, %c0_14, %c0_15] : memref<1x18x18x128xf32, #tpu.memory_space<vmem>>, vector<1x16x16x128xf32>
    %12 = vector.shape_cast %11 : vector<1x16x16x128xf32> to vector<16x16x128xf32>
    %c0_16 = arith.constant 0 : index
    %c1_17 = arith.constant 1 : index
    %c1_18 = arith.constant 1 : index
    %c0_19 = arith.constant 0 : index
    %13 = vector.load %arg1[%c0_16, %c1_17, %c1_18, %c0_19] : memref<1x18x18x128xf32, #tpu.memory_space<vmem>>, vector<1x16x16x128xf32>
    %14 = vector.shape_cast %13 : vector<1x16x16x128xf32> to vector<16x16x128xf32>
    %c0_20 = arith.constant 0 : index
    %c1_21 = arith.constant 1 : index
    %c2_22 = arith.constant 2 : index
    %c0_23 = arith.constant 0 : index
    %15 = vector.load %arg1[%c0_20, %c1_21, %c2_22, %c0_23] : memref<1x18x18x128xf32, #tpu.memory_space<vmem>>, vector<1x16x16x128xf32>
    %16 = vector.shape_cast %15 : vector<1x16x16x128xf32> to vector<16x16x128xf32>
    %17 = tpu.concatenate %12, %14, %16 in 2 : vector<16x16x128xf32>, vector<16x16x128xf32>, vector<16x16x128xf32> -> vector<16x16x384xf32>
    %18 = vector.shape_cast %17 : vector<16x16x384xf32> to vector<256x384xf32>
    %c1_24 = arith.constant 1 : index
    %c0_25 = arith.constant 0 : index
    %c0_26 = arith.constant 0 : index
    %19 = vector.load %arg2[%c1_24, %c0_25, %c0_26] : memref<3x384x128xf32, #tpu.memory_space<vmem>>, vector<1x384x128xf32>
    %20 = vector.shape_cast %19 : vector<1x384x128xf32> to vector<384x128xf32>
    %cst_27 = arith.constant dense<0.000000e+00> : vector<256x128xf32>
    %21 = tpu.matmul %18, %20, %cst_27 {dimension_numbers = #tpu.dot_dimension_numbers<[1], [0], [0], [1], [0, 0, 1, 1], [], []>} : vector<256x384xf32>, vector<384x128xf32>, vector<256x128xf32> -> vector<256x128xf32>
    %22 = arith.addf %10, %21 : vector<256x128xf32>
    %c0_28 = arith.constant 0 : index
    %c2_29 = arith.constant 2 : index
    %c0_30 = arith.constant 0 : index
    %c0_31 = arith.constant 0 : index
    %23 = vector.load %arg1[%c0_28, %c2_29, %c0_30, %c0_31] : memref<1x18x18x128xf32, #tpu.memory_space<vmem>>, vector<1x16x16x128xf32>
    %24 = vector.shape_cast %23 : vector<1x16x16x128xf32> to vector<16x16x128xf32>
    %c0_32 = arith.constant 0 : index
    %c2_33 = arith.constant 2 : index
    %c1_34 = arith.constant 1 : index
    %c0_35 = arith.constant 0 : index
    %25 = vector.load %arg1[%c0_32, %c2_33, %c1_34, %c0_35] : memref<1x18x18x128xf32, #tpu.memory_space<vmem>>, vector<1x16x16x128xf32>
    %26 = vector.shape_cast %25 : vector<1x16x16x128xf32> to vector<16x16x128xf32>
    %c0_36 = arith.constant 0 : index
    %c2_37 = arith.constant 2 : index
    %c2_38 = arith.constant 2 : index
    %c0_39 = arith.constant 0 : index
    %27 = vector.load %arg1[%c0_36, %c2_37, %c2_38, %c0_39] : memref<1x18x18x128xf32, #tpu.memory_space<vmem>>, vector<1x16x16x128xf32>
    %28 = vector.shape_cast %27 : vector<1x16x16x128xf32> to vector<16x16x128xf32>
    %29 = tpu.concatenate %24, %26, %28 in 2 : vector<16x16x128xf32>, vector<16x16x128xf32>, vector<16x16x128xf32> -> vector<16x16x384xf32>
    %30 = vector.shape_cast %29 : vector<16x16x384xf32> to vector<256x384xf32>
    %c2_40 = arith.constant 2 : index
    %c0_41 = arith.constant 0 : index
    %c0_42 = arith.constant 0 : index
    %31 = vector.load %arg2[%c2_40, %c0_41, %c0_42] : memref<3x384x128xf32, #tpu.memory_space<vmem>>, vector<1x384x128xf32>
    %32 = vector.shape_cast %31 : vector<1x384x128xf32> to vector<384x128xf32>
    %cst_43 = arith.constant dense<0.000000e+00> : vector<256x128xf32>
    %33 = tpu.matmul %30, %32, %cst_43 {dimension_numbers = #tpu.dot_dimension_numbers<[1], [0], [0], [1], [0, 0, 1, 1], [], []>} : vector<256x384xf32>, vector<384x128xf32>, vector<256x128xf32> -> vector<256x128xf32>
    %34 = arith.addf %22, %33 : vector<256x128xf32>
    %cst_44 = arith.constant dense<0.000000e+00> : vector<128xf32>
    %35 = vector.multi_reduction <add>, %34, %cst_44 [0] : vector<256x128xf32> to vector<128xf32>
    %36 = vector.shape_cast %35 : vector<128xf32> to vector<1x128xf32>
    %c0_45 = arith.constant 0 : index
    %c0_46 = arith.constant 0 : index
    %c0_47 = arith.constant 0 : index
    %37 = vector.load %arg4[%c0_45, %c0_46, %c0_47] : memref<1x1x128xf32, #tpu.memory_space<vmem>>, vector<1x1x128xf32>
    %38 = vector.shape_cast %37 : vector<1x1x128xf32> to vector<1x128xf32>
    %39 = vector.shape_cast %36 : vector<1x128xf32> to vector<1x1x128xf32>
    tpu.vector_store %arg4[%c0_45, %c0_46, %c0_47], %39 {strides = array<i32>} : memref<1x1x128xf32, #tpu.memory_space<vmem>>, vector<1x1x128xf32>,
    %40 = arith.mulf %34, %34 : vector<256x128xf32>
    %cst_48 = arith.constant dense<0.000000e+00> : vector<128xf32>
    %41 = vector.multi_reduction <add>, %40, %cst_48 [0] : vector<256x128xf32> to vector<128xf32>
    %42 = vector.shape_cast %41 : vector<128xf32> to vector<1x128xf32>
    %c0_49 = arith.constant 0 : index
    %c0_50 = arith.constant 0 : index
    %c0_51 = arith.constant 0 : index
    %43 = vector.load %arg5[%c0_49, %c0_50, %c0_51] : memref<1x1x128xf32, #tpu.memory_space<vmem>>, vector<1x1x128xf32>
    %44 = vector.shape_cast %43 : vector<1x1x128xf32> to vector<1x128xf32>
    %45 = vector.shape_cast %42 : vector<1x128xf32> to vector<1x1x128xf32>
    tpu.vector_store %arg5[%c0_49, %c0_50, %c0_51], %45 {strides = array<i32>} : memref<1x1x128xf32, #tpu.memory_space<vmem>>, vector<1x1x128xf32>,
    %46 = vector.shape_cast %34 : vector<256x128xf32> to vector<16x16x128xf32>
    %c0_52 = arith.constant 0 : index
    %c0_53 = arith.constant 0 : index
    %c0_54 = arith.constant 0 : index
    %c0_55 = arith.constant 0 : index
    %47 = vector.load %arg3[%c0_52, %c0_53, %c0_54, %c0_55] : memref<1x16x16x128xf32, #tpu.memory_space<vmem>>, vector<1x16x16x128xf32>
    %48 = vector.shape_cast %47 : vector<1x16x16x128xf32> to vector<16x16x128xf32>
    %49 = vector.shape_cast %46 : vector<16x16x128xf32> to vector<1x16x16x128xf32>
    tpu.vector_store %arg3[%c0_52, %c0_53, %c0_54, %c0_55], %49 {strides = array<i32>} : memref<1x16x16x128xf32, #tpu.memory_space<vmem>>, vector<1x16x16x128xf32>,
    return
  }
  func.func @transform_0(%arg0: i32) -> (i32, i32, i32, i32) {
    %c0_i32 = arith.constant 0 : i32
    %c0_i32_0 = arith.constant 0 : i32
    %c0_i32_1 = arith.constant 0 : i32
    %c0_i32_2 = arith.constant 0 : i32
    return %arg0, %c0_i32, %c0_i32_0, %c0_i32_1 : i32, i32, i32, i32
  }
  func.func @transform_1(%arg0: i32) -> (i32, i32, i32) {
    %c0_i32 = arith.constant 0 : i32
    %c0_i32_0 = arith.constant 0 : i32
    %c0_i32_1 = arith.constant 0 : i32
    %c0_i32_2 = arith.constant 0 : i32
    return %c0_i32, %c0_i32_0, %c0_i32_1 : i32, i32, i32
  }
  func.func @transform_2(%arg0: i32) -> (i32, i32, i32, i32) {
    %c0_i32 = arith.constant 0 : i32
    %c0_i32_0 = arith.constant 0 : i32
    %c0_i32_1 = arith.constant 0 : i32
    %c0_i32_2 = arith.constant 0 : i32
    return %arg0, %c0_i32, %c0_i32_0, %c0_i32_1 : i32, i32, i32, i32
  }
  func.func @transform_3(%arg0: i32) -> (i32, i32, i32) {
    %c0_i32 = arith.constant 0 : i32
    %c0_i32_0 = arith.constant 0 : i32
    %c0_i32_1 = arith.constant 0 : i32
    return %arg0, %c0_i32, %c0_i32_0 : i32, i32, i32
  }
  func.func @transform_4(%arg0: i32) -> (i32, i32, i32) {
    %c0_i32 = arith.constant 0 : i32
    %c0_i32_0 = arith.constant 0 : i32
    %c0_i32_1 = arith.constant 0 : i32
    return %arg0, %c0_i32, %c0_i32_0 : i32, i32, i32
  }
}

module attributes {stable_mosaic.version = 11 : i64} {
  func.func @_bn1_conv2_res_stats_kernel(%arg0: i32, %arg1: memref<1x16x16x128xf32, #tpu.memory_space<vmem>>, %arg2: memref<1x18x18x128xf32, #tpu.memory_space<vmem>>, %arg3: memref<1x128xf32, #tpu.memory_space<vmem>>, %arg4: memref<1x128xf32, #tpu.memory_space<vmem>>, %arg5: memref<3x384x128xf32, #tpu.memory_space<vmem>>, %arg6: memref<1x16x16x128xf32, #tpu.memory_space<vmem>>, %arg7: memref<1x1x128xf32, #tpu.memory_space<vmem>>, %arg8: memref<1x1x128xf32, #tpu.memory_space<vmem>>, %arg9: memref<18x18x128xf32, #tpu.memory_space<vmem>>) attributes {dimension_semantics = [#tpu.dimension_semantics<parallel>], iteration_bounds = array<i64: 2>, scalar_prefetch = 0 : i64, scratch_operands = 1 : i64, tpu.core_type = #tpu.core_type<tc>, window_params = [{transform_indices = @transform_0, window_bounds = array<i64: 1, 16, 16, 128>}, {transform_indices = @transform_1, window_bounds = array<i64: 1, 18, 18, 128>}, {pipeline_mode = #tpu.pipeline_mode<synchronous>, transform_indices = @transform_2, window_bounds = array<i64: 1, 128>}, {pipeline_mode = #tpu.pipeline_mode<synchronous>, transform_indices = @transform_3, window_bounds = array<i64: 1, 128>}, {pipeline_mode = #tpu.pipeline_mode<synchronous>, transform_indices = @transform_4, window_bounds = array<i64: 3, 384, 128>}, {transform_indices = @transform_5, window_bounds = array<i64: 1, 16, 16, 128>}, {transform_indices = @transform_6, window_bounds = array<i64: 1, 1, 128>}, {transform_indices = @transform_7, window_bounds = array<i64: 1, 1, 128>}]} {
    %c0 = arith.constant 0 : index
    %c0_0 = arith.constant 0 : index
    %c0_1 = arith.constant 0 : index
    %c0_2 = arith.constant 0 : index
    %0 = vector.load %arg1[%c0, %c0_0, %c0_1, %c0_2] : memref<1x16x16x128xf32, #tpu.memory_space<vmem>>, vector<1x16x16x128xf32>
    %1 = vector.shape_cast %0 : vector<1x16x16x128xf32> to vector<16x16x128xf32>
    %c0_3 = arith.constant 0 : index
    %c0_4 = arith.constant 0 : index
    %2 = vector.load %arg3[%c0_3, %c0_4] : memref<1x128xf32, #tpu.memory_space<vmem>>, vector<1x128xf32>
    %3 = vector.shape_cast %2 : vector<1x128xf32> to vector<1x1x128xf32>
    %4 = vector.broadcast %3 : vector<1x1x128xf32> to vector<16x16x128xf32>
    %5 = arith.mulf %1, %4 : vector<16x16x128xf32>
    %c0_5 = arith.constant 0 : index
    %c0_6 = arith.constant 0 : index
    %6 = vector.load %arg4[%c0_5, %c0_6] : memref<1x128xf32, #tpu.memory_space<vmem>>, vector<1x128xf32>
    %7 = vector.shape_cast %6 : vector<1x128xf32> to vector<1x1x128xf32>
    %8 = vector.broadcast %7 : vector<1x1x128xf32> to vector<16x16x128xf32>
    %9 = arith.addf %5, %8 : vector<16x16x128xf32>
    %cst = arith.constant 0.000000e+00 : f32
    %10 = vector.broadcast %cst : f32 to vector<18x18x128xf32>
    %c0_7 = arith.constant 0 : index
    %c0_8 = arith.constant 0 : index
    %c0_9 = arith.constant 0 : index
    %11 = vector.load %arg9[%c0_7, %c0_8, %c0_9] : memref<18x18x128xf32, #tpu.memory_space<vmem>>, vector<18x18x128xf32>
    tpu.vector_store %arg9[%c0_7, %c0_8, %c0_9], %10 {strides = array<i32>} : memref<18x18x128xf32, #tpu.memory_space<vmem>>, vector<18x18x128xf32>,
    %c1 = arith.constant 1 : index
    %c1_10 = arith.constant 1 : index
    %c0_11 = arith.constant 0 : index
    %12 = vector.load %arg9[%c1, %c1_10, %c0_11] : memref<18x18x128xf32, #tpu.memory_space<vmem>>, vector<16x16x128xf32>
    tpu.vector_store %arg9[%c1, %c1_10, %c0_11], %9 {strides = array<i32>} : memref<18x18x128xf32, #tpu.memory_space<vmem>>, vector<16x16x128xf32>,
    %c0_12 = arith.constant 0 : index
    %c0_13 = arith.constant 0 : index
    %c0_14 = arith.constant 0 : index
    %13 = vector.load %arg9[%c0_12, %c0_13, %c0_14] : memref<18x18x128xf32, #tpu.memory_space<vmem>>, vector<16x16x128xf32>
    %c0_15 = arith.constant 0 : index
    %c1_16 = arith.constant 1 : index
    %c0_17 = arith.constant 0 : index
    %14 = vector.load %arg9[%c0_15, %c1_16, %c0_17] : memref<18x18x128xf32, #tpu.memory_space<vmem>>, vector<16x16x128xf32>
    %c0_18 = arith.constant 0 : index
    %c2 = arith.constant 2 : index
    %c0_19 = arith.constant 0 : index
    %15 = vector.load %arg9[%c0_18, %c2, %c0_19] : memref<18x18x128xf32, #tpu.memory_space<vmem>>, vector<16x16x128xf32>
    %16 = tpu.concatenate %13, %14, %15 in 2 : vector<16x16x128xf32>, vector<16x16x128xf32>, vector<16x16x128xf32> -> vector<16x16x384xf32>
    %17 = vector.shape_cast %16 : vector<16x16x384xf32> to vector<256x384xf32>
    %c0_20 = arith.constant 0 : index
    %c0_21 = arith.constant 0 : index
    %c0_22 = arith.constant 0 : index
    %18 = vector.load %arg5[%c0_20, %c0_21, %c0_22] : memref<3x384x128xf32, #tpu.memory_space<vmem>>, vector<1x384x128xf32>
    %19 = vector.shape_cast %18 : vector<1x384x128xf32> to vector<384x128xf32>
    %cst_23 = arith.constant dense<0.000000e+00> : vector<256x128xf32>
    %20 = tpu.matmul %17, %19, %cst_23 {dimension_numbers = #tpu.dot_dimension_numbers<[1], [0], [0], [1], [0, 0, 1, 1], [], []>} : vector<256x384xf32>, vector<384x128xf32>, vector<256x128xf32> -> vector<256x128xf32>
    %c1_24 = arith.constant 1 : index
    %c0_25 = arith.constant 0 : index
    %c0_26 = arith.constant 0 : index
    %21 = vector.load %arg9[%c1_24, %c0_25, %c0_26] : memref<18x18x128xf32, #tpu.memory_space<vmem>>, vector<16x16x128xf32>
    %c1_27 = arith.constant 1 : index
    %c1_28 = arith.constant 1 : index
    %c0_29 = arith.constant 0 : index
    %22 = vector.load %arg9[%c1_27, %c1_28, %c0_29] : memref<18x18x128xf32, #tpu.memory_space<vmem>>, vector<16x16x128xf32>
    %c1_30 = arith.constant 1 : index
    %c2_31 = arith.constant 2 : index
    %c0_32 = arith.constant 0 : index
    %23 = vector.load %arg9[%c1_30, %c2_31, %c0_32] : memref<18x18x128xf32, #tpu.memory_space<vmem>>, vector<16x16x128xf32>
    %24 = tpu.concatenate %21, %22, %23 in 2 : vector<16x16x128xf32>, vector<16x16x128xf32>, vector<16x16x128xf32> -> vector<16x16x384xf32>
    %25 = vector.shape_cast %24 : vector<16x16x384xf32> to vector<256x384xf32>
    %c1_33 = arith.constant 1 : index
    %c0_34 = arith.constant 0 : index
    %c0_35 = arith.constant 0 : index
    %26 = vector.load %arg5[%c1_33, %c0_34, %c0_35] : memref<3x384x128xf32, #tpu.memory_space<vmem>>, vector<1x384x128xf32>
    %27 = vector.shape_cast %26 : vector<1x384x128xf32> to vector<384x128xf32>
    %cst_36 = arith.constant dense<0.000000e+00> : vector<256x128xf32>
    %28 = tpu.matmul %25, %27, %cst_36 {dimension_numbers = #tpu.dot_dimension_numbers<[1], [0], [0], [1], [0, 0, 1, 1], [], []>} : vector<256x384xf32>, vector<384x128xf32>, vector<256x128xf32> -> vector<256x128xf32>
    %29 = arith.addf %20, %28 : vector<256x128xf32>
    %c2_37 = arith.constant 2 : index
    %c0_38 = arith.constant 0 : index
    %c0_39 = arith.constant 0 : index
    %30 = vector.load %arg9[%c2_37, %c0_38, %c0_39] : memref<18x18x128xf32, #tpu.memory_space<vmem>>, vector<16x16x128xf32>
    %c2_40 = arith.constant 2 : index
    %c1_41 = arith.constant 1 : index
    %c0_42 = arith.constant 0 : index
    %31 = vector.load %arg9[%c2_40, %c1_41, %c0_42] : memref<18x18x128xf32, #tpu.memory_space<vmem>>, vector<16x16x128xf32>
    %c2_43 = arith.constant 2 : index
    %c2_44 = arith.constant 2 : index
    %c0_45 = arith.constant 0 : index
    %32 = vector.load %arg9[%c2_43, %c2_44, %c0_45] : memref<18x18x128xf32, #tpu.memory_space<vmem>>, vector<16x16x128xf32>
    %33 = tpu.concatenate %30, %31, %32 in 2 : vector<16x16x128xf32>, vector<16x16x128xf32>, vector<16x16x128xf32> -> vector<16x16x384xf32>
    %34 = vector.shape_cast %33 : vector<16x16x384xf32> to vector<256x384xf32>
    %c2_46 = arith.constant 2 : index
    %c0_47 = arith.constant 0 : index
    %c0_48 = arith.constant 0 : index
    %35 = vector.load %arg5[%c2_46, %c0_47, %c0_48] : memref<3x384x128xf32, #tpu.memory_space<vmem>>, vector<1x384x128xf32>
    %36 = vector.shape_cast %35 : vector<1x384x128xf32> to vector<384x128xf32>
    %cst_49 = arith.constant dense<0.000000e+00> : vector<256x128xf32>
    %37 = tpu.matmul %34, %36, %cst_49 {dimension_numbers = #tpu.dot_dimension_numbers<[1], [0], [0], [1], [0, 0, 1, 1], [], []>} : vector<256x384xf32>, vector<384x128xf32>, vector<256x128xf32> -> vector<256x128xf32>
    %38 = arith.addf %29, %37 : vector<256x128xf32>
    %c0_50 = arith.constant 0 : index
    %c1_51 = arith.constant 1 : index
    %c1_52 = arith.constant 1 : index
    %c0_53 = arith.constant 0 : index
    %39 = vector.load %arg2[%c0_50, %c1_51, %c1_52, %c0_53] : memref<1x18x18x128xf32, #tpu.memory_space<vmem>>, vector<1x16x16x128xf32>
    %40 = vector.shape_cast %39 : vector<1x16x16x128xf32> to vector<16x16x128xf32>
    %41 = vector.shape_cast %40 : vector<16x16x128xf32> to vector<256x128xf32>
    %42 = arith.addf %38, %41 : vector<256x128xf32>
    %cst_54 = arith.constant dense<0.000000e+00> : vector<128xf32>
    %43 = vector.multi_reduction <add>, %42, %cst_54 [0] : vector<256x128xf32> to vector<128xf32>
    %44 = vector.shape_cast %43 : vector<128xf32> to vector<1x128xf32>
    %c0_55 = arith.constant 0 : index
    %c0_56 = arith.constant 0 : index
    %c0_57 = arith.constant 0 : index
    %45 = vector.load %arg7[%c0_55, %c0_56, %c0_57] : memref<1x1x128xf32, #tpu.memory_space<vmem>>, vector<1x1x128xf32>
    %46 = vector.shape_cast %45 : vector<1x1x128xf32> to vector<1x128xf32>
    %47 = vector.shape_cast %44 : vector<1x128xf32> to vector<1x1x128xf32>
    tpu.vector_store %arg7[%c0_55, %c0_56, %c0_57], %47 {strides = array<i32>} : memref<1x1x128xf32, #tpu.memory_space<vmem>>, vector<1x1x128xf32>,
    %48 = arith.mulf %42, %42 : vector<256x128xf32>
    %cst_58 = arith.constant dense<0.000000e+00> : vector<128xf32>
    %49 = vector.multi_reduction <add>, %48, %cst_58 [0] : vector<256x128xf32> to vector<128xf32>
    %50 = vector.shape_cast %49 : vector<128xf32> to vector<1x128xf32>
    %c0_59 = arith.constant 0 : index
    %c0_60 = arith.constant 0 : index
    %c0_61 = arith.constant 0 : index
    %51 = vector.load %arg8[%c0_59, %c0_60, %c0_61] : memref<1x1x128xf32, #tpu.memory_space<vmem>>, vector<1x1x128xf32>
    %52 = vector.shape_cast %51 : vector<1x1x128xf32> to vector<1x128xf32>
    %53 = vector.shape_cast %50 : vector<1x128xf32> to vector<1x1x128xf32>
    tpu.vector_store %arg8[%c0_59, %c0_60, %c0_61], %53 {strides = array<i32>} : memref<1x1x128xf32, #tpu.memory_space<vmem>>, vector<1x1x128xf32>,
    %54 = vector.shape_cast %42 : vector<256x128xf32> to vector<16x16x128xf32>
    %c0_62 = arith.constant 0 : index
    %c0_63 = arith.constant 0 : index
    %c0_64 = arith.constant 0 : index
    %c0_65 = arith.constant 0 : index
    %55 = vector.load %arg6[%c0_62, %c0_63, %c0_64, %c0_65] : memref<1x16x16x128xf32, #tpu.memory_space<vmem>>, vector<1x16x16x128xf32>
    %56 = vector.shape_cast %55 : vector<1x16x16x128xf32> to vector<16x16x128xf32>
    %57 = vector.shape_cast %54 : vector<16x16x128xf32> to vector<1x16x16x128xf32>
    tpu.vector_store %arg6[%c0_62, %c0_63, %c0_64, %c0_65], %57 {strides = array<i32>} : memref<1x16x16x128xf32, #tpu.memory_space<vmem>>, vector<1x16x16x128xf32>,
    return
  }
  func.func @transform_0(%arg0: i32) -> (i32, i32, i32, i32) {
    %c0_i32 = arith.constant 0 : i32
    %c0_i32_0 = arith.constant 0 : i32
    %c0_i32_1 = arith.constant 0 : i32
    %c0_i32_2 = arith.constant 0 : i32
    return %arg0, %c0_i32, %c0_i32_0, %c0_i32_1 : i32, i32, i32, i32
  }
  func.func @transform_1(%arg0: i32) -> (i32, i32, i32, i32) {
    %c0_i32 = arith.constant 0 : i32
    %c0_i32_0 = arith.constant 0 : i32
    %c0_i32_1 = arith.constant 0 : i32
    %c0_i32_2 = arith.constant 0 : i32
    return %arg0, %c0_i32, %c0_i32_0, %c0_i32_1 : i32, i32, i32, i32
  }
  func.func @transform_2(%arg0: i32) -> (i32, i32) {
    %c0_i32 = arith.constant 0 : i32
    %c0_i32_0 = arith.constant 0 : i32
    %c0_i32_1 = arith.constant 0 : i32
    return %c0_i32, %c0_i32_0 : i32, i32
  }
  func.func @transform_3(%arg0: i32) -> (i32, i32) {
    %c0_i32 = arith.constant 0 : i32
    %c0_i32_0 = arith.constant 0 : i32
    %c0_i32_1 = arith.constant 0 : i32
    return %c0_i32, %c0_i32_0 : i32, i32
  }
  func.func @transform_4(%arg0: i32) -> (i32, i32, i32) {
    %c0_i32 = arith.constant 0 : i32
    %c0_i32_0 = arith.constant 0 : i32
    %c0_i32_1 = arith.constant 0 : i32
    %c0_i32_2 = arith.constant 0 : i32
    return %c0_i32, %c0_i32_0, %c0_i32_1 : i32, i32, i32
  }
  func.func @transform_5(%arg0: i32) -> (i32, i32, i32, i32) {
    %c0_i32 = arith.constant 0 : i32
    %c0_i32_0 = arith.constant 0 : i32
    %c0_i32_1 = arith.constant 0 : i32
    %c0_i32_2 = arith.constant 0 : i32
    return %arg0, %c0_i32, %c0_i32_0, %c0_i32_1 : i32, i32, i32, i32
  }
  func.func @transform_6(%arg0: i32) -> (i32, i32, i32) {
    %c0_i32 = arith.constant 0 : i32
    %c0_i32_0 = arith.constant 0 : i32
    %c0_i32_1 = arith.constant 0 : i32
    return %arg0, %c0_i32, %c0_i32_0 : i32, i32, i32
  }
  func.func @transform_7(%arg0: i32) -> (i32, i32, i32) {
    %c0_i32 = arith.constant 0 : i32
    %c0_i32_0 = arith.constant 0 : i32
    %c0_i32_1 = arith.constant 0 : i32
    return %arg0, %c0_i32, %c0_i32_0 : i32, i32, i32
  }
}

</mosaic_0001>

<llo_original>
// kernel: basic_block_forward.2
$region0: #{basic_block_forward.2}
  #allocation0 [shape = 'u32[]', space=smem, size = 0x4, offset = 0x4, fixed_abs, tag = 'smem constant byte address 0x4 - core index']
  #allocation1 [shape = 'u32[72,128]{1,0:T(1,128)}', space=vmem, size = 0x9000, scoped, tag = 'internal scratch']
  %s0 = inlined_call_operand.vmem [shape: f32[2,18,18,128], index: 0, kind: input, shape index: {}]
  %s1 = inlined_call_operand.vmem [shape: f32[3,384,128], index: 1, kind: input, shape index: {}]
  %s2 = inlined_call_operand.vmem [shape: f32[2,16,16,128], index: 2, kind: output, shape index: {0}]
  %s3 = inlined_call_operand.vmem [shape: f32[2,1,128], index: 3, kind: output, shape index: {1}]
  %s4 = inlined_call_operand.vmem [shape: f32[2,1,128], index: 4, kind: output, shape index: {2}]
  %5 = xla_tuple %s2, %s3, %s4
  %s6 = sld [smem:[#allocation0]]
  $region57: #{basic_block_forward.2} parent=0
    _
  %s8 = ssub.s32 1, %s6
  %s9 = scalar_select 0, %s8, %s6
  loop: start=0, step=1, limit=4
  $region2: #{basic_block_forward.2} parent=0 // loop_pre_header
    _
  $region3: #{basic_block_forward.2} parent=0 // loop_header
    %s11 = sphi 0, %s15
    %p12 = scmp.ge.s32.totalorder %s11, 4
    %s21 = sphi 0, %s23
    %s24 = sphi 0, %s21
    %s25 = sphi 0, %s24
    %s41 = sphi 0, %s25
    %s45 = sphi 0, %s45
    %s47 = sphi 0, %s45
    %s48 = sphi 0, %s47
    %s62 = sphi 0, %s48
    %s68 = sphi 0, %s70
    %s71 = sphi 0, %s68
    %s72 = sphi 0, %s71
    %s88 = sphi 0, %s72
    %s94 = sphi 0, %s96
    %s97 = sphi 0, %s94
    %s98 = sphi 0, %s97
    %s114 = sphi 0, %s98
    %s120 = sphi 0, %s122
    %s123 = sphi 0, %s120
    %s124 = sphi 0, %s123
    %s140 = sphi 0, %s124
  $region4: #{basic_block_forward.2} parent=0 // loop_header_branch
    %14 = sbr.rel (%p12) target = $region8
  $region5: #{basic_block_forward.2} parent=0 // loop_body
    %s16 = ssub.s32 %s11, 1
    %s17 = ssub.s32 %s11, 2
    %s18 = sadd.s32 %s11, 1
    %s19 = ssub.s32 %s11, %s18
    %p20 = scmp.eq.s32.totalorder %s19, 0
    %s22 = sadd.s32 %s21, 1
    %s23 = scalar_select %p20, %s21, %s22
    %p26 = pneg %p20
    %p27 = scmp.eq.s32.totalorder %s11, 1
    %p28 = por %p26, %p27
    %p29 = scmp.ne.s32.totalorder %s21, %s24
    %p30 = scmp.eq.s32.totalorder %s11, 0
    %p31 = por %p29, %p30
    %p32 = scmp.ne.s32.totalorder %s21, %s24
    %p33 = scmp.eq.s32.totalorder %s16, 1
    %p34 = por %p32, %p33
    %p35 = scmp.ne.s32.totalorder %s24, %s25
    %p36 = scmp.eq.s32.totalorder %s16, 0
    %p37 = por %p35, %p36
    %p38 = scmp.ne.s32.totalorder %s24, %s25
    %p39 = scmp.eq.s32.totalorder %s17, 1
    %p40 = por %p38, %p39
    %p42 = scmp.ne.s32.totalorder %s25, %s41
    %p43 = scmp.eq.s32.totalorder %s17, 0
    %p44 = por %p42, %p43
    %s46 = sadd.s32 %s45, 1
    %p49 = scmp.eq.s32.totalorder %s11, 1
    %p50 = scmp.ne.s32.totalorder %s45, %s47
    %p51 = scmp.eq.s32.totalorder %s11, 0
    %p52 = por %p50, %p51
    %p53 = scmp.ne.s32.totalorder %s45, %s47
    %p54 = scmp.eq.s32.totalorder %s16, 1
    %p55 = por %p53, %p54
    %p56 = scmp.ne.s32.totalorder %s47, %s48
    %p57 = scmp.eq.s32.totalorder %s16, 0
    %p58 = por %p56, %p57
    %p59 = scmp.ne.s32.totalorder %s47, %s48
    %p60 = scmp.eq.s32.totalorder %s17, 1
    %p61 = por %p59, %p60
    %p63 = scmp.ne.s32.totalorder %s48, %s62
    %p64 = scmp.eq.s32.totalorder %s17, 0
    %p65 = por %p63, %p64
    %s66 = ssub.s32 %s11, %s18
    %p67 = scmp.eq.s32.totalorder %s66, 0
    %s69 = sadd.s32 %s68, 1
    %s70 = scalar_select %p67, %s68, %s69
    %p73 = pneg %p67
    %p74 = scmp.eq.s32.totalorder %s11, 1
    %p75 = por %p73, %p74
    %p76 = scmp.ne.s32.totalorder %s68, %s71
    %p77 = scmp.eq.s32.totalorder %s11, 0
    %p78 = por %p76, %p77
    %p79 = scmp.ne.s32.totalorder %s68, %s71
    %p80 = scmp.eq.s32.totalorder %s16, 1
    %p81 = por %p79, %p80
    %p82 = scmp.ne.s32.totalorder %s71, %s72
    %p83 = scmp.eq.s32.totalorder %s16, 0
    %p84 = por %p82, %p83
    %p85 = scmp.ne.s32.totalorder %s71, %s72
    %p86 = scmp.eq.s32.totalorder %s17, 1
    %p87 = por %p85, %p86
    %p89 = scmp.ne.s32.totalorder %s72, %s88
    %p90 = scmp.eq.s32.totalorder %s17, 0
    %p91 = por %p89, %p90
    %s92 = ssub.s32 %s11, %s18
    %p93 = scmp.eq.s32.totalorder %s92, 0
    %s95 = sadd.s32 %s94, 1
    %s96 = scalar_select %p93, %s94, %s95
    %p99 = pneg %p93
    %p100 = scmp.eq.s32.totalorder %s11, 1
    %p101 = por %p99, %p100
    %p102 = scmp.ne.s32.totalorder %s94, %s97
    %p103 = scmp.eq.s32.totalorder %s11, 0
    %p104 = por %p102, %p103
    %p105 = scmp.ne.s32.totalorder %s94, %s97
    %p106 = scmp.eq.s32.totalorder %s16, 1
    %p107 = por %p105, %p106
    %p108 = scmp.ne.s32.totalorder %s97, %s98
    %p109 = scmp.eq.s32.totalorder %s16, 0
    %p110 = por %p108, %p109
    %p111 = scmp.ne.s32.totalorder %s97, %s98
    %p112 = scmp.eq.s32.totalorder %s17, 1
    %p113 = por %p111, %p112
    %p115 = scmp.ne.s32.totalorder %s98, %s114
    %p116 = scmp.eq.s32.totalorder %s17, 0
    %p117 = por %p115, %p116
    %s118 = ssub.s32 %s11, %s18
    %p119 = scmp.eq.s32.totalorder %s118, 0
    %s121 = sadd.s32 %s120, 1
    %s122 = scalar_select %p119, %s120, %s121
    %p125 = pneg %p119
    %p126 = scmp.eq.s32.totalorder %s11, 1
    %p127 = por %p125, %p126
    %p128 = scmp.ne.s32.totalorder %s120, %s123
    %p129 = scmp.eq.s32.totalorder %s11, 0
    %p130 = por %p128, %p129
    %p131 = scmp.ne.s32.totalorder %s120, %s123
    %p132 = scmp.eq.s32.totalorder %s16, 1
    %p133 = por %p131, %p132
    %p134 = scmp.ne.s32.totalorder %s123, %s124
    %p135 = scmp.eq.s32.totalorder %s16, 0
    %p136 = por %p134, %p135
    %p137 = scmp.ne.s32.totalorder %s123, %s124
    %p138 = scmp.eq.s32.totalorder %s17, 1
    %p139 = por %p137, %p138
    %p141 = scmp.ne.s32.totalorder %s124, %s140
    %p142 = scmp.eq.s32.totalorder %s17, 0
    %p143 = por %p141, %p142
    %p144 = scmp.le.s32.totalorder 1, %s11
    %p145 = scmp.lt.s32.totalorder %s11, 3
    %p146 = pnand %p144, %p145
    %p147 = pneg %p146
    // Predicated region
    $region9: #{basic_block_forward.2} parent=5 // pred_check
      _
    $region10: #{basic_block_forward.2} parent=5 // pred_check_branch
      %149 = sbr.rel (%p146) target = $region12
    $region11: #{basic_block_forward.2} parent=5 // pred_region
      %s150 = ssub.s32 %s11, 1
      // Predicated region
      $region13: #{basic_block_forward.2} parent=11 // pred_check
        %p151 = pneg %p58
      $region14: #{basic_block_forward.2} parent=11 // pred_check_branch
        %153 = sbr.rel (%p151) target = $region16
      $region15: #{basic_block_forward.2} parent=11 // pred_region
        _
      $region16: #{basic_block_forward.2} parent=11 // pred_fallthru
        _
    $region12: #{basic_block_forward.2} parent=5 // pred_fallthru
      _
    %p154 = scmp.lt.s32.totalorder %s11, 2
    // Predicated region
    $region17: #{basic_block_forward.2} parent=5 // pred_check
      %p155 = pneg %p154
    $region18: #{basic_block_forward.2} parent=5 // pred_check_branch
      %157 = sbr.rel (%p155) target = $region20
    $region19: #{basic_block_forward.2} parent=5 // pred_region
      // Predicated region
      $region21: #{basic_block_forward.2} parent=19 // pred_check
        %p158 = pneg %p31
      $region22: #{basic_block_forward.2} parent=19 // pred_check_branch
        %160 = sbr.rel (%p158) target = $region24
      $region23: #{basic_block_forward.2} parent=19 // pred_region
        %p161 = scmp.lt.s32.totalorder %s11, 1
        %s162 = scalar_select %p161, %s11, 1
        %s163 = smul.addr %s162, 54
        %s164 = smul.addr %s163, 8
        %s165 = scalar_lea.vmem %s0, %s164
      $region24: #{basic_block_forward.2} parent=19 // pred_fallthru
        _
    $region20: #{basic_block_forward.2} parent=5 // pred_fallthru
      _
    %p166 = scmp.le.s32.totalorder 1, %s11
    %p167 = scmp.lt.s32.totalorder %s11, 3
    %p168 = pnand %p166, %p167
    %p169 = pneg %p168
    // Predicated region
    $region25: #{basic_block_forward.2} parent=5 // pred_check
      _
    $region26: #{basic_block_forward.2} parent=5 // pred_check_branch
      %171 = sbr.rel (%p168) target = $region28
    $region27: #{basic_block_forward.2} parent=5 // pred_region
      %s172 = ssub.s32 %s11, 1
      %p173 = scmp.lt.s32.totalorder %s16, 1
      %s174 = scalar_select %p173, %s16, 1
      %s175 = smul.addr %s174, 54
      %s176 = smul.addr %s175, 8
      %s177 = scalar_lea.vmem %s0, %s176
      %p178 = pneg %p37
      %p179 = pneg %p34
      %p180 = pneg %p58
      %p181 = pneg %p55
      %p182 = pneg %p84
      %p183 = pneg %p81
      %p184 = scmp.lt.s32.totalorder %s16, 1
      %s185 = scalar_select %p184, %s16, 1
      %s186 = smul.addr %s185, 32
      %s187 = smul.addr %s186, 8
      %s188 = scalar_lea.vmem %s2, %s187
      %p189 = pneg %p110
      %p190 = pneg %p107
      %p191 = scmp.lt.s32.totalorder %s16, 1
      %s192 = scalar_select %p191, %s16, 1
      %s193 = scalar_lea.vmem %s3, %s192
      %p194 = pneg %p136
      %p195 = pneg %p133
      %p196 = scmp.lt.s32.totalorder %s16, 1
      %s197 = scalar_select %p196, %s16, 1
      %s198 = scalar_lea.vmem %s4, %s197
      %p199 = scmp.lt.s32.totalorder %s16, 1
      %s200 = scalar_select %p199, %s16, 1
      %s201 = smul.addr %s200, 54
      %s202 = smul.addr %s201, 8
      %s203 = scalar_lea.vmem %s0, %s202
      %p204 = scmp.lt.s32.totalorder %s16, 1
      %s205 = scalar_select %p204, %s16, 1
      %s206 = smul.addr %s205, 32
      %s207 = smul.addr %s206, 8
      %s208 = scalar_lea.vmem %s2, %s207
      %p209 = scmp.lt.s32.totalorder %s16, 1
      %s210 = scalar_select %p209, %s16, 1
      %s211 = scalar_lea.vmem %s3, %s210
      %p212 = scmp.lt.s32.totalorder %s16, 1
      %s213 = scalar_select %p212, %s16, 1
      %s214 = scalar_lea.vmem %s4, %s213
      %v215 = vld [vmem:[%s203] sm:$0xff]
      %v216 = vld [vmem:[%s203 + $0x8] sm:$0xff]
      %v217 = vld [vmem:[%s203 + $0x18] sm:$0xff]
      %v218 = vld [vmem:[%s203 + $0x20] sm:$0xff]
      %v219 = vld [vmem:[%s203 + $0x30] sm:$0xff]
      %v220 = vld [vmem:[%s203 + $0x38] sm:$0xff]
      %v221 = vld [vmem:[%s203 + $0x48] sm:$0xff]
      %v222 = vld [vmem:[%s203 + $0x50] sm:$0xff]
      %v223 = vld [vmem:[%s203 + $0x60] sm:$0xff]
      %v224 = vld [vmem:[%s203 + $0x68] sm:$0xff]
      %v225 = vld [vmem:[%s203 + $0x78] sm:$0xff]
      %v226 = vld [vmem:[%s203 + $0x80] sm:$0xff]
      %v227 = vld [vmem:[%s203 + $0x90] sm:$0xff]
      %v228 = vld [vmem:[%s203 + $0x98] sm:$0xff]
      %v229 = vld [vmem:[%s203 + $0xa8] sm:$0xff]
      %v230 = vld [vmem:[%s203 + $0xb0] sm:$0xff]
      %v231 = vld [vmem:[%s203 + $0xc0] sm:$0xff]
      %v232 = vld [vmem:[%s203 + $0xc8] sm:$0xff]
      %v233 = vld [vmem:[%s203 + $0xd8] sm:$0xff]
      %v234 = vld [vmem:[%s203 + $0xe0] sm:$0xff]
      %v235 = vld [vmem:[%s203 + $0xf0] sm:$0xff]
      %v236 = vld [vmem:[%s203 + $0xf8] sm:$0xff]
      %v237 = vld [vmem:[%s203 + $0x108] sm:$0xff]
      %v238 = vld [vmem:[%s203 + $0x110] sm:$0xff]
      %v239 = vld [vmem:[%s203 + $0x120] sm:$0xff]
      %v240 = vld [vmem:[%s203 + $0x128] sm:$0xff]
      %v241 = vld [vmem:[%s203 + $0x138] sm:$0xff]
      %v242 = vld [vmem:[%s203 + $0x140] sm:$0xff]
      %v243 = vld [vmem:[%s203 + $0x150] sm:$0xff]
      %v244 = vld [vmem:[%s203 + $0x158] sm:$0xff]
      %v245 = vld [vmem:[%s203 + $0x168] sm:$0xff]
      %v246 = vld [vmem:[%s203 + $0x170] sm:$0xff]
      %v247 = vld [vmem:[%s203 + $0x1] sm:$0xff]
      %v248 = vld [vmem:[%s203 + $0x9] sm:$0xff]
      %v249 = vld [vmem:[%s203 + $0x19] sm:$0xff]
      %v250 = vld [vmem:[%s203 + $0x21] sm:$0xff]
      %v251 = vld [vmem:[%s203 + $0x31] sm:$0xff]
      %v252 = vld [vmem:[%s203 + $0x39] sm:$0xff]
      %v253 = vld [vmem:[%s203 + $0x49] sm:$0xff]
      %v254 = vld [vmem:[%s203 + $0x51] sm:$0xff]
      %v255 = vld [vmem:[%s203 + $0x61] sm:$0xff]
      %v256 = vld [vmem:[%s203 + $0x69] sm:$0xff]
      %v257 = vld [vmem:[%s203 + $0x79] sm:$0xff]
      %v258 = vld [vmem:[%s203 + $0x81] sm:$0xff]
      %v259 = vld [vmem:[%s203 + $0x91] sm:$0xff]
      %v260 = vld [vmem:[%s203 + $0x99] sm:$0xff]
      %v261 = vld [vmem:[%s203 + $0xa9] sm:$0xff]
      %v262 = vld [vmem:[%s203 + $0xb1] sm:$0xff]
      %v263 = vld [vmem:[%s203 + $0xc1] sm:$0xff]
      %v264 = vld [vmem:[%s203 + $0xc9] sm:$0xff]
      %v265 = vld [vmem:[%s203 + $0xd9] sm:$0xff]
      %v266 = vld [vmem:[%s203 + $0xe1] sm:$0xff]
      %v267 = vld [vmem:[%s203 + $0xf1] sm:$0xff]
      %v268 = vld [vmem:[%s203 + $0xf9] sm:$0xff]
      %v269 = vld [vmem:[%s203 + $0x109] sm:$0xff]
      %v270 = vld [vmem:[%s203 + $0x111] sm:$0xff]
      %v271 = vld [vmem:[%s203 + $0x121] sm:$0xff]
      %v272 = vld [vmem:[%s203 + $0x129] sm:$0xff]
      %v273 = vld [vmem:[%s203 + $0x139] sm:$0xff]
      %v274 = vld [vmem:[%s203 + $0x141] sm:$0xff]
      %v275 = vld [vmem:[%s203 + $0x151] sm:$0xff]
      %v276 = vld [vmem:[%s203 + $0x159] sm:$0xff]
      %v277 = vld [vmem:[%s203 + $0x169] sm:$0xff]
      %v278 = vld [vmem:[%s203 + $0x171] sm:$0xff]
      %v279 = vld [vmem:[%s203 + $0x2] sm:$0xff]
      %v280 = vld [vmem:[%s203 + $0xa] sm:$0xff]
      %v281 = vld [vmem:[%s203 + $0x1a] sm:$0xff]
      %v282 = vld [vmem:[%s203 + $0x22] sm:$0xff]
      %v283 = vld [vmem:[%s203 + $0x32] sm:$0xff]
      %v284 = vld [vmem:[%s203 + $0x3a] sm:$0xff]
      %v285 = vld [vmem:[%s203 + $0x4a] sm:$0xff]
      %v286 = vld [vmem:[%s203 + $0x52] sm:$0xff]
      %v287 = vld [vmem:[%s203 + $0x62] sm:$0xff]
      %v288 = vld [vmem:[%s203 + $0x6a] sm:$0xff]
      %v289 = vld [vmem:[%s203 + $0x7a] sm:$0xff]
      %v290 = vld [vmem:[%s203 + $0x82] sm:$0xff]
      %v291 = vld [vmem:[%s203 + $0x92] sm:$0xff]
      %v292 = vld [vmem:[%s203 + $0x9a] sm:$0xff]
      %v293 = vld [vmem:[%s203 + $0xaa] sm:$0xff]
      %v294 = vld [vmem:[%s203 + $0xb2] sm:$0xff]
      %v295 = vld [vmem:[%s203 + $0xc2] sm:$0xff]
      %v296 = vld [vmem:[%s203 + $0xca] sm:$0xff]
      %v297 = vld [vmem:[%s203 + $0xda] sm:$0xff]
      %v298 = vld [vmem:[%s203 + $0xe2] sm:$0xff]
      %v299 = vld [vmem:[%s203 + $0xf2] sm:$0xff]
      %v300 = vld [vmem:[%s203 + $0xfa] sm:$0xff]
      %v301 = vld [vmem:[%s203 + $0x10a] sm:$0xff]
      %v302 = vld [vmem:[%s203 + $0x112] sm:$0xff]
      %v303 = vld [vmem:[%s203 + $0x122] sm:$0xff]
      %v304 = vld [vmem:[%s203 + $0x12a] sm:$0xff]
      %v305 = vld [vmem:[%s203 + $0x13a] sm:$0xff]
      %v306 = vld [vmem:[%s203 + $0x142] sm:$0xff]
      %v307 = vld [vmem:[%s203 + $0x152] sm:$0xff]
      %v308 = vld [vmem:[%s203 + $0x15a] sm:$0xff]
      %v309 = vld [vmem:[%s203 + $0x16a] sm:$0xff]
      %v310 = vld [vmem:[%s203 + $0x172] sm:$0xff]
      %v311 = vld [vmem:[%s1] sm:$0xff]
      %v312 = vld [vmem:[%s1 + $0x8] sm:$0xff]
      %v313 = vld [vmem:[%s1 + $0x10] sm:$0xff]
      %v314 = vld [vmem:[%s1 + $0x18] sm:$0xff]
      %v315 = vld [vmem:[%s1 + $0x20] sm:$0xff]
      %v316 = vld [vmem:[%s1 + $0x28] sm:$0xff]
      %v317 = vld [vmem:[%s1 + $0x30] sm:$0xff]
      %v318 = vld [vmem:[%s1 + $0x38] sm:$0xff]
      %v319 = vld [vmem:[%s1 + $0x40] sm:$0xff]
      %v320 = vld [vmem:[%s1 + $0x48] sm:$0xff]
      %v321 = vld [vmem:[%s1 + $0x50] sm:$0xff]
      %v322 = vld [vmem:[%s1 + $0x58] sm:$0xff]
      %v323 = vld [vmem:[%s1 + $0x60] sm:$0xff]
      %v324 = vld [vmem:[%s1 + $0x68] sm:$0xff]
      %v325 = vld [vmem:[%s1 + $0x70] sm:$0xff]
      %v326 = vld [vmem:[%s1 + $0x78] sm:$0xff]
      %v327 = vld [vmem:[%s1 + $0x80] sm:$0xff]
      %v328 = vld [vmem:[%s1 + $0x88] sm:$0xff]
      %v329 = vld [vmem:[%s1 + $0x90] sm:$0xff]
      %v330 = vld [vmem:[%s1 + $0x98] sm:$0xff]
      %v331 = vld [vmem:[%s1 + $0xa0] sm:$0xff]
      %v332 = vld [vmem:[%s1 + $0xa8] sm:$0xff]
      %v333 = vld [vmem:[%s1 + $0xb0] sm:$0xff]
      %v334 = vld [vmem:[%s1 + $0xb8] sm:$0xff]
      %v335 = vld [vmem:[%s1 + $0xc0] sm:$0xff]
      %v336 = vld [vmem:[%s1 + $0xc8] sm:$0xff]
      %v337 = vld [vmem:[%s1 + $0xd0] sm:$0xff]
      %v338 = vld [vmem:[%s1 + $0xd8] sm:$0xff]
      %v339 = vld [vmem:[%s1 + $0xe0] sm:$0xff]
      %v340 = vld [vmem:[%s1 + $0xe8] sm:$0xff]
      %v341 = vld [vmem:[%s1 + $0xf0] sm:$0xff]
      %v342 = vld [vmem:[%s1 + $0xf8] sm:$0xff]
      %v343 = vld [vmem:[%s1 + $0x100] sm:$0xff]
      %v344 = vld [vmem:[%s1 + $0x108] sm:$0xff]
      %v345 = vld [vmem:[%s1 + $0x110] sm:$0xff]
      %v346 = vld [vmem:[%s1 + $0x118] sm:$0xff]
      %v347 = vld [vmem:[%s1 + $0x120] sm:$0xff]
      %v348 = vld [vmem:[%s1 + $0x128] sm:$0xff]
      %v349 = vld [vmem:[%s1 + $0x130] sm:$0xff]
      %v350 = vld [vmem:[%s1 + $0x138] sm:$0xff]
      %v351 = vld [vmem:[%s1 + $0x140] sm:$0xff]
      %v352 = vld [vmem:[%s1 + $0x148] sm:$0xff]
      %v353 = vld [vmem:[%s1 + $0x150] sm:$0xff]
      %v354 = vld [vmem:[%s1 + $0x158] sm:$0xff]
      %v355 = vld [vmem:[%s1 + $0x160] sm:$0xff]
      %v356 = vld [vmem:[%s1 + $0x168] sm:$0xff]
      %v357 = vld [vmem:[%s1 + $0x170] sm:$0xff]
      %v358 = vld [vmem:[%s1 + $0x178] sm:$0xff]
      %s359 = scalar_lea.vmem %s203, 24
      %v360 = vld [vmem:[%s359] sm:$0xff]
      %v361 = vld [vmem:[%s359 + $0x8] sm:$0xff]
      %v362 = vld [vmem:[%s359 + $0x18] sm:$0xff]
      %v363 = vld [vmem:[%s359 + $0x20] sm:$0xff]
      %v364 = vld [vmem:[%s359 + $0x30] sm:$0xff]
      %v365 = vld [vmem:[%s359 + $0x38] sm:$0xff]
      %v366 = vld [vmem:[%s359 + $0x48] sm:$0xff]
      %v367 = vld [vmem:[%s359 + $0x50] sm:$0xff]
      %v368 = vld [vmem:[%s359 + $0x60] sm:$0xff]
      %v369 = vld [vmem:[%s359 + $0x68] sm:$0xff]
      %v370 = vld [vmem:[%s359 + $0x78] sm:$0xff]
      %v371 = vld [vmem:[%s359 + $0x80] sm:$0xff]
      %v372 = vld [vmem:[%s359 + $0x90] sm:$0xff]
      %v373 = vld [vmem:[%s359 + $0x98] sm:$0xff]
      %v374 = vld [vmem:[%s359 + $0xa8] sm:$0xff]
      %v375 = vld [vmem:[%s359 + $0xb0] sm:$0xff]
      %v376 = vld [vmem:[%s359 + $0xc0] sm:$0xff]
      %v377 = vld [vmem:[%s359 + $0xc8] sm:$0xff]
      %v378 = vld [vmem:[%s359 + $0xd8] sm:$0xff]
      %v379 = vld [vmem:[%s359 + $0xe0] sm:$0xff]
      %v380 = vld [vmem:[%s359 + $0xf0] sm:$0xff]
      %v381 = vld [vmem:[%s359 + $0xf8] sm:$0xff]
      %v382 = vld [vmem:[%s359 + $0x108] sm:$0xff]
      %v383 = vld [vmem:[%s359 + $0x110] sm:$0xff]
      %v384 = vld [vmem:[%s359 + $0x120] sm:$0xff]
      %v385 = vld [vmem:[%s359 + $0x128] sm:$0xff]
      %v386 = vld [vmem:[%s359 + $0x138] sm:$0xff]
      %v387 = vld [vmem:[%s359 + $0x140] sm:$0xff]
      %v388 = vld [vmem:[%s359 + $0x150] sm:$0xff]
      %v389 = vld [vmem:[%s359 + $0x158] sm:$0xff]
      %v390 = vld [vmem:[%s359 + $0x168] sm:$0xff]
      %v391 = vld [vmem:[%s359 + $0x170] sm:$0xff]
      %v392 = vld [vmem:[%s359 + $0x1] sm:$0xff]
      %v393 = vld [vmem:[%s359 + $0x9] sm:$0xff]
      %v394 = vld [vmem:[%s359 + $0x19] sm:$0xff]
      %v395 = vld [vmem:[%s359 + $0x21] sm:$0xff]
      %v396 = vld [vmem:[%s359 + $0x31] sm:$0xff]
      %v397 = vld [vmem:[%s359 + $0x39] sm:$0xff]
      %v398 = vld [vmem:[%s359 + $0x49] sm:$0xff]
      %v399 = vld [vmem:[%s359 + $0x51] sm:$0xff]
      %v400 = vld [vmem:[%s359 + $0x61] sm:$0xff]
      %v401 = vld [vmem:[%s359 + $0x69] sm:$0xff]
      %v402 = vld [vmem:[%s359 + $0x79] sm:$0xff]
      %v403 = vld [vmem:[%s359 + $0x81] sm:$0xff]
      %v404 = vld [vmem:[%s359 + $0x91] sm:$0xff]
      %v405 = vld [vmem:[%s359 + $0x99] sm:$0xff]
      %v406 = vld [vmem:[%s359 + $0xa9] sm:$0xff]
      %v407 = vld [vmem:[%s359 + $0xb1] sm:$0xff]
      %v408 = vld [vmem:[%s359 + $0xc1] sm:$0xff]
      %v409 = vld [vmem:[%s359 + $0xc9] sm:$0xff]
      %v410 = vld [vmem:[%s359 + $0xd9] sm:$0xff]
      %v411 = vld [vmem:[%s359 + $0xe1] sm:$0xff]
      %v412 = vld [vmem:[%s359 + $0xf1] sm:$0xff]
      %v413 = vld [vmem:[%s359 + $0xf9] sm:$0xff]
      %v414 = vld [vmem:[%s359 + $0x109] sm:$0xff]
      %v415 = vld [vmem:[%s359 + $0x111] sm:$0xff]
      %v416 = vld [vmem:[%s359 + $0x121] sm:$0xff]
      %v417 = vld [vmem:[%s359 + $0x129] sm:$0xff]
      %v418 = vld [vmem:[%s359 + $0x139] sm:$0xff]
      %v419 = vld [vmem:[%s359 + $0x141] sm:$0xff]
      %v420 = vld [vmem:[%s359 + $0x151] sm:$0xff]
      %v421 = vld [vmem:[%s359 + $0x159] sm:$0xff]
      %v422 = vld [vmem:[%s359 + $0x169] sm:$0xff]
      %v423 = vld [vmem:[%s359 + $0x171] sm:$0xff]
      %v424 = vld [vmem:[%s359 + $0x2] sm:$0xff]
      %v425 = vld [vmem:[%s359 + $0xa] sm:$0xff]
      %v426 = vld [vmem:[%s359 + $0x1a] sm:$0xff]
      %v427 = vld [vmem:[%s359 + $0x22] sm:$0xff]
      %v428 = vld [vmem:[%s359 + $0x32] sm:$0xff]
      %v429 = vld [vmem:[%s359 + $0x3a] sm:$0xff]
      %v430 = vld [vmem:[%s359 + $0x4a] sm:$0xff]
      %v431 = vld [vmem:[%s359 + $0x52] sm:$0xff]
      %v432 = vld [vmem:[%s359 + $0x62] sm:$0xff]
      %v433 = vld [vmem:[%s359 + $0x6a] sm:$0xff]
      %v434 = vld [vmem:[%s359 + $0x7a] sm:$0xff]
      %v435 = vld [vmem:[%s359 + $0x82] sm:$0xff]
      %v436 = vld [vmem:[%s359 + $0x92] sm:$0xff]
      %v437 = vld [vmem:[%s359 + $0x9a] sm:$0xff]
      %v438 = vld [vmem:[%s359 + $0xaa] sm:$0xff]
      %v439 = vld [vmem:[%s359 + $0xb2] sm:$0xff]
      %v440 = vld [vmem:[%s359 + $0xc2] sm:$0xff]
      %v441 = vld [vmem:[%s359 + $0xca] sm:$0xff]
      %v442 = vld [vmem:[%s359 + $0xda] sm:$0xff]
      %v443 = vld [vmem:[%s359 + $0xe2] sm:$0xff]
      %v444 = vld [vmem:[%s359 + $0xf2] sm:$0xff]
      %v445 = vld [vmem:[%s359 + $0xfa] sm:$0xff]
      %v446 = vld [vmem:[%s359 + $0x10a] sm:$0xff]
      %v447 = vld [vmem:[%s359 + $0x112] sm:$0xff]
      %v448 = vld [vmem:[%s359 + $0x122] sm:$0xff]
      %v449 = vld [vmem:[%s359 + $0x12a] sm:$0xff]
      %v450 = vld [vmem:[%s359 + $0x13a] sm:$0xff]
      %v451 = vld [vmem:[%s359 + $0x142] sm:$0xff]
      %v452 = vld [vmem:[%s359 + $0x152] sm:$0xff]
      %v453 = vld [vmem:[%s359 + $0x15a] sm:$0xff]
      %v454 = vld [vmem:[%s359 + $0x16a] sm:$0xff]
      %v455 = vld [vmem:[%s359 + $0x172] sm:$0xff]
      %s456 = scalar_lea.vmem %s1, 384
      %v457 = vld [vmem:[%s456] sm:$0xff]
      %v458 = vld [vmem:[%s456 + $0x8] sm:$0xff]
      %v459 = vld [vmem:[%s456 + $0x10] sm:$0xff]
      %v460 = vld [vmem:[%s456 + $0x18] sm:$0xff]
      %v461 = vld [vmem:[%s456 + $0x20] sm:$0xff]
      %v462 = vld [vmem:[%s456 + $0x28] sm:$0xff]
      %v463 = vld [vmem:[%s456 + $0x30] sm:$0xff]
      %v464 = vld [vmem:[%s456 + $0x38] sm:$0xff]
      %v465 = vld [vmem:[%s456 + $0x40] sm:$0xff]
      %v466 = vld [vmem:[%s456 + $0x48] sm:$0xff]
      %v467 = vld [vmem:[%s456 + $0x50] sm:$0xff]
      %v468 = vld [vmem:[%s456 + $0x58] sm:$0xff]
      %v469 = vld [vmem:[%s456 + $0x60] sm:$0xff]
      %v470 = vld [vmem:[%s456 + $0x68] sm:$0xff]
      %v471 = vld [vmem:[%s456 + $0x70] sm:$0xff]
      %v472 = vld [vmem:[%s456 + $0x78] sm:$0xff]
      %v473 = vld [vmem:[%s456 + $0x80] sm:$0xff]
      %v474 = vld [vmem:[%s456 + $0x88] sm:$0xff]
      %v475 = vld [vmem:[%s456 + $0x90] sm:$0xff]
      %v476 = vld [vmem:[%s456 + $0x98] sm:$0xff]
      %v477 = vld [vmem:[%s456 + $0xa0] sm:$0xff]
      %v478 = vld [vmem:[%s456 + $0xa8] sm:$0xff]
      %v479 = vld [vmem:[%s456 + $0xb0] sm:$0xff]
      %v480 = vld [vmem:[%s456 + $0xb8] sm:$0xff]
      %v481 = vld [vmem:[%s456 + $0xc0] sm:$0xff]
      %v482 = vld [vmem:[%s456 + $0xc8] sm:$0xff]
      %v483 = vld [vmem:[%s456 + $0xd0] sm:$0xff]
      %v484 = vld [vmem:[%s456 + $0xd8] sm:$0xff]
      %v485 = vld [vmem:[%s456 + $0xe0] sm:$0xff]
      %v486 = vld [vmem:[%s456 + $0xe8] sm:$0xff]
      %v487 = vld [vmem:[%s456 + $0xf0] sm:$0xff]
      %v488 = vld [vmem:[%s456 + $0xf8] sm:$0xff]
      %v489 = vld [vmem:[%s456 + $0x100] sm:$0xff]
      %v490 = vld [vmem:[%s456 + $0x108] sm:$0xff]
      %v491 = vld [vmem:[%s456 + $0x110] sm:$0xff]
      %v492 = vld [vmem:[%s456 + $0x118] sm:$0xff]
      %v493 = vld [vmem:[%s456 + $0x120] sm:$0xff]
      %v494 = vld [vmem:[%s456 + $0x128] sm:$0xff]
      %v495 = vld [vmem:[%s456 + $0x130] sm:$0xff]
      %v496 = vld [vmem:[%s456 + $0x138] sm:$0xff]
      %v497 = vld [vmem:[%s456 + $0x140] sm:$0xff]
      %v498 = vld [vmem:[%s456 + $0x148] sm:$0xff]
      %v499 = vld [vmem:[%s456 + $0x150] sm:$0xff]
      %v500 = vld [vmem:[%s456 + $0x158] sm:$0xff]
      %v501 = vld [vmem:[%s456 + $0x160] sm:$0xff]
      %v502 = vld [vmem:[%s456 + $0x168] sm:$0xff]
      %v503 = vld [vmem:[%s456 + $0x170] sm:$0xff]
      %v504 = vld [vmem:[%s456 + $0x178] sm:$0xff]
      %505 = vmatpush.msra.mxu0 %v472
      %506 = vmatpush.msra.mxu0 %v471
      %507 = vmatpush.msra.mxu0 %v470
      %508 = vmatpush.msra.mxu0 %v469
      %509 = vmatpush.msra.mxu0 %v468
      %510 = vmatpush.msra.mxu0 %v467
      %511 = vmatpush.msra.mxu0 %v466
      %512 = vmatpush.msra.mxu0 %v465
      %513 = vmatpush.msra.mxu0 %v464
      %514 = vmatpush.msra.mxu0 %v463
      %515 = vmatpush.msra.mxu0 %v462
      %516 = vmatpush.msra.mxu0 %v461
      %517 = vmatpush.msra.mxu0 %v460
      %518 = vmatpush.msra.mxu0 %v459
      %519 = vmatpush.msra.mxu0 %v458
      %520 = vmatpush.msra.mxu0 %v457
      %521 = vmatmul.f32.gmra.mxu0 %v360
      %v522 = vpop.f32.mrf.mxu0
      %v523 = vadd.f32 0.0, %v522
      %524 = vmatmul.f32.gmra.mxu0 %v361
      %v525 = vpop.f32.mrf.mxu0
      %v526 = vadd.f32 0.0, %v525
      %527 = vmatmul.f32.gmra.mxu0 %v362
      %v528 = vpop.f32.mrf.mxu0
      %v529 = vadd.f32 0.0, %v528
      %530 = vmatmul.f32.gmra.mxu0 %v363
      %v531 = vpop.f32.mrf.mxu0
      %v532 = vadd.f32 0.0, %v531
      %533 = vmatmul.f32.gmra.mxu0 %v364
      %v534 = vpop.f32.mrf.mxu0
      %v535 = vadd.f32 0.0, %v534
      %536 = vmatmul.f32.gmra.mxu0 %v365
      %v537 = vpop.f32.mrf.mxu0
      %v538 = vadd.f32 0.0, %v537
      %539 = vmatmul.f32.gmra.mxu0 %v366
      %v540 = vpop.f32.mrf.mxu0
      %v541 = vadd.f32 0.0, %v540
      %542 = vmatmul.f32.gmra.mxu0 %v367
      %v543 = vpop.f32.mrf.mxu0
      %v544 = vadd.f32 0.0, %v543
      %545 = vmatmul.f32.gmra.mxu0 %v368
      %v546 = vpop.f32.mrf.mxu0
      %v547 = vadd.f32 0.0, %v546
      %548 = vmatmul.f32.gmra.mxu0 %v369
      %v549 = vpop.f32.mrf.mxu0
      %v550 = vadd.f32 0.0, %v549
      %551 = vmatmul.f32.gmra.mxu0 %v370
      %v552 = vpop.f32.mrf.mxu0
      %v553 = vadd.f32 0.0, %v552
      %554 = vmatmul.f32.gmra.mxu0 %v371
      %v555 = vpop.f32.mrf.mxu0
      %v556 = vadd.f32 0.0, %v555
      %557 = vmatmul.f32.gmra.mxu0 %v372
      %v558 = vpop.f32.mrf.mxu0
      %v559 = vadd.f32 0.0, %v558
      %560 = vmatmul.f32.gmra.mxu0 %v373
      %v561 = vpop.f32.mrf.mxu0
      %v562 = vadd.f32 0.0, %v561
      %563 = vmatmul.f32.gmra.mxu0 %v374
      %v564 = vpop.f32.mrf.mxu0
      %v565 = vadd.f32 0.0, %v564
      %566 = vmatmul.f32.gmra.mxu0 %v375
      %v567 = vpop.f32.mrf.mxu0
      %v568 = vadd.f32 0.0, %v567
      %569 = vmatmul.f32.gmra.mxu0 %v376
      %v570 = vpop.f32.mrf.mxu0
      %v571 = vadd.f32 0.0, %v570
      %572 = vmatmul.f32.gmra.mxu0 %v377
      %v573 = vpop.f32.mrf.mxu0
      %v574 = vadd.f32 0.0, %v573
      %575 = vmatmul.f32.gmra.mxu0 %v378
      %v576 = vpop.f32.mrf.mxu0
      %v577 = vadd.f32 0.0, %v576
      %578 = vmatmul.f32.gmra.mxu0 %v379
      %v579 = vpop.f32.mrf.mxu0
      %v580 = vadd.f32 0.0, %v579
      %581 = vmatmul.f32.gmra.mxu0 %v380
      %v582 = vpop.f32.mrf.mxu0
      %v583 = vadd.f32 0.0, %v582
      %584 = vmatmul.f32.gmra.mxu0 %v381
      %v585 = vpop.f32.mrf.mxu0
      %v586 = vadd.f32 0.0, %v585
      %587 = vmatmul.f32.gmra.mxu0 %v382
      %v588 = vpop.f32.mrf.mxu0
      %v589 = vadd.f32 0.0, %v588
      %590 = vmatmul.f32.gmra.mxu0 %v383
      %v591 = vpop.f32.mrf.mxu0
      %v592 = vadd.f32 0.0, %v591
      %593 = vmatmul.f32.gmra.mxu0 %v384
      %v594 = vpop.f32.mrf.mxu0
      %v595 = vadd.f32 0.0, %v594
      %596 = vmatmul.f32.gmra.mxu0 %v385
      %v597 = vpop.f32.mrf.mxu0
      %v598 = vadd.f32 0.0, %v597
      %599 = vmatmul.f32.gmra.mxu0 %v386
      %v600 = vpop.f32.mrf.mxu0
      %v601 = vadd.f32 0.0, %v600
      %602 = vmatmul.f32.gmra.mxu0 %v387
      %v603 = vpop.f32.mrf.mxu0
      %v604 = vadd.f32 0.0, %v603
      %605 = vmatmul.f32.gmra.mxu0 %v388
      %v606 = vpop.f32.mrf.mxu0
      %v607 = vadd.f32 0.0, %v606
      %608 = vmatmul.f32.gmra.mxu0 %v389
      %v609 = vpop.f32.mrf.mxu0
      %v610 = vadd.f32 0.0, %v609
      %611 = vmatmul.f32.gmra.mxu0 %v390
      %v612 = vpop.f32.mrf.mxu0
      %v613 = vadd.f32 0.0, %v612
      %614 = vmatmul.f32.gmra.mxu0 %v391
      %v615 = vpop.f32.mrf.mxu0
      %v616 = vadd.f32 0.0, %v615
      %617 = vdwg.mxu0
      %618 = vmatpush.msra.mxu0 %v488
      %619 = vmatpush.msra.mxu0 %v487
      %620 = vmatpush.msra.mxu0 %v486
      %621 = vmatpush.msra.mxu0 %v485
      %622 = vmatpush.msra.mxu0 %v484
      %623 = vmatpush.msra.mxu0 %v483
      %624 = vmatpush.msra.mxu0 %v482
      %625 = vmatpush.msra.mxu0 %v481
      %626 = vmatpush.msra.mxu0 %v480
      %627 = vmatpush.msra.mxu0 %v479
      %628 = vmatpush.msra.mxu0 %v478
      %629 = vmatpush.msra.mxu0 %v477
      %630 = vmatpush.msra.mxu0 %v476
      %631 = vmatpush.msra.mxu0 %v475
      %632 = vmatpush.msra.mxu0 %v474
      %633 = vmatpush.msra.mxu0 %v473
      %634 = vmatmul.f32.gmra.mxu0 %v392
      %v635 = vpop.f32.mrf.mxu0
      %v636 = vadd.f32 %v523, %v635
      %637 = vmatmul.f32.gmra.mxu0 %v393
      %v638 = vpop.f32.mrf.mxu0
      %v639 = vadd.f32 %v526, %v638
      %640 = vmatmul.f32.gmra.mxu0 %v394
      %v641 = vpop.f32.mrf.mxu0
      %v642 = vadd.f32 %v529, %v641
      %643 = vmatmul.f32.gmra.mxu0 %v395
      %v644 = vpop.f32.mrf.mxu0
      %v645 = vadd.f32 %v532, %v644
      %646 = vmatmul.f32.gmra.mxu0 %v396
      %v647 = vpop.f32.mrf.mxu0
      %v648 = vadd.f32 %v535, %v647
      %649 = vmatmul.f32.gmra.mxu0 %v397
      %v650 = vpop.f32.mrf.mxu0
      %v651 = vadd.f32 %v538, %v650
      %652 = vmatmul.f32.gmra.mxu0 %v398
      %v653 = vpop.f32.mrf.mxu0
      %v654 = vadd.f32 %v541, %v653
      %655 = vmatmul.f32.gmra.mxu0 %v399
      %v656 = vpop.f32.mrf.mxu0
      %v657 = vadd.f32 %v544, %v656
      %658 = vmatmul.f32.gmra.mxu0 %v400
      %v659 = vpop.f32.mrf.mxu0
      %v660 = vadd.f32 %v547, %v659
      %661 = vmatmul.f32.gmra.mxu0 %v401
      %v662 = vpop.f32.mrf.mxu0
      %v663 = vadd.f32 %v550, %v662
      %664 = vmatmul.f32.gmra.mxu0 %v402
      %v665 = vpop.f32.mrf.mxu0
      %v666 = vadd.f32 %v553, %v665
      %667 = vmatmul.f32.gmra.mxu0 %v403
      %v668 = vpop.f32.mrf.mxu0
      %v669 = vadd.f32 %v556, %v668
      %670 = vmatmul.f32.gmra.mxu0 %v404
      %v671 = vpop.f32.mrf.mxu0
      %v672 = vadd.f32 %v559, %v671
      %673 = vmatmul.f32.gmra.mxu0 %v405
      %v674 = vpop.f32.mrf.mxu0
      %v675 = vadd.f32 %v562, %v674
      %676 = vmatmul.f32.gmra.mxu0 %v406
      %v677 = vpop.f32.mrf.mxu0
      %v678 = vadd.f32 %v565, %v677
      %679 = vmatmul.f32.gmra.mxu0 %v407
      %v680 = vpop.f32.mrf.mxu0
      %v681 = vadd.f32 %v568, %v680
      %682 = vmatmul.f32.gmra.mxu0 %v408
      %v683 = vpop.f32.mrf.mxu0
      %v684 = vadd.f32 %v571, %v683
      %685 = vmatmul.f32.gmra.mxu0 %v409
      %v686 = vpop.f32.mrf.mxu0
      %v687 = vadd.f32 %v574, %v686
      %688 = vmatmul.f32.gmra.mxu0 %v410
      %v689 = vpop.f32.mrf.mxu0
      %v690 = vadd.f32 %v577, %v689
      %691 = vmatmul.f32.gmra.mxu0 %v411
      %v692 = vpop.f32.mrf.mxu0
      %v693 = vadd.f32 %v580, %v692
      %694 = vmatmul.f32.gmra.mxu0 %v412
      %v695 = vpop.f32.mrf.mxu0
      %v696 = vadd.f32 %v583, %v695
      %697 = vmatmul.f32.gmra.mxu0 %v413
      %v698 = vpop.f32.mrf.mxu0
      %v699 = vadd.f32 %v586, %v698
      %700 = vmatmul.f32.gmra.mxu0 %v414
      %v701 = vpop.f32.mrf.mxu0
      %v702 = vadd.f32 %v589, %v701
      %703 = vmatmul.f32.gmra.mxu0 %v415
      %v704 = vpop.f32.mrf.mxu0
      %v705 = vadd.f32 %v592, %v704
      %706 = vmatmul.f32.gmra.mxu0 %v416
      %v707 = vpop.f32.mrf.mxu0
      %v708 = vadd.f32 %v595, %v707
      %709 = vmatmul.f32.gmra.mxu0 %v417
      %v710 = vpop.f32.mrf.mxu0
      %v711 = vadd.f32 %v598, %v710
      %712 = vmatmul.f32.gmra.mxu0 %v418
      %v713 = vpop.f32.mrf.mxu0
      %v714 = vadd.f32 %v601, %v713
      %715 = vmatmul.f32.gmra.mxu0 %v419
      %v716 = vpop.f32.mrf.mxu0
      %v717 = vadd.f32 %v604, %v716
      %718 = vmatmul.f32.gmra.mxu0 %v420
      %v719 = vpop.f32.mrf.mxu0
      %v720 = vadd.f32 %v607, %v719
      %721 = vmatmul.f32.gmra.mxu0 %v421
      %v722 = vpop.f32.mrf.mxu0
      %v723 = vadd.f32 %v610, %v722
      %724 = vmatmul.f32.gmra.mxu0 %v422
      %v725 = vpop.f32.mrf.mxu0
      %v726 = vadd.f32 %v613, %v725
      %727 = vmatmul.f32.gmra.mxu0 %v423
      %v728 = vpop.f32.mrf.mxu0
      %v729 = vadd.f32 %v616, %v728
      %730 = vdwg.mxu0
      %731 = vmatpush.msra.mxu0 %v504
      %732 = vmatpush.msra.mxu0 %v503
      %733 = vmatpush.msra.mxu0 %v502
      %734 = vmatpush.msra.mxu0 %v501
      %735 = vmatpush.msra.mxu0 %v500
      %736 = vmatpush.msra.mxu0 %v499
      %737 = vmatpush.msra.mxu0 %v498
      %738 = vmatpush.msra.mxu0 %v497
      %739 = vmatpush.msra.mxu0 %v496
      %740 = vmatpush.msra.mxu0 %v495
      %741 = vmatpush.msra.mxu0 %v494
      %742 = vmatpush.msra.mxu0 %v493
      %743 = vmatpush.msra.mxu0 %v492
      %744 = vmatpush.msra.mxu0 %v491
      %745 = vmatpush.msra.mxu0 %v490
      %746 = vmatpush.msra.mxu0 %v489
      %747 = vmatmul.f32.gmra.mxu0 %v424
      %v748 = vpop.f32.mrf.mxu0
      %v749 = vadd.f32 %v636, %v748
      %750 = vmatmul.f32.gmra.mxu0 %v425
      %v751 = vpop.f32.mrf.mxu0
      %v752 = vadd.f32 %v639, %v751
      %753 = vmatmul.f32.gmra.mxu0 %v426
      %v754 = vpop.f32.mrf.mxu0
      %v755 = vadd.f32 %v642, %v754
      %756 = vmatmul.f32.gmra.mxu0 %v427
      %v757 = vpop.f32.mrf.mxu0
      %v758 = vadd.f32 %v645, %v757
      %759 = vmatmul.f32.gmra.mxu0 %v428
      %v760 = vpop.f32.mrf.mxu0
      %v761 = vadd.f32 %v648, %v760
      %762 = vmatmul.f32.gmra.mxu0 %v429
      %v763 = vpop.f32.mrf.mxu0
      %v764 = vadd.f32 %v651, %v763
      %765 = vmatmul.f32.gmra.mxu0 %v430
      %v766 = vpop.f32.mrf.mxu0
      %v767 = vadd.f32 %v654, %v766
      %768 = vmatmul.f32.gmra.mxu0 %v431
      %v769 = vpop.f32.mrf.mxu0
      %v770 = vadd.f32 %v657, %v769
      %771 = vmatmul.f32.gmra.mxu0 %v432
      %v772 = vpop.f32.mrf.mxu0
      %v773 = vadd.f32 %v660, %v772
      %774 = vmatmul.f32.gmra.mxu0 %v433
      %v775 = vpop.f32.mrf.mxu0
      %v776 = vadd.f32 %v663, %v775
      %777 = vmatmul.f32.gmra.mxu0 %v434
      %v778 = vpop.f32.mrf.mxu0
      %v779 = vadd.f32 %v666, %v778
      %780 = vmatmul.f32.gmra.mxu0 %v435
      %v781 = vpop.f32.mrf.mxu0
      %v782 = vadd.f32 %v669, %v781
      %783 = vmatmul.f32.gmra.mxu0 %v436
      %v784 = vpop.f32.mrf.mxu0
      %v785 = vadd.f32 %v672, %v784
      %786 = vmatmul.f32.gmra.mxu0 %v437
      %v787 = vpop.f32.mrf.mxu0
      %v788 = vadd.f32 %v675, %v787
      %789 = vmatmul.f32.gmra.mxu0 %v438
      %v790 = vpop.f32.mrf.mxu0
      %v791 = vadd.f32 %v678, %v790
      %792 = vmatmul.f32.gmra.mxu0 %v439
      %v793 = vpop.f32.mrf.mxu0
      %v794 = vadd.f32 %v681, %v793
      %795 = vmatmul.f32.gmra.mxu0 %v440
      %v796 = vpop.f32.mrf.mxu0
      %v797 = vadd.f32 %v684, %v796
      %798 = vmatmul.f32.gmra.mxu0 %v441
      %v799 = vpop.f32.mrf.mxu0
      %v800 = vadd.f32 %v687, %v799
      %801 = vmatmul.f32.gmra.mxu0 %v442
      %v802 = vpop.f32.mrf.mxu0
      %v803 = vadd.f32 %v690, %v802
      %804 = vmatmul.f32.gmra.mxu0 %v443
      %v805 = vpop.f32.mrf.mxu0
      %v806 = vadd.f32 %v693, %v805
      %807 = vmatmul.f32.gmra.mxu0 %v444
      %v808 = vpop.f32.mrf.mxu0
      %v809 = vadd.f32 %v696, %v808
      %810 = vmatmul.f32.gmra.mxu0 %v445
      %v811 = vpop.f32.mrf.mxu0
      %v812 = vadd.f32 %v699, %v811
      %813 = vmatmul.f32.gmra.mxu0 %v446
      %v814 = vpop.f32.mrf.mxu0
      %v815 = vadd.f32 %v702, %v814
      %816 = vmatmul.f32.gmra.mxu0 %v447
      %v817 = vpop.f32.mrf.mxu0
      %v818 = vadd.f32 %v705, %v817
      %819 = vmatmul.f32.gmra.mxu0 %v448
      %v820 = vpop.f32.mrf.mxu0
      %v821 = vadd.f32 %v708, %v820
      %822 = vmatmul.f32.gmra.mxu0 %v449
      %v823 = vpop.f32.mrf.mxu0
      %v824 = vadd.f32 %v711, %v823
      %825 = vmatmul.f32.gmra.mxu0 %v450
      %v826 = vpop.f32.mrf.mxu0
      %v827 = vadd.f32 %v714, %v826
      %828 = vmatmul.f32.gmra.mxu0 %v451
      %v829 = vpop.f32.mrf.mxu0
      %v830 = vadd.f32 %v717, %v829
      %831 = vmatmul.f32.gmra.mxu0 %v452
      %v832 = vpop.f32.mrf.mxu0
      %v833 = vadd.f32 %v720, %v832
      %834 = vmatmul.f32.gmra.mxu0 %v453
      %v835 = vpop.f32.mrf.mxu0
      %v836 = vadd.f32 %v723, %v835
      %837 = vmatmul.f32.gmra.mxu0 %v454
      %v838 = vpop.f32.mrf.mxu0
      %v839 = vadd.f32 %v726, %v838
      %840 = vmatmul.f32.gmra.mxu0 %v455
      %v841 = vpop.f32.mrf.mxu0
      %v842 = vadd.f32 %v729, %v841
      %843 = vdwg.mxu0
      %844 = vmatpush.msra.mxu0 %v326
      %845 = vmatpush.msra.mxu0 %v325
      %846 = vmatpush.msra.mxu0 %v324
      %847 = vmatpush.msra.mxu0 %v323
      %848 = vmatpush.msra.mxu0 %v322
      %849 = vmatpush.msra.mxu0 %v321
      %850 = vmatpush.msra.mxu0 %v320
      %851 = vmatpush.msra.mxu0 %v319
      %852 = vmatpush.msra.mxu0 %v318
      %853 = vmatpush.msra.mxu0 %v317
      %854 = vmatpush.msra.mxu0 %v316
      %855 = vmatpush.msra.mxu0 %v315
      %856 = vmatpush.msra.mxu0 %v314
      %857 = vmatpush.msra.mxu0 %v313
      %858 = vmatpush.msra.mxu0 %v312
      %859 = vmatpush.msra.mxu0 %v311
      %860 = vmatmul.f32.gmra.mxu0 %v215
      %v861 = vpop.f32.mrf.mxu0
      %v862 = vadd.f32 %v749, %v861
      %863 = vmatmul.f32.gmra.mxu0 %v216
      %v864 = vpop.f32.mrf.mxu0
      %v865 = vadd.f32 %v752, %v864
      %866 = vmatmul.f32.gmra.mxu0 %v217
      %v867 = vpop.f32.mrf.mxu0
      %v868 = vadd.f32 %v755, %v867
      %869 = vmatmul.f32.gmra.mxu0 %v218
      %v870 = vpop.f32.mrf.mxu0
      %v871 = vadd.f32 %v758, %v870
      %872 = vmatmul.f32.gmra.mxu0 %v219
      %v873 = vpop.f32.mrf.mxu0
      %v874 = vadd.f32 %v761, %v873
      %875 = vmatmul.f32.gmra.mxu0 %v220
      %v876 = vpop.f32.mrf.mxu0
      %v877 = vadd.f32 %v764, %v876
      %878 = vmatmul.f32.gmra.mxu0 %v221
      %v879 = vpop.f32.mrf.mxu0
      %v880 = vadd.f32 %v767, %v879
      %881 = vmatmul.f32.gmra.mxu0 %v222
      %v882 = vpop.f32.mrf.mxu0
      %v883 = vadd.f32 %v770, %v882
      %884 = vmatmul.f32.gmra.mxu0 %v223
      %v885 = vpop.f32.mrf.mxu0
      %v886 = vadd.f32 %v773, %v885
      %887 = vmatmul.f32.gmra.mxu0 %v224
      %v888 = vpop.f32.mrf.mxu0
      %v889 = vadd.f32 %v776, %v888
      %890 = vmatmul.f32.gmra.mxu0 %v225
      %v891 = vpop.f32.mrf.mxu0
      %v892 = vadd.f32 %v779, %v891
      %893 = vmatmul.f32.gmra.mxu0 %v226
      %v894 = vpop.f32.mrf.mxu0
      %v895 = vadd.f32 %v782, %v894
      %896 = vmatmul.f32.gmra.mxu0 %v227
      %v897 = vpop.f32.mrf.mxu0
      %v898 = vadd.f32 %v785, %v897
      %899 = vmatmul.f32.gmra.mxu0 %v228
      %v900 = vpop.f32.mrf.mxu0
      %v901 = vadd.f32 %v788, %v900
      %902 = vmatmul.f32.gmra.mxu0 %v229
      %v903 = vpop.f32.mrf.mxu0
      %v904 = vadd.f32 %v791, %v903
      %905 = vmatmul.f32.gmra.mxu0 %v230
      %v906 = vpop.f32.mrf.mxu0
      %v907 = vadd.f32 %v794, %v906
      %908 = vmatmul.f32.gmra.mxu0 %v231
      %v909 = vpop.f32.mrf.mxu0
      %v910 = vadd.f32 %v797, %v909
      %911 = vmatmul.f32.gmra.mxu0 %v232
      %v912 = vpop.f32.mrf.mxu0
      %v913 = vadd.f32 %v800, %v912
      %914 = vmatmul.f32.gmra.mxu0 %v233
      %v915 = vpop.f32.mrf.mxu0
      %v916 = vadd.f32 %v803, %v915
      %917 = vmatmul.f32.gmra.mxu0 %v234
      %v918 = vpop.f32.mrf.mxu0
      %v919 = vadd.f32 %v806, %v918
      %920 = vmatmul.f32.gmra.mxu0 %v235
      %v921 = vpop.f32.mrf.mxu0
      %v922 = vadd.f32 %v809, %v921
      %923 = vmatmul.f32.gmra.mxu0 %v236
      %v924 = vpop.f32.mrf.mxu0
      %v925 = vadd.f32 %v812, %v924
      %926 = vmatmul.f32.gmra.mxu0 %v237
      %v927 = vpop.f32.mrf.mxu0
      %v928 = vadd.f32 %v815, %v927
      %929 = vmatmul.f32.gmra.mxu0 %v238
      %v930 = vpop.f32.mrf.mxu0
      %v931 = vadd.f32 %v818, %v930
      %932 = vmatmul.f32.gmra.mxu0 %v239
      %v933 = vpop.f32.mrf.mxu0
      %v934 = vadd.f32 %v821, %v933
      %935 = vmatmul.f32.gmra.mxu0 %v240
      %v936 = vpop.f32.mrf.mxu0
      %v937 = vadd.f32 %v824, %v936
      %938 = vmatmul.f32.gmra.mxu0 %v241
      %v939 = vpop.f32.mrf.mxu0
      %v940 = vadd.f32 %v827, %v939
      %941 = vmatmul.f32.gmra.mxu0 %v242
      %v942 = vpop.f32.mrf.mxu0
      %v943 = vadd.f32 %v830, %v942
      %944 = vmatmul.f32.gmra.mxu0 %v243
      %v945 = vpop.f32.mrf.mxu0
      %v946 = vadd.f32 %v833, %v945
      %947 = vmatmul.f32.gmra.mxu0 %v244
      %v948 = vpop.f32.mrf.mxu0
      %v949 = vadd.f32 %v836, %v948
      %950 = vmatmul.f32.gmra.mxu0 %v245
      %v951 = vpop.f32.mrf.mxu0
      %v952 = vadd.f32 %v839, %v951
      %953 = vmatmul.f32.gmra.mxu0 %v246
      %v954 = vpop.f32.mrf.mxu0
      %v955 = vadd.f32 %v842, %v954
      %956 = vdwg.mxu0
      %957 = vmatpush.msra.mxu0 %v342
      %958 = vmatpush.msra.mxu0 %v341
      %959 = vmatpush.msra.mxu0 %v340
      %960 = vmatpush.msra.mxu0 %v339
      %961 = vmatpush.msra.mxu0 %v338
      %962 = vmatpush.msra.mxu0 %v337
      %963 = vmatpush.msra.mxu0 %v336
      %964 = vmatpush.msra.mxu0 %v335
      %965 = vmatpush.msra.mxu0 %v334
      %966 = vmatpush.msra.mxu0 %v333
      %967 = vmatpush.msra.mxu0 %v332
      %968 = vmatpush.msra.mxu0 %v331
      %969 = vmatpush.msra.mxu0 %v330
      %970 = vmatpush.msra.mxu0 %v329
      %971 = vmatpush.msra.mxu0 %v328
      %972 = vmatpush.msra.mxu0 %v327
      %973 = vmatmul.f32.gmra.mxu0 %v247
      %v974 = vpop.f32.mrf.mxu0
      %v975 = vadd.f32 %v862, %v974
      %976 = vmatmul.f32.gmra.mxu0 %v248
      %v977 = vpop.f32.mrf.mxu0
      %v978 = vadd.f32 %v865, %v977
      %979 = vmatmul.f32.gmra.mxu0 %v249
      %v980 = vpop.f32.mrf.mxu0
      %v981 = vadd.f32 %v868, %v980
      %982 = vmatmul.f32.gmra.mxu0 %v250
      %v983 = vpop.f32.mrf.mxu0
      %v984 = vadd.f32 %v871, %v983
      %985 = vmatmul.f32.gmra.mxu0 %v251
      %v986 = vpop.f32.mrf.mxu0
      %v987 = vadd.f32 %v874, %v986
      %988 = vmatmul.f32.gmra.mxu0 %v252
      %v989 = vpop.f32.mrf.mxu0
      %v990 = vadd.f32 %v877, %v989
      %991 = vmatmul.f32.gmra.mxu0 %v253
      %v992 = vpop.f32.mrf.mxu0
      %v993 = vadd.f32 %v880, %v992
      %994 = vmatmul.f32.gmra.mxu0 %v254
      %v995 = vpop.f32.mrf.mxu0
      %v996 = vadd.f32 %v883, %v995
      %997 = vmatmul.f32.gmra.mxu0 %v255
      %v998 = vpop.f32.mrf.mxu0
      %v999 = vadd.f32 %v886, %v998
      %1000 = vmatmul.f32.gmra.mxu0 %v256
      %v1001 = vpop.f32.mrf.mxu0
      %v1002 = vadd.f32 %v889, %v1001
      %1003 = vmatmul.f32.gmra.mxu0 %v257
      %v1004 = vpop.f32.mrf.mxu0
      %v1005 = vadd.f32 %v892, %v1004
      %1006 = vmatmul.f32.gmra.mxu0 %v258
      %v1007 = vpop.f32.mrf.mxu0
      %v1008 = vadd.f32 %v895, %v1007
      %1009 = vmatmul.f32.gmra.mxu0 %v259
      %v1010 = vpop.f32.mrf.mxu0
      %v1011 = vadd.f32 %v898, %v1010
      %1012 = vmatmul.f32.gmra.mxu0 %v260
      %v1013 = vpop.f32.mrf.mxu0
      %v1014 = vadd.f32 %v901, %v1013
      %1015 = vmatmul.f32.gmra.mxu0 %v261
      %v1016 = vpop.f32.mrf.mxu0
      %v1017 = vadd.f32 %v904, %v1016
      %1018 = vmatmul.f32.gmra.mxu0 %v262
      %v1019 = vpop.f32.mrf.mxu0
      %v1020 = vadd.f32 %v907, %v1019
      %1021 = vmatmul.f32.gmra.mxu0 %v263
      %v1022 = vpop.f32.mrf.mxu0
      %v1023 = vadd.f32 %v910, %v1022
      %1024 = vmatmul.f32.gmra.mxu0 %v264
      %v1025 = vpop.f32.mrf.mxu0
      %v1026 = vadd.f32 %v913, %v1025
      %1027 = vmatmul.f32.gmra.mxu0 %v265
      %v1028 = vpop.f32.mrf.mxu0
      %v1029 = vadd.f32 %v916, %v1028
      %1030 = vmatmul.f32.gmra.mxu0 %v266
      %v1031 = vpop.f32.mrf.mxu0
      %v1032 = vadd.f32 %v919, %v1031
      %1033 = vmatmul.f32.gmra.mxu0 %v267
      %v1034 = vpop.f32.mrf.mxu0
      %v1035 = vadd.f32 %v922, %v1034
      %1036 = vmatmul.f32.gmra.mxu0 %v268
      %v1037 = vpop.f32.mrf.mxu0
      %v1038 = vadd.f32 %v925, %v1037
      %1039 = vmatmul.f32.gmra.mxu0 %v269
      %v1040 = vpop.f32.mrf.mxu0
      %v1041 = vadd.f32 %v928, %v1040
      %1042 = vmatmul.f32.gmra.mxu0 %v270
      %v1043 = vpop.f32.mrf.mxu0
      %v1044 = vadd.f32 %v931, %v1043
      %1045 = vmatmul.f32.gmra.mxu0 %v271
      %v1046 = vpop.f32.mrf.mxu0
      %v1047 = vadd.f32 %v934, %v1046
      %1048 = vmatmul.f32.gmra.mxu0 %v272
      %v1049 = vpop.f32.mrf.mxu0
      %v1050 = vadd.f32 %v937, %v1049
      %1051 = vmatmul.f32.gmra.mxu0 %v273
      %v1052 = vpop.f32.mrf.mxu0
      %v1053 = vadd.f32 %v940, %v1052
      %1054 = vmatmul.f32.gmra.mxu0 %v274
      %v1055 = vpop.f32.mrf.mxu0
      %v1056 = vadd.f32 %v943, %v1055
      %1057 = vmatmul.f32.gmra.mxu0 %v275
      %v1058 = vpop.f32.mrf.mxu0
      %v1059 = vadd.f32 %v946, %v1058
      %1060 = vmatmul.f32.gmra.mxu0 %v276
      %v1061 = vpop.f32.mrf.mxu0
      %v1062 = vadd.f32 %v949, %v1061
      %1063 = vmatmul.f32.gmra.mxu0 %v277
      %v1064 = vpop.f32.mrf.mxu0
      %v1065 = vadd.f32 %v952, %v1064
      %1066 = vmatmul.f32.gmra.mxu0 %v278
      %v1067 = vpop.f32.mrf.mxu0
      %v1068 = vadd.f32 %v955, %v1067
      %1069 = vdwg.mxu0
      %1070 = vmatpush.msra.mxu0 %v358
      %1071 = vmatpush.msra.mxu0 %v357
      %1072 = vmatpush.msra.mxu0 %v356
      %1073 = vmatpush.msra.mxu0 %v355
      %1074 = vmatpush.msra.mxu0 %v354
      %1075 = vmatpush.msra.mxu0 %v353
      %1076 = vmatpush.msra.mxu0 %v352
      %1077 = vmatpush.msra.mxu0 %v351
      %1078 = vmatpush.msra.mxu0 %v350
      %1079 = vmatpush.msra.mxu0 %v349
      %1080 = vmatpush.msra.mxu0 %v348
      %1081 = vmatpush.msra.mxu0 %v347
      %1082 = vmatpush.msra.mxu0 %v346
      %1083 = vmatpush.msra.mxu0 %v345
      %1084 = vmatpush.msra.mxu0 %v344
      %1085 = vmatpush.msra.mxu0 %v343
      %1086 = vmatmul.f32.gmra.mxu0 %v279
      %v1087 = vpop.f32.mrf.mxu0
      %v1088 = vadd.f32 %v975, %v1087
      %1089 = vmatmul.f32.gmra.mxu0 %v280
      %v1090 = vpop.f32.mrf.mxu0
      %v1091 = vadd.f32 %v978, %v1090
      %1092 = vmatmul.f32.gmra.mxu0 %v281
      %v1093 = vpop.f32.mrf.mxu0
      %v1094 = vadd.f32 %v981, %v1093
      %1095 = vmatmul.f32.gmra.mxu0 %v282
      %v1096 = vpop.f32.mrf.mxu0
      %v1097 = vadd.f32 %v984, %v1096
      %1098 = vmatmul.f32.gmra.mxu0 %v283
      %v1099 = vpop.f32.mrf.mxu0
      %v1100 = vadd.f32 %v987, %v1099
      %1101 = vmatmul.f32.gmra.mxu0 %v284
      %v1102 = vpop.f32.mrf.mxu0
      %v1103 = vadd.f32 %v990, %v1102
      %1104 = vmatmul.f32.gmra.mxu0 %v285
      %v1105 = vpop.f32.mrf.mxu0
      %v1106 = vadd.f32 %v993, %v1105
      %1107 = vmatmul.f32.gmra.mxu0 %v286
      %v1108 = vpop.f32.mrf.mxu0
      %v1109 = vadd.f32 %v996, %v1108
      %1110 = vmatmul.f32.gmra.mxu0 %v287
      %v1111 = vpop.f32.mrf.mxu0
      %v1112 = vadd.f32 %v999, %v1111
      %1113 = vmatmul.f32.gmra.mxu0 %v288
      %v1114 = vpop.f32.mrf.mxu0
      %v1115 = vadd.f32 %v1002, %v1114
      %1116 = vmatmul.f32.gmra.mxu0 %v289
      %v1117 = vpop.f32.mrf.mxu0
      %v1118 = vadd.f32 %v1005, %v1117
      %1119 = vmatmul.f32.gmra.mxu0 %v290
      %v1120 = vpop.f32.mrf.mxu0
      %v1121 = vadd.f32 %v1008, %v1120
      %1122 = vmatmul.f32.gmra.mxu0 %v291
      %v1123 = vpop.f32.mrf.mxu0
      %v1124 = vadd.f32 %v1011, %v1123
      %1125 = vmatmul.f32.gmra.mxu0 %v292
      %v1126 = vpop.f32.mrf.mxu0
      %v1127 = vadd.f32 %v1014, %v1126
      %1128 = vmatmul.f32.gmra.mxu0 %v293
      %v1129 = vpop.f32.mrf.mxu0
      %v1130 = vadd.f32 %v1017, %v1129
      %1131 = vmatmul.f32.gmra.mxu0 %v294
      %v1132 = vpop.f32.mrf.mxu0
      %v1133 = vadd.f32 %v1020, %v1132
      %1134 = vmatmul.f32.gmra.mxu0 %v295
      %v1135 = vpop.f32.mrf.mxu0
      %v1136 = vadd.f32 %v1023, %v1135
      %1137 = vmatmul.f32.gmra.mxu0 %v296
      %v1138 = vpop.f32.mrf.mxu0
      %v1139 = vadd.f32 %v1026, %v1138
      %1140 = vmatmul.f32.gmra.mxu0 %v297
      %v1141 = vpop.f32.mrf.mxu0
      %v1142 = vadd.f32 %v1029, %v1141
      %1143 = vmatmul.f32.gmra.mxu0 %v298
      %v1144 = vpop.f32.mrf.mxu0
      %v1145 = vadd.f32 %v1032, %v1144
      %1146 = vmatmul.f32.gmra.mxu0 %v299
      %v1147 = vpop.f32.mrf.mxu0
      %v1148 = vadd.f32 %v1035, %v1147
      %1149 = vmatmul.f32.gmra.mxu0 %v300
      %v1150 = vpop.f32.mrf.mxu0
      %v1151 = vadd.f32 %v1038, %v1150
      %1152 = vmatmul.f32.gmra.mxu0 %v301
      %v1153 = vpop.f32.mrf.mxu0
      %v1154 = vadd.f32 %v1041, %v1153
      %1155 = vmatmul.f32.gmra.mxu0 %v302
      %v1156 = vpop.f32.mrf.mxu0
      %v1157 = vadd.f32 %v1044, %v1156
      %1158 = vmatmul.f32.gmra.mxu0 %v303
      %v1159 = vpop.f32.mrf.mxu0
      %v1160 = vadd.f32 %v1047, %v1159
      %1161 = vmatmul.f32.gmra.mxu0 %v304
      %v1162 = vpop.f32.mrf.mxu0
      %v1163 = vadd.f32 %v1050, %v1162
      %1164 = vmatmul.f32.gmra.mxu0 %v305
      %v1165 = vpop.f32.mrf.mxu0
      %v1166 = vadd.f32 %v1053, %v1165
      %1167 = vmatmul.f32.gmra.mxu0 %v306
      %v1168 = vpop.f32.mrf.mxu0
      %v1169 = vadd.f32 %v1056, %v1168
      %1170 = vmatmul.f32.gmra.mxu0 %v307
      %v1171 = vpop.f32.mrf.mxu0
      %v1172 = vadd.f32 %v1059, %v1171
      %1173 = vmatmul.f32.gmra.mxu0 %v308
      %v1174 = vpop.f32.mrf.mxu0
      %v1175 = vadd.f32 %v1062, %v1174
      %1176 = vmatmul.f32.gmra.mxu0 %v309
      %v1177 = vpop.f32.mrf.mxu0
      %v1178 = vadd.f32 %v1065, %v1177
      %1179 = vmatmul.f32.gmra.mxu0 %v310
      %v1180 = vpop.f32.mrf.mxu0
      %v1181 = vadd.f32 %v1068, %v1180
      %1182 = vdwg.mxu0
      %s1183 = scalar_lea.vmem %s203, 48
      %v1184 = vld [vmem:[%s1183] sm:$0xff]
      %v1185 = vld [vmem:[%s1183 + $0x8] sm:$0xff]
      %v1186 = vld [vmem:[%s1183 + $0x18] sm:$0xff]
      %v1187 = vld [vmem:[%s1183 + $0x20] sm:$0xff]
      %v1188 = vld [vmem:[%s1183 + $0x30] sm:$0xff]
      %v1189 = vld [vmem:[%s1183 + $0x38] sm:$0xff]
      %v1190 = vld [vmem:[%s1183 + $0x48] sm:$0xff]
      %v1191 = vld [vmem:[%s1183 + $0x50] sm:$0xff]
      %v1192 = vld [vmem:[%s1183 + $0x60] sm:$0xff]
      %v1193 = vld [vmem:[%s1183 + $0x68] sm:$0xff]
      %v1194 = vld [vmem:[%s1183 + $0x78] sm:$0xff]
      %v1195 = vld [vmem:[%s1183 + $0x80] sm:$0xff]
      %v1196 = vld [vmem:[%s1183 + $0x90] sm:$0xff]
      %v1197 = vld [vmem:[%s1183 + $0x98] sm:$0xff]
      %v1198 = vld [vmem:[%s1183 + $0xa8] sm:$0xff]
      %v1199 = vld [vmem:[%s1183 + $0xb0] sm:$0xff]
      %v1200 = vld [vmem:[%s1183 + $0xc0] sm:$0xff]
      %v1201 = vld [vmem:[%s1183 + $0xc8] sm:$0xff]
      %v1202 = vld [vmem:[%s1183 + $0xd8] sm:$0xff]
      %v1203 = vld [vmem:[%s1183 + $0xe0] sm:$0xff]
      %v1204 = vld [vmem:[%s1183 + $0xf0] sm:$0xff]
      %v1205 = vld [vmem:[%s1183 + $0xf8] sm:$0xff]
      %v1206 = vld [vmem:[%s1183 + $0x108] sm:$0xff]
      %v1207 = vld [vmem:[%s1183 + $0x110] sm:$0xff]
      %v1208 = vld [vmem:[%s1183 + $0x120] sm:$0xff]
      %v1209 = vld [vmem:[%s1183 + $0x128] sm:$0xff]
      %v1210 = vld [vmem:[%s1183 + $0x138] sm:$0xff]
      %v1211 = vld [vmem:[%s1183 + $0x140] sm:$0xff]
      %v1212 = vld [vmem:[%s1183 + $0x150] sm:$0xff]
      %v1213 = vld [vmem:[%s1183 + $0x158] sm:$0xff]
      %v1214 = vld [vmem:[%s1183 + $0x168] sm:$0xff]
      %v1215 = vld [vmem:[%s1183 + $0x170] sm:$0xff]
      %v1216 = vld [vmem:[%s1183 + $0x1] sm:$0xff]
      %v1217 = vld [vmem:[%s1183 + $0x9] sm:$0xff]
      %v1218 = vld [vmem:[%s1183 + $0x19] sm:$0xff]
      %v1219 = vld [vmem:[%s1183 + $0x21] sm:$0xff]
      %v1220 = vld [vmem:[%s1183 + $0x31] sm:$0xff]
      %v1221 = vld [vmem:[%s1183 + $0x39] sm:$0xff]
      %v1222 = vld [vmem:[%s1183 + $0x49] sm:$0xff]
      %v1223 = vld [vmem:[%s1183 + $0x51] sm:$0xff]
      %v1224 = vld [vmem:[%s1183 + $0x61] sm:$0xff]
      %v1225 = vld [vmem:[%s1183 + $0x69] sm:$0xff]
      %v1226 = vld [vmem:[%s1183 + $0x79] sm:$0xff]
      %v1227 = vld [vmem:[%s1183 + $0x81] sm:$0xff]
      %v1228 = vld [vmem:[%s1183 + $0x91] sm:$0xff]
      %v1229 = vld [vmem:[%s1183 + $0x99] sm:$0xff]
      %v1230 = vld [vmem:[%s1183 + $0xa9] sm:$0xff]
      %v1231 = vld [vmem:[%s1183 + $0xb1] sm:$0xff]
      %v1232 = vld [vmem:[%s1183 + $0xc1] sm:$0xff]
      %v1233 = vld [vmem:[%s1183 + $0xc9] sm:$0xff]
      %v1234 = vld [vmem:[%s1183 + $0xd9] sm:$0xff]
      %v1235 = vld [vmem:[%s1183 + $0xe1] sm:$0xff]
      %v1236 = vld [vmem:[%s1183 + $0xf1] sm:$0xff]
      %v1237 = vld [vmem:[%s1183 + $0xf9] sm:$0xff]
      %v1238 = vld [vmem:[%s1183 + $0x109] sm:$0xff]
      %v1239 = vld [vmem:[%s1183 + $0x111] sm:$0xff]
      %v1240 = vld [vmem:[%s1183 + $0x121] sm:$0xff]
      %v1241 = vld [vmem:[%s1183 + $0x129] sm:$0xff]
      %v1242 = vld [vmem:[%s1183 + $0x139] sm:$0xff]
      %v1243 = vld [vmem:[%s1183 + $0x141] sm:$0xff]
      %v1244 = vld [vmem:[%s1183 + $0x151] sm:$0xff]
      %v1245 = vld [vmem:[%s1183 + $0x159] sm:$0xff]
      %v1246 = vld [vmem:[%s1183 + $0x169] sm:$0xff]
      %v1247 = vld [vmem:[%s1183 + $0x171] sm:$0xff]
      %v1248 = vld [vmem:[%s1183 + $0x2] sm:$0xff]
      %v1249 = vld [vmem:[%s1183 + $0xa] sm:$0xff]
      %v1250 = vld [vmem:[%s1183 + $0x1a] sm:$0xff]
      %v1251 = vld [vmem:[%s1183 + $0x22] sm:$0xff]
      %v1252 = vld [vmem:[%s1183 + $0x32] sm:$0xff]
      %v1253 = vld [vmem:[%s1183 + $0x3a] sm:$0xff]
      %v1254 = vld [vmem:[%s1183 + $0x4a] sm:$0xff]
      %v1255 = vld [vmem:[%s1183 + $0x52] sm:$0xff]
      %v1256 = vld [vmem:[%s1183 + $0x62] sm:$0xff]
      %v1257 = vld [vmem:[%s1183 + $0x6a] sm:$0xff]
      %v1258 = vld [vmem:[%s1183 + $0x7a] sm:$0xff]
      %v1259 = vld [vmem:[%s1183 + $0x82] sm:$0xff]
      %v1260 = vld [vmem:[%s1183 + $0x92] sm:$0xff]
      %v1261 = vld [vmem:[%s1183 + $0x9a] sm:$0xff]
      %v1262 = vld [vmem:[%s1183 + $0xaa] sm:$0xff]
      %v1263 = vld [vmem:[%s1183 + $0xb2] sm:$0xff]
      %v1264 = vld [vmem:[%s1183 + $0xc2] sm:$0xff]
      %v1265 = vld [vmem:[%s1183 + $0xca] sm:$0xff]
      %v1266 = vld [vmem:[%s1183 + $0xda] sm:$0xff]
      %v1267 = vld [vmem:[%s1183 + $0xe2] sm:$0xff]
      %v1268 = vld [vmem:[%s1183 + $0xf2] sm:$0xff]
      %v1269 = vld [vmem:[%s1183 + $0xfa] sm:$0xff]
      %v1270 = vld [vmem:[%s1183 + $0x10a] sm:$0xff]
      %v1271 = vld [vmem:[%s1183 + $0x112] sm:$0xff]
      %v1272 = vld [vmem:[%s1183 + $0x122] sm:$0xff]
      %v1273 = vld [vmem:[%s1183 + $0x12a] sm:$0xff]
      %v1274 = vld [vmem:[%s1183 + $0x13a] sm:$0xff]
      %v1275 = vld [vmem:[%s1183 + $0x142] sm:$0xff]
      %v1276 = vld [vmem:[%s1183 + $0x152] sm:$0xff]
      %v1277 = vld [vmem:[%s1183 + $0x15a] sm:$0xff]
      %v1278 = vld [vmem:[%s1183 + $0x16a] sm:$0xff]
      %v1279 = vld [vmem:[%s1183 + $0x172] sm:$0xff]
      %s1280 = scalar_lea.vmem %s1, 768
      %v1281 = vld [vmem:[%s1280] sm:$0xff]
      %v1282 = vld [vmem:[%s1280 + $0x8] sm:$0xff]
      %v1283 = vld [vmem:[%s1280 + $0x10] sm:$0xff]
      %v1284 = vld [vmem:[%s1280 + $0x18] sm:$0xff]
      %v1285 = vld [vmem:[%s1280 + $0x20] sm:$0xff]
      %v1286 = vld [vmem:[%s1280 + $0x28] sm:$0xff]
      %v1287 = vld [vmem:[%s1280 + $0x30] sm:$0xff]
      %v1288 = vld [vmem:[%s1280 + $0x38] sm:$0xff]
      %v1289 = vld [vmem:[%s1280 + $0x40] sm:$0xff]
      %v1290 = vld [vmem:[%s1280 + $0x48] sm:$0xff]
      %v1291 = vld [vmem:[%s1280 + $0x50] sm:$0xff]
      %v1292 = vld [vmem:[%s1280 + $0x58] sm:$0xff]
      %v1293 = vld [vmem:[%s1280 + $0x60] sm:$0xff]
      %v1294 = vld [vmem:[%s1280 + $0x68] sm:$0xff]
      %v1295 = vld [vmem:[%s1280 + $0x70] sm:$0xff]
      %v1296 = vld [vmem:[%s1280 + $0x78] sm:$0xff]
      %v1297 = vld [vmem:[%s1280 + $0x80] sm:$0xff]
      %v1298 = vld [vmem:[%s1280 + $0x88] sm:$0xff]
      %v1299 = vld [vmem:[%s1280 + $0x90] sm:$0xff]
      %v1300 = vld [vmem:[%s1280 + $0x98] sm:$0xff]
      %v1301 = vld [vmem:[%s1280 + $0xa0] sm:$0xff]
      %v1302 = vld [vmem:[%s1280 + $0xa8] sm:$0xff]
      %v1303 = vld [vmem:[%s1280 + $0xb0] sm:$0xff]
      %v1304 = vld [vmem:[%s1280 + $0xb8] sm:$0xff]
      %v1305 = vld [vmem:[%s1280 + $0xc0] sm:$0xff]
      %v1306 = vld [vmem:[%s1280 + $0xc8] sm:$0xff]
      %v1307 = vld [vmem:[%s1280 + $0xd0] sm:$0xff]
      %v1308 = vld [vmem:[%s1280 + $0xd8] sm:$0xff]
      %v1309 = vld [vmem:[%s1280 + $0xe0] sm:$0xff]
      %v1310 = vld [vmem:[%s1280 + $0xe8] sm:$0xff]
      %v1311 = vld [vmem:[%s1280 + $0xf0] sm:$0xff]
      %v1312 = vld [vmem:[%s1280 + $0xf8] sm:$0xff]
      %v1313 = vld [vmem:[%s1280 + $0x100] sm:$0xff]
      %v1314 = vld [vmem:[%s1280 + $0x108] sm:$0xff]
      %v1315 = vld [vmem:[%s1280 + $0x110] sm:$0xff]
      %v1316 = vld [vmem:[%s1280 + $0x118] sm:$0xff]
      %v1317 = vld [vmem:[%s1280 + $0x120] sm:$0xff]
      %v1318 = vld [vmem:[%s1280 + $0x128] sm:$0xff]
      %v1319 = vld [vmem:[%s1280 + $0x130] sm:$0xff]
      %v1320 = vld [vmem:[%s1280 + $0x138] sm:$0xff]
      %v1321 = vld [vmem:[%s1280 + $0x140] sm:$0xff]
      %v1322 = vld [vmem:[%s1280 + $0x148] sm:$0xff]
      %v1323 = vld [vmem:[%s1280 + $0x150] sm:$0xff]
      %v1324 = vld [vmem:[%s1280 + $0x158] sm:$0xff]
      %v1325 = vld [vmem:[%s1280 + $0x160] sm:$0xff]
      %v1326 = vld [vmem:[%s1280 + $0x168] sm:$0xff]
      %v1327 = vld [vmem:[%s1280 + $0x170] sm:$0xff]
      %v1328 = vld [vmem:[%s1280 + $0x178] sm:$0xff]
      %1329 = vmatpush.msra.mxu0 %v1296
      %1330 = vmatpush.msra.mxu0 %v1295
      %1331 = vmatpush.msra.mxu0 %v1294
      %1332 = vmatpush.msra.mxu0 %v1293
      %1333 = vmatpush.msra.mxu0 %v1292
      %1334 = vmatpush.msra.mxu0 %v1291
      %1335 = vmatpush.msra.mxu0 %v1290
      %1336 = vmatpush.msra.mxu0 %v1289
      %1337 = vmatpush.msra.mxu0 %v1288
      %1338 = vmatpush.msra.mxu0 %v1287
      %1339 = vmatpush.msra.mxu0 %v1286
      %1340 = vmatpush.msra.mxu0 %v1285
      %1341 = vmatpush.msra.mxu0 %v1284
      %1342 = vmatpush.msra.mxu0 %v1283
      %1343 = vmatpush.msra.mxu0 %v1282
      %1344 = vmatpush.msra.mxu0 %v1281
      %1345 = vmatmul.f32.gmra.mxu0 %v1184
      %v1346 = vpop.f32.mrf.mxu0
      %v1347 = vadd.f32 0.0, %v1346
      %1348 = vmatmul.f32.gmra.mxu0 %v1185
      %v1349 = vpop.f32.mrf.mxu0
      %v1350 = vadd.f32 0.0, %v1349
      %1351 = vmatmul.f32.gmra.mxu0 %v1186
      %v1352 = vpop.f32.mrf.mxu0
      %v1353 = vadd.f32 0.0, %v1352
      %1354 = vmatmul.f32.gmra.mxu0 %v1187
      %v1355 = vpop.f32.mrf.mxu0
      %v1356 = vadd.f32 0.0, %v1355
      %1357 = vmatmul.f32.gmra.mxu0 %v1188
      %v1358 = vpop.f32.mrf.mxu0
      %v1359 = vadd.f32 0.0, %v1358
      %1360 = vmatmul.f32.gmra.mxu0 %v1189
      %v1361 = vpop.f32.mrf.mxu0
      %v1362 = vadd.f32 0.0, %v1361
      %1363 = vmatmul.f32.gmra.mxu0 %v1190
      %v1364 = vpop.f32.mrf.mxu0
      %v1365 = vadd.f32 0.0, %v1364
      %1366 = vmatmul.f32.gmra.mxu0 %v1191
      %v1367 = vpop.f32.mrf.mxu0
      %v1368 = vadd.f32 0.0, %v1367
      %1369 = vmatmul.f32.gmra.mxu0 %v1192
      %v1370 = vpop.f32.mrf.mxu0
      %v1371 = vadd.f32 0.0, %v1370
      %1372 = vmatmul.f32.gmra.mxu0 %v1193
      %v1373 = vpop.f32.mrf.mxu0
      %v1374 = vadd.f32 0.0, %v1373
      %1375 = vmatmul.f32.gmra.mxu0 %v1194
      %v1376 = vpop.f32.mrf.mxu0
      %v1377 = vadd.f32 0.0, %v1376
      %1378 = vmatmul.f32.gmra.mxu0 %v1195
      %v1379 = vpop.f32.mrf.mxu0
      %v1380 = vadd.f32 0.0, %v1379
      %1381 = vmatmul.f32.gmra.mxu0 %v1196
      %v1382 = vpop.f32.mrf.mxu0
      %v1383 = vadd.f32 0.0, %v1382
      %1384 = vmatmul.f32.gmra.mxu0 %v1197
      %v1385 = vpop.f32.mrf.mxu0
      %v1386 = vadd.f32 0.0, %v1385
      %1387 = vmatmul.f32.gmra.mxu0 %v1198
      %v1388 = vpop.f32.mrf.mxu0
      %v1389 = vadd.f32 0.0, %v1388
      %1390 = vmatmul.f32.gmra.mxu0 %v1199
      %v1391 = vpop.f32.mrf.mxu0
      %v1392 = vadd.f32 0.0, %v1391
      %1393 = vmatmul.f32.gmra.mxu0 %v1200
      %v1394 = vpop.f32.mrf.mxu0
      %v1395 = vadd.f32 0.0, %v1394
      %1396 = vmatmul.f32.gmra.mxu0 %v1201
      %v1397 = vpop.f32.mrf.mxu0
      %v1398 = vadd.f32 0.0, %v1397
      %1399 = vmatmul.f32.gmra.mxu0 %v1202
      %v1400 = vpop.f32.mrf.mxu0
      %v1401 = vadd.f32 0.0, %v1400
      %1402 = vmatmul.f32.gmra.mxu0 %v1203
      %v1403 = vpop.f32.mrf.mxu0
      %v1404 = vadd.f32 0.0, %v1403
      %1405 = vmatmul.f32.gmra.mxu0 %v1204
      %v1406 = vpop.f32.mrf.mxu0
      %v1407 = vadd.f32 0.0, %v1406
      %1408 = vmatmul.f32.gmra.mxu0 %v1205
      %v1409 = vpop.f32.mrf.mxu0
      %v1410 = vadd.f32 0.0, %v1409
      %1411 = vmatmul.f32.gmra.mxu0 %v1206
      %v1412 = vpop.f32.mrf.mxu0
      %v1413 = vadd.f32 0.0, %v1412
      %1414 = vmatmul.f32.gmra.mxu0 %v1207
      %v1415 = vpop.f32.mrf.mxu0
      %v1416 = vadd.f32 0.0, %v1415
      %1417 = vmatmul.f32.gmra.mxu0 %v1208
      %v1418 = vpop.f32.mrf.mxu0
      %v1419 = vadd.f32 0.0, %v1418
      %1420 = vmatmul.f32.gmra.mxu0 %v1209
      %v1421 = vpop.f32.mrf.mxu0
      %v1422 = vadd.f32 0.0, %v1421
      %1423 = vmatmul.f32.gmra.mxu0 %v1210
      %v1424 = vpop.f32.mrf.mxu0
      %v1425 = vadd.f32 0.0, %v1424
      %1426 = vmatmul.f32.gmra.mxu0 %v1211
      %v1427 = vpop.f32.mrf.mxu0
      %v1428 = vadd.f32 0.0, %v1427
      %1429 = vmatmul.f32.gmra.mxu0 %v1212
      %v1430 = vpop.f32.mrf.mxu0
      %v1431 = vadd.f32 0.0, %v1430
      %1432 = vmatmul.f32.gmra.mxu0 %v1213
      %v1433 = vpop.f32.mrf.mxu0
      %v1434 = vadd.f32 0.0, %v1433
      %1435 = vmatmul.f32.gmra.mxu0 %v1214
      %v1436 = vpop.f32.mrf.mxu0
      %v1437 = vadd.f32 0.0, %v1436
      %1438 = vmatmul.f32.gmra.mxu0 %v1215
      %v1439 = vpop.f32.mrf.mxu0
      %v1440 = vadd.f32 0.0, %v1439
      %1441 = vdwg.mxu0
      %1442 = vmatpush.msra.mxu0 %v1312
      %1443 = vmatpush.msra.mxu0 %v1311
      %1444 = vmatpush.msra.mxu0 %v1310
      %1445 = vmatpush.msra.mxu0 %v1309
      %1446 = vmatpush.msra.mxu0 %v1308
      %1447 = vmatpush.msra.mxu0 %v1307
      %1448 = vmatpush.msra.mxu0 %v1306
      %1449 = vmatpush.msra.mxu0 %v1305
      %1450 = vmatpush.msra.mxu0 %v1304
      %1451 = vmatpush.msra.mxu0 %v1303
      %1452 = vmatpush.msra.mxu0 %v1302
      %1453 = vmatpush.msra.mxu0 %v1301
      %1454 = vmatpush.msra.mxu0 %v1300
      %1455 = vmatpush.msra.mxu0 %v1299
      %1456 = vmatpush.msra.mxu0 %v1298
      %1457 = vmatpush.msra.mxu0 %v1297
      %1458 = vmatmul.f32.gmra.mxu0 %v1216
      %v1459 = vpop.f32.mrf.mxu0
      %v1460 = vadd.f32 %v1347, %v1459
      %1461 = vmatmul.f32.gmra.mxu0 %v1217
      %v1462 = vpop.f32.mrf.mxu0
      %v1463 = vadd.f32 %v1350, %v1462
      %1464 = vmatmul.f32.gmra.mxu0 %v1218
      %v1465 = vpop.f32.mrf.mxu0
      %v1466 = vadd.f32 %v1353, %v1465
      %1467 = vmatmul.f32.gmra.mxu0 %v1219
      %v1468 = vpop.f32.mrf.mxu0
      %v1469 = vadd.f32 %v1356, %v1468
      %1470 = vmatmul.f32.gmra.mxu0 %v1220
      %v1471 = vpop.f32.mrf.mxu0
      %v1472 = vadd.f32 %v1359, %v1471
      %1473 = vmatmul.f32.gmra.mxu0 %v1221
      %v1474 = vpop.f32.mrf.mxu0
      %v1475 = vadd.f32 %v1362, %v1474
      %1476 = vmatmul.f32.gmra.mxu0 %v1222
      %v1477 = vpop.f32.mrf.mxu0
      %v1478 = vadd.f32 %v1365, %v1477
      %1479 = vmatmul.f32.gmra.mxu0 %v1223
      %v1480 = vpop.f32.mrf.mxu0
      %v1481 = vadd.f32 %v1368, %v1480
      %1482 = vmatmul.f32.gmra.mxu0 %v1224
      %v1483 = vpop.f32.mrf.mxu0
      %v1484 = vadd.f32 %v1371, %v1483
      %1485 = vmatmul.f32.gmra.mxu0 %v1225
      %v1486 = vpop.f32.mrf.mxu0
      %v1487 = vadd.f32 %v1374, %v1486
      %1488 = vmatmul.f32.gmra.mxu0 %v1226
      %v1489 = vpop.f32.mrf.mxu0
      %v1490 = vadd.f32 %v1377, %v1489
      %1491 = vmatmul.f32.gmra.mxu0 %v1227
      %v1492 = vpop.f32.mrf.mxu0
      %v1493 = vadd.f32 %v1380, %v1492
      %1494 = vmatmul.f32.gmra.mxu0 %v1228
      %v1495 = vpop.f32.mrf.mxu0
      %v1496 = vadd.f32 %v1383, %v1495
      %1497 = vmatmul.f32.gmra.mxu0 %v1229
      %v1498 = vpop.f32.mrf.mxu0
      %v1499 = vadd.f32 %v1386, %v1498
      %1500 = vmatmul.f32.gmra.mxu0 %v1230
      %v1501 = vpop.f32.mrf.mxu0
      %v1502 = vadd.f32 %v1389, %v1501
      %1503 = vmatmul.f32.gmra.mxu0 %v1231
      %v1504 = vpop.f32.mrf.mxu0
      %v1505 = vadd.f32 %v1392, %v1504
      %1506 = vmatmul.f32.gmra.mxu0 %v1232
      %v1507 = vpop.f32.mrf.mxu0
      %v1508 = vadd.f32 %v1395, %v1507
      %1509 = vmatmul.f32.gmra.mxu0 %v1233
      %v1510 = vpop.f32.mrf.mxu0
      %v1511 = vadd.f32 %v1398, %v1510
      %1512 = vmatmul.f32.gmra.mxu0 %v1234
      %v1513 = vpop.f32.mrf.mxu0
      %v1514 = vadd.f32 %v1401, %v1513
      %1515 = vmatmul.f32.gmra.mxu0 %v1235
      %v1516 = vpop.f32.mrf.mxu0
      %v1517 = vadd.f32 %v1404, %v1516
      %1518 = vmatmul.f32.gmra.mxu0 %v1236
      %v1519 = vpop.f32.mrf.mxu0
      %v1520 = vadd.f32 %v1407, %v1519
      %1521 = vmatmul.f32.gmra.mxu0 %v1237
      %v1522 = vpop.f32.mrf.mxu0
      %v1523 = vadd.f32 %v1410, %v1522
      %1524 = vmatmul.f32.gmra.mxu0 %v1238
      %v1525 = vpop.f32.mrf.mxu0
      %v1526 = vadd.f32 %v1413, %v1525
      %1527 = vmatmul.f32.gmra.mxu0 %v1239
      %v1528 = vpop.f32.mrf.mxu0
      %v1529 = vadd.f32 %v1416, %v1528
      %1530 = vmatmul.f32.gmra.mxu0 %v1240
      %v1531 = vpop.f32.mrf.mxu0
      %v1532 = vadd.f32 %v1419, %v1531
      %1533 = vmatmul.f32.gmra.mxu0 %v1241
      %v1534 = vpop.f32.mrf.mxu0
      %v1535 = vadd.f32 %v1422, %v1534
      %1536 = vmatmul.f32.gmra.mxu0 %v1242
      %v1537 = vpop.f32.mrf.mxu0
      %v1538 = vadd.f32 %v1425, %v1537
      %1539 = vmatmul.f32.gmra.mxu0 %v1243
      %v1540 = vpop.f32.mrf.mxu0
      %v1541 = vadd.f32 %v1428, %v1540
      %1542 = vmatmul.f32.gmra.mxu0 %v1244
      %v1543 = vpop.f32.mrf.mxu0
      %v1544 = vadd.f32 %v1431, %v1543
      %1545 = vmatmul.f32.gmra.mxu0 %v1245
      %v1546 = vpop.f32.mrf.mxu0
      %v1547 = vadd.f32 %v1434, %v1546
      %1548 = vmatmul.f32.gmra.mxu0 %v1246
      %v1549 = vpop.f32.mrf.mxu0
      %v1550 = vadd.f32 %v1437, %v1549
      %1551 = vmatmul.f32.gmra.mxu0 %v1247
      %v1552 = vpop.f32.mrf.mxu0
      %v1553 = vadd.f32 %v1440, %v1552
      %1554 = vdwg.mxu0
      %1555 = vmatpush.msra.mxu0 %v1328
      %1556 = vmatpush.msra.mxu0 %v1327
      %1557 = vmatpush.msra.mxu0 %v1326
      %1558 = vmatpush.msra.mxu0 %v1325
      %1559 = vmatpush.msra.mxu0 %v1324
      %1560 = vmatpush.msra.mxu0 %v1323
      %1561 = vmatpush.msra.mxu0 %v1322
      %1562 = vmatpush.msra.mxu0 %v1321
      %1563 = vmatpush.msra.mxu0 %v1320
      %1564 = vmatpush.msra.mxu0 %v1319
      %1565 = vmatpush.msra.mxu0 %v1318
      %1566 = vmatpush.msra.mxu0 %v1317
      %1567 = vmatpush.msra.mxu0 %v1316
      %1568 = vmatpush.msra.mxu0 %v1315
      %1569 = vmatpush.msra.mxu0 %v1314
      %1570 = vmatpush.msra.mxu0 %v1313
      %1571 = vmatmul.f32.gmra.mxu0 %v1248
      %v1572 = vpop.f32.mrf.mxu0
      %v1573 = vadd.f32 %v1460, %v1572
      %1574 = vmatmul.f32.gmra.mxu0 %v1249
      %v1575 = vpop.f32.mrf.mxu0
      %v1576 = vadd.f32 %v1463, %v1575
      %1577 = vmatmul.f32.gmra.mxu0 %v1250
      %v1578 = vpop.f32.mrf.mxu0
      %v1579 = vadd.f32 %v1466, %v1578
      %1580 = vmatmul.f32.gmra.mxu0 %v1251
      %v1581 = vpop.f32.mrf.mxu0
      %v1582 = vadd.f32 %v1469, %v1581
      %1583 = vmatmul.f32.gmra.mxu0 %v1252
      %v1584 = vpop.f32.mrf.mxu0
      %v1585 = vadd.f32 %v1472, %v1584
      %1586 = vmatmul.f32.gmra.mxu0 %v1253
      %v1587 = vpop.f32.mrf.mxu0
      %v1588 = vadd.f32 %v1475, %v1587
      %1589 = vmatmul.f32.gmra.mxu0 %v1254
      %v1590 = vpop.f32.mrf.mxu0
      %v1591 = vadd.f32 %v1478, %v1590
      %1592 = vmatmul.f32.gmra.mxu0 %v1255
      %v1593 = vpop.f32.mrf.mxu0
      %v1594 = vadd.f32 %v1481, %v1593
      %1595 = vmatmul.f32.gmra.mxu0 %v1256
      %v1596 = vpop.f32.mrf.mxu0
      %v1597 = vadd.f32 %v1484, %v1596
      %1598 = vmatmul.f32.gmra.mxu0 %v1257
      %v1599 = vpop.f32.mrf.mxu0
      %v1600 = vadd.f32 %v1487, %v1599
      %1601 = vmatmul.f32.gmra.mxu0 %v1258
      %v1602 = vpop.f32.mrf.mxu0
      %v1603 = vadd.f32 %v1490, %v1602
      %1604 = vmatmul.f32.gmra.mxu0 %v1259
      %v1605 = vpop.f32.mrf.mxu0
      %v1606 = vadd.f32 %v1493, %v1605
      %1607 = vmatmul.f32.gmra.mxu0 %v1260
      %v1608 = vpop.f32.mrf.mxu0
      %v1609 = vadd.f32 %v1496, %v1608
      %1610 = vmatmul.f32.gmra.mxu0 %v1261
      %v1611 = vpop.f32.mrf.mxu0
      %v1612 = vadd.f32 %v1499, %v1611
      %1613 = vmatmul.f32.gmra.mxu0 %v1262
      %v1614 = vpop.f32.mrf.mxu0
      %v1615 = vadd.f32 %v1502, %v1614
      %1616 = vmatmul.f32.gmra.mxu0 %v1263
      %v1617 = vpop.f32.mrf.mxu0
      %v1618 = vadd.f32 %v1505, %v1617
      %1619 = vmatmul.f32.gmra.mxu0 %v1264
      %v1620 = vpop.f32.mrf.mxu0
      %v1621 = vadd.f32 %v1508, %v1620
      %1622 = vmatmul.f32.gmra.mxu0 %v1265
      %v1623 = vpop.f32.mrf.mxu0
      %v1624 = vadd.f32 %v1511, %v1623
      %1625 = vmatmul.f32.gmra.mxu0 %v1266
      %v1626 = vpop.f32.mrf.mxu0
      %v1627 = vadd.f32 %v1514, %v1626
      %1628 = vmatmul.f32.gmra.mxu0 %v1267
      %v1629 = vpop.f32.mrf.mxu0
      %v1630 = vadd.f32 %v1517, %v1629
      %1631 = vmatmul.f32.gmra.mxu0 %v1268
      %v1632 = vpop.f32.mrf.mxu0
      %v1633 = vadd.f32 %v1520, %v1632
      %1634 = vmatmul.f32.gmra.mxu0 %v1269
      %v1635 = vpop.f32.mrf.mxu0
      %v1636 = vadd.f32 %v1523, %v1635
      %1637 = vmatmul.f32.gmra.mxu0 %v1270
      %v1638 = vpop.f32.mrf.mxu0
      %v1639 = vadd.f32 %v1526, %v1638
      %1640 = vmatmul.f32.gmra.mxu0 %v1271
      %v1641 = vpop.f32.mrf.mxu0
      %v1642 = vadd.f32 %v1529, %v1641
      %1643 = vmatmul.f32.gmra.mxu0 %v1272
      %v1644 = vpop.f32.mrf.mxu0
      %v1645 = vadd.f32 %v1532, %v1644
      %1646 = vmatmul.f32.gmra.mxu0 %v1273
      %v1647 = vpop.f32.mrf.mxu0
      %v1648 = vadd.f32 %v1535, %v1647
      %1649 = vmatmul.f32.gmra.mxu0 %v1274
      %v1650 = vpop.f32.mrf.mxu0
      %v1651 = vadd.f32 %v1538, %v1650
      %1652 = vmatmul.f32.gmra.mxu0 %v1275
      %v1653 = vpop.f32.mrf.mxu0
      %v1654 = vadd.f32 %v1541, %v1653
      %1655 = vmatmul.f32.gmra.mxu0 %v1276
      %v1656 = vpop.f32.mrf.mxu0
      %v1657 = vadd.f32 %v1544, %v1656
      %1658 = vmatmul.f32.gmra.mxu0 %v1277
      %v1659 = vpop.f32.mrf.mxu0
      %v1660 = vadd.f32 %v1547, %v1659
      %1661 = vmatmul.f32.gmra.mxu0 %v1278
      %v1662 = vpop.f32.mrf.mxu0
      %v1663 = vadd.f32 %v1550, %v1662
      %1664 = vmatmul.f32.gmra.mxu0 %v1279
      %v1665 = vpop.f32.mrf.mxu0
      %v1666 = vadd.f32 %v1553, %v1665
      %1667 = vdwg.mxu0
      %v1668 = vadd.f32 %v1088, %v1573
      %v1669 = vadd.f32 %v1091, %v1576
      %v1670 = vadd.f32 %v1094, %v1579
      %v1671 = vadd.f32 %v1097, %v1582
      %v1672 = vadd.f32 %v1100, %v1585
      %v1673 = vadd.f32 %v1103, %v1588
      %v1674 = vadd.f32 %v1106, %v1591
      %v1675 = vadd.f32 %v1109, %v1594
      %v1676 = vadd.f32 %v1112, %v1597
      %v1677 = vadd.f32 %v1115, %v1600
      %v1678 = vadd.f32 %v1118, %v1603
      %v1679 = vadd.f32 %v1121, %v1606
      %v1680 = vadd.f32 %v1124, %v1609
      %v1681 = vadd.f32 %v1127, %v1612
      %v1682 = vadd.f32 %v1130, %v1615
      %v1683 = vadd.f32 %v1133, %v1618
      %v1684 = vadd.f32 %v1136, %v1621
      %v1685 = vadd.f32 %v1139, %v1624
      %v1686 = vadd.f32 %v1142, %v1627
      %v1687 = vadd.f32 %v1145, %v1630
      %v1688 = vadd.f32 %v1148, %v1633
      %v1689 = vadd.f32 %v1151, %v1636
      %v1690 = vadd.f32 %v1154, %v1639
      %v1691 = vadd.f32 %v1157, %v1642
      %v1692 = vadd.f32 %v1160, %v1645
      %v1693 = vadd.f32 %v1163, %v1648
      %v1694 = vadd.f32 %v1166, %v1651
      %v1695 = vadd.f32 %v1169, %v1654
      %v1696 = vadd.f32 %v1172, %v1657
      %v1697 = vadd.f32 %v1175, %v1660
      %v1698 = vadd.f32 %v1178, %v1663
      %v1699 = vadd.f32 %v1181, %v1666
      %v1700 = vadd.f32 %v1668, %v1669
      %v1701 = vadd.f32 %v1700, %v1670
      %v1702 = vadd.f32 %v1701, %v1671
      %v1703 = vadd.f32 %v1702, %v1672
      %v1704 = vadd.f32 %v1703, %v1673
      %v1705 = vadd.f32 %v1704, %v1674
      %v1706 = vadd.f32 %v1705, %v1675
      %v1707 = vadd.f32 %v1706, %v1676
      %v1708 = vadd.f32 %v1707, %v1677
      %v1709 = vadd.f32 %v1708, %v1678
      %v1710 = vadd.f32 %v1709, %v1679
      %v1711 = vadd.f32 %v1710, %v1680
      %v1712 = vadd.f32 %v1711, %v1681
      %v1713 = vadd.f32 %v1712, %v1682
      %v1714 = vadd.f32 %v1713, %v1683
      %v1715 = vadd.f32 %v1714, %v1684
      %v1716 = vadd.f32 %v1715, %v1685
      %v1717 = vadd.f32 %v1716, %v1686
      %v1718 = vadd.f32 %v1717, %v1687
      %v1719 = vadd.f32 %v1718, %v1688
      %v1720 = vadd.f32 %v1719, %v1689
      %v1721 = vadd.f32 %v1720, %v1690
      %v1722 = vadd.f32 %v1721, %v1691
      %v1723 = vadd.f32 %v1722, %v1692
      %v1724 = vadd.f32 %v1723, %v1693
      %v1725 = vadd.f32 %v1724, %v1694
      %v1726 = vadd.f32 %v1725, %v1695
      %v1727 = vadd.f32 %v1726, %v1696
      %v1728 = vadd.f32 %v1727, %v1697
      %v1729 = vadd.f32 %v1728, %v1698
      %v1730 = vadd.f32 %v1729, %v1699
      %v1731 = vrot.slane %v1730, 4
      %v1732 = vadd.f32 %v1730, %v1731
      %v1733 = vrot.slane %v1732, 2
      %v1734 = vadd.f32 %v1732, %v1733
      %v1735 = vrot.slane %v1734, 1
      %v1736 = vadd.f32 %v1734, %v1735
      %1737 = vst [vmem:[%s211] sm:$0x1] %v1736
      %v1738 = vmul.f32 %v1668, %v1668
      %v1739 = vmul.f32 %v1669, %v1669
      %v1740 = vmul.f32 %v1670, %v1670
      %v1741 = vmul.f32 %v1671, %v1671
      %v1742 = vmul.f32 %v1672, %v1672
      %v1743 = vmul.f32 %v1673, %v1673
      %v1744 = vmul.f32 %v1674, %v1674
      %v1745 = vmul.f32 %v1675, %v1675
      %v1746 = vmul.f32 %v1676, %v1676
      %v1747 = vmul.f32 %v1677, %v1677
      %v1748 = vmul.f32 %v1678, %v1678
      %v1749 = vmul.f32 %v1679, %v1679
      %v1750 = vmul.f32 %v1680, %v1680
      %v1751 = vmul.f32 %v1681, %v1681
      %v1752 = vmul.f32 %v1682, %v1682
      %v1753 = vmul.f32 %v1683, %v1683
      %v1754 = vmul.f32 %v1684, %v1684
      %v1755 = vmul.f32 %v1685, %v1685
      %v1756 = vmul.f32 %v1686, %v1686
      %v1757 = vmul.f32 %v1687, %v1687
      %v1758 = vmul.f32 %v1688, %v1688
      %v1759 = vmul.f32 %v1689, %v1689
      %v1760 = vmul.f32 %v1690, %v1690
      %v1761 = vmul.f32 %v1691, %v1691
      %v1762 = vmul.f32 %v1692, %v1692
      %v1763 = vmul.f32 %v1693, %v1693
      %v1764 = vmul.f32 %v1694, %v1694
      %v1765 = vmul.f32 %v1695, %v1695
      %v1766 = vmul.f32 %v1696, %v1696
      %v1767 = vmul.f32 %v1697, %v1697
      %v1768 = vmul.f32 %v1698, %v1698
      %v1769 = vmul.f32 %v1699, %v1699
      %v1770 = vadd.f32 %v1738, %v1739
      %v1771 = vadd.f32 %v1770, %v1740
      %v1772 = vadd.f32 %v1771, %v1741
      %v1773 = vadd.f32 %v1772, %v1742
      %v1774 = vadd.f32 %v1773, %v1743
      %v1775 = vadd.f32 %v1774, %v1744
      %v1776 = vadd.f32 %v1775, %v1745
      %v1777 = vadd.f32 %v1776, %v1746
      %v1778 = vadd.f32 %v1777, %v1747
      %v1779 = vadd.f32 %v1778, %v1748
      %v1780 = vadd.f32 %v1779, %v1749
      %v1781 = vadd.f32 %v1780, %v1750
      %v1782 = vadd.f32 %v1781, %v1751
      %v1783 = vadd.f32 %v1782, %v1752
      %v1784 = vadd.f32 %v1783, %v1753
      %v1785 = vadd.f32 %v1784, %v1754
      %v1786 = vadd.f32 %v1785, %v1755
      %v1787 = vadd.f32 %v1786, %v1756
      %v1788 = vadd.f32 %v1787, %v1757
      %v1789 = vadd.f32 %v1788, %v1758
      %v1790 = vadd.f32 %v1789, %v1759
      %v1791 = vadd.f32 %v1790, %v1760
      %v1792 = vadd.f32 %v1791, %v1761
      %v1793 = vadd.f32 %v1792, %v1762
      %v1794 = vadd.f32 %v1793, %v1763
      %v1795 = vadd.f32 %v1794, %v1764
      %v1796 = vadd.f32 %v1795, %v1765
      %v1797 = vadd.f32 %v1796, %v1766
      %v1798 = vadd.f32 %v1797, %v1767
      %v1799 = vadd.f32 %v1798, %v1768
      %v1800 = vadd.f32 %v1799, %v1769
      %v1801 = vrot.slane %v1800, 4
      %v1802 = vadd.f32 %v1800, %v1801
      %v1803 = vrot.slane %v1802, 2
      %v1804 = vadd.f32 %v1802, %v1803
      %v1805 = vrot.slane %v1804, 1
      %v1806 = vadd.f32 %v1804, %v1805
      %1807 = vst [vmem:[%s214] sm:$0x1] %v1806
      %1808 = vst [vmem:[%s208] sm:$0xff] %v1668
      %1809 = vst [vmem:[%s208 + $0x8] sm:$0xff] %v1669
      %1810 = vst [vmem:[%s208 + $0x10] sm:$0xff] %v1670
      %1811 = vst [vmem:[%s208 + $0x18] sm:$0xff] %v1671
      %1812 = vst [vmem:[%s208 + $0x20] sm:$0xff] %v1672
      %1813 = vst [vmem:[%s208 + $0x28] sm:$0xff] %v1673
      %1814 = vst [vmem:[%s208 + $0x30] sm:$0xff] %v1674
      %1815 = vst [vmem:[%s208 + $0x38] sm:$0xff] %v1675
      %1816 = vst [vmem:[%s208 + $0x40] sm:$0xff] %v1676
      %1817 = vst [vmem:[%s208 + $0x48] sm:$0xff] %v1677
      %1818 = vst [vmem:[%s208 + $0x50] sm:$0xff] %v1678
      %1819 = vst [vmem:[%s208 + $0x58] sm:$0xff] %v1679
      %1820 = vst [vmem:[%s208 + $0x60] sm:$0xff] %v1680
      %1821 = vst [vmem:[%s208 + $0x68] sm:$0xff] %v1681
      %1822 = vst [vmem:[%s208 + $0x70] sm:$0xff] %v1682
      %1823 = vst [vmem:[%s208 + $0x78] sm:$0xff] %v1683
      %1824 = vst [vmem:[%s208 + $0x80] sm:$0xff] %v1684
      %1825 = vst [vmem:[%s208 + $0x88] sm:$0xff] %v1685
      %1826 = vst [vmem:[%s208 + $0x90] sm:$0xff] %v1686
      %1827 = vst [vmem:[%s208 + $0x98] sm:$0xff] %v1687
      %1828 = vst [vmem:[%s208 + $0xa0] sm:$0xff] %v1688
      %1829 = vst [vmem:[%s208 + $0xa8] sm:$0xff] %v1689
      %1830 = vst [vmem:[%s208 + $0xb0] sm:$0xff] %v1690
      %1831 = vst [vmem:[%s208 + $0xb8] sm:$0xff] %v1691
      %1832 = vst [vmem:[%s208 + $0xc0] sm:$0xff] %v1692
      %1833 = vst [vmem:[%s208 + $0xc8] sm:$0xff] %v1693
      %1834 = vst [vmem:[%s208 + $0xd0] sm:$0xff] %v1694
      %1835 = vst [vmem:[%s208 + $0xd8] sm:$0xff] %v1695
      %1836 = vst [vmem:[%s208 + $0xe0] sm:$0xff] %v1696
      %1837 = vst [vmem:[%s208 + $0xe8] sm:$0xff] %v1697
      %1838 = vst [vmem:[%s208 + $0xf0] sm:$0xff] %v1698
      %1839 = vst [vmem:[%s208 + $0xf8] sm:$0xff] %v1699
      %p1840 = scmp.lt.s32.totalorder %s16, 1
      %s1841 = scalar_select %p1840, %s16, 1
      %s1842 = smul.addr %s1841, 32
      %s1843 = smul.addr %s1842, 8
      %s1844 = scalar_lea.vmem %s2, %s1843
      %p1845 = scmp.lt.s32.totalorder %s16, 1
      %s1846 = scalar_select %p1845, %s16, 1
      %s1847 = scalar_lea.vmem %s3, %s1846
      %p1848 = scmp.lt.s32.totalorder %s16, 1
      %s1849 = scalar_select %p1848, %s16, 1
      %s1850 = scalar_lea.vmem %s4, %s1849
      // Predicated region
      $region29: #{basic_block_forward.2} parent=27 // pred_check
        %p1851 = pneg %p81
      $region30: #{basic_block_forward.2} parent=27 // pred_check_branch
        %1853 = sbr.rel (%p1851) target = $region32
      $region31: #{basic_block_forward.2} parent=27 // pred_region
        _
      $region32: #{basic_block_forward.2} parent=27 // pred_fallthru
        _
      // Predicated region
      $region33: #{basic_block_forward.2} parent=27 // pred_check
        %p1854 = pneg %p107
      $region34: #{basic_block_forward.2} parent=27 // pred_check_branch
        %1856 = sbr.rel (%p1854) target = $region36
      $region35: #{basic_block_forward.2} parent=27 // pred_region
        _
      $region36: #{basic_block_forward.2} parent=27 // pred_fallthru
        _
      // Predicated region
      $region37: #{basic_block_forward.2} parent=27 // pred_check
        %p1857 = pneg %p133
      $region38: #{basic_block_forward.2} parent=27 // pred_check_branch
        %1859 = sbr.rel (%p1857) target = $region40
      $region39: #{basic_block_forward.2} parent=27 // pred_region
        _
      $region40: #{basic_block_forward.2} parent=27 // pred_fallthru
        _
    $region28: #{basic_block_forward.2} parent=5 // pred_fallthru
      _
    %p1860 = scmp.le.s32.totalorder 2, %s11
    // Predicated region
    $region41: #{basic_block_forward.2} parent=5 // pred_check
      %p1861 = pneg %p1860
    $region42: #{basic_block_forward.2} parent=5 // pred_check_branch
      %1863 = sbr.rel (%p1861) target = $region44
    $region43: #{basic_block_forward.2} parent=5 // pred_region
      %s1864 = ssub.s32 %s11, 2
      // Predicated region
      $region45: #{basic_block_forward.2} parent=43 // pred_check
        %p1865 = pneg %p87
      $region46: #{basic_block_forward.2} parent=43 // pred_check_branch
        %1867 = sbr.rel (%p1865) target = $region48
      $region47: #{basic_block_forward.2} parent=43 // pred_region
        %p1868 = scmp.lt.s32.totalorder %s17, 1
        %s1869 = scalar_select %p1868, %s17, 1
        %s1870 = smul.addr %s1869, 32
        %s1871 = smul.addr %s1870, 8
        %s1872 = scalar_lea.vmem %s2, %s1871
      $region48: #{basic_block_forward.2} parent=43 // pred_fallthru
        _
      // Predicated region
      $region49: #{basic_block_forward.2} parent=43 // pred_check
        %p1873 = pneg %p113
      $region50: #{basic_block_forward.2} parent=43 // pred_check_branch
        %1875 = sbr.rel (%p1873) target = $region52
      $region51: #{basic_block_forward.2} parent=43 // pred_region
        %p1876 = scmp.lt.s32.totalorder %s17, 1
        %s1877 = scalar_select %p1876, %s17, 1
        %s1878 = scalar_lea.vmem %s3, %s1877
      $region52: #{basic_block_forward.2} parent=43 // pred_fallthru
        _
      // Predicated region
      $region53: #{basic_block_forward.2} parent=43 // pred_check
        %p1879 = pneg %p139
      $region54: #{basic_block_forward.2} parent=43 // pred_check_branch
        %1881 = sbr.rel (%p1879) target = $region56
      $region55: #{basic_block_forward.2} parent=43 // pred_region
        %p1882 = scmp.lt.s32.totalorder %s17, 1
        %s1883 = scalar_select %p1882, %s17, 1
        %s1884 = scalar_lea.vmem %s4, %s1883
      $region56: #{basic_block_forward.2} parent=43 // pred_fallthru
        _
    $region44: #{basic_block_forward.2} parent=5 // pred_fallthru
      _
  $region6: #{basic_block_forward.2} parent=0 // loop_footer
    %s15 = sadd.s32 1, %s11
  $region7: #{basic_block_forward.2} parent=0 // loop_footer_branch
    %10 = sbr.rel target = $region3
  $region8: #{basic_block_forward.2} parent=0 // loop_exit
    _

// kernel: basic_block_forward.3
$region0: #{basic_block_forward.3}
  #allocation0 [shape = 'u32[]', space=smem, size = 0x4, offset = 0x4, fixed_abs, tag = 'smem constant byte address 0x4 - core index']
  #allocation1 [shape = 'u32[72,128]{1,0:T(1,128)}', space=vmem, size = 0x9000, scoped, tag = 'internal scratch']
  #allocation2 [shape = 'f32[18,18,128]{2,1,0:T(8,128)}', space=vmem, size = 0x36000, scoped, tag = 'scratch operand']
  %s0 = inlined_call_operand.vmem [shape: f32[2,16,16,128], index: 0, kind: input, shape index: {}]
  %s1 = inlined_call_operand.vmem [shape: f32[2,18,18,128], index: 1, kind: input, shape index: {}]
  %s2 = inlined_call_operand.vmem [shape: f32[1,128], index: 2, kind: input, shape index: {}]
  %s3 = inlined_call_operand.vmem [shape: f32[1,128], index: 3, kind: input, shape index: {}]
  %s4 = inlined_call_operand.vmem [shape: f32[3,384,128], index: 4, kind: input, shape index: {}]
  %s5 = inlined_call_operand.vmem [shape: f32[2,16,16,128], index: 5, kind: output, shape index: {0}]
  %s6 = inlined_call_operand.vmem [shape: f32[2,1,128], index: 6, kind: output, shape index: {1}]
  %s7 = inlined_call_operand.vmem [shape: f32[2,1,128], index: 7, kind: output, shape index: {2}]
  %8 = xla_tuple %s5, %s6, %s7
  %s9 = sld [smem:[#allocation0]]
  $region69: #{basic_block_forward.3} parent=0
    _
  %s11 = ssub.s32 1, %s9
  %s12 = scalar_select 0, %s11, %s9
  loop: start=0, step=1, limit=4
  $region2: #{basic_block_forward.3} parent=0 // loop_pre_header
    _
  $region3: #{basic_block_forward.3} parent=0 // loop_header
    %s14 = sphi 0, %s18
    %p15 = scmp.ge.s32.totalorder %s14, 4
    %s24 = sphi 0, %s26
    %s27 = sphi 0, %s24
    %s28 = sphi 0, %s27
    %s44 = sphi 0, %s28
    %s50 = sphi 0, %s52
    %s53 = sphi 0, %s50
    %s54 = sphi 0, %s53
    %s70 = sphi 0, %s54
    %s74 = sphi 0, %s74
    %s76 = sphi 0, %s74
    %s77 = sphi 0, %s76
    %s91 = sphi 0, %s77
    %s95 = sphi 0, %s95
    %s97 = sphi 0, %s95
    %s98 = sphi 0, %s97
    %s112 = sphi 0, %s98
    %s116 = sphi 0, %s116
    %s118 = sphi 0, %s116
    %s119 = sphi 0, %s118
    %s133 = sphi 0, %s119
    %s139 = sphi 0, %s141
    %s142 = sphi 0, %s139
    %s143 = sphi 0, %s142
    %s159 = sphi 0, %s143
    %s165 = sphi 0, %s167
    %s168 = sphi 0, %s165
    %s169 = sphi 0, %s168
    %s185 = sphi 0, %s169
    %s191 = sphi 0, %s193
    %s194 = sphi 0, %s191
    %s195 = sphi 0, %s194
    %s211 = sphi 0, %s195
  $region4: #{basic_block_forward.3} parent=0 // loop_header_branch
    %17 = sbr.rel (%p15) target = $region8
  $region5: #{basic_block_forward.3} parent=0 // loop_body
    %s19 = ssub.s32 %s14, 1
    %s20 = ssub.s32 %s14, 2
    %s21 = sadd.s32 %s14, 1
    %s22 = ssub.s32 %s14, %s21
    %p23 = scmp.eq.s32.totalorder %s22, 0
    %s25 = sadd.s32 %s24, 1
    %s26 = scalar_select %p23, %s24, %s25
    %p29 = pneg %p23
    %p30 = scmp.eq.s32.totalorder %s14, 1
    %p31 = por %p29, %p30
    %p32 = scmp.ne.s32.totalorder %s24, %s27
    %p33 = scmp.eq.s32.totalorder %s14, 0
    %p34 = por %p32, %p33
    %p35 = scmp.ne.s32.totalorder %s24, %s27
    %p36 = scmp.eq.s32.totalorder %s19, 1
    %p37 = por %p35, %p36
    %p38 = scmp.ne.s32.totalorder %s27, %s28
    %p39 = scmp.eq.s32.totalorder %s19, 0
    %p40 = por %p38, %p39
    %p41 = scmp.ne.s32.totalorder %s27, %s28
    %p42 = scmp.eq.s32.totalorder %s20, 1
    %p43 = por %p41, %p42
    %p45 = scmp.ne.s32.totalorder %s28, %s44
    %p46 = scmp.eq.s32.totalorder %s20, 0
    %p47 = por %p45, %p46
    %s48 = ssub.s32 %s14, %s21
    %p49 = scmp.eq.s32.totalorder %s48, 0
    %s51 = sadd.s32 %s50, 1
    %s52 = scalar_select %p49, %s50, %s51
    %p55 = pneg %p49
    %p56 = scmp.eq.s32.totalorder %s14, 1
    %p57 = por %p55, %p56
    %p58 = scmp.ne.s32.totalorder %s50, %s53
    %p59 = scmp.eq.s32.totalorder %s14, 0
    %p60 = por %p58, %p59
    %p61 = scmp.ne.s32.totalorder %s50, %s53
    %p62 = scmp.eq.s32.totalorder %s19, 1
    %p63 = por %p61, %p62
    %p64 = scmp.ne.s32.totalorder %s53, %s54
    %p65 = scmp.eq.s32.totalorder %s19, 0
    %p66 = por %p64, %p65
    %p67 = scmp.ne.s32.totalorder %s53, %s54
    %p68 = scmp.eq.s32.totalorder %s20, 1
    %p69 = por %p67, %p68
    %p71 = scmp.ne.s32.totalorder %s54, %s70
    %p72 = scmp.eq.s32.totalorder %s20, 0
    %p73 = por %p71, %p72
    %s75 = sadd.s32 %s74, 1
    %p78 = scmp.eq.s32.totalorder %s14, 1
    %p79 = scmp.ne.s32.totalorder %s74, %s76
    %p80 = scmp.eq.s32.totalorder %s14, 0
    %p81 = por %p79, %p80
    %p82 = scmp.ne.s32.totalorder %s74, %s76
    %p83 = scmp.eq.s32.totalorder %s19, 1
    %p84 = por %p82, %p83
    %p85 = scmp.ne.s32.totalorder %s76, %s77
    %p86 = scmp.eq.s32.totalorder %s19, 0
    %p87 = por %p85, %p86
    %p88 = scmp.ne.s32.totalorder %s76, %s77
    %p89 = scmp.eq.s32.totalorder %s20, 1
    %p90 = por %p88, %p89
    %p92 = scmp.ne.s32.totalorder %s77, %s91
    %p93 = scmp.eq.s32.totalorder %s20, 0
    %p94 = por %p92, %p93
    %s96 = sadd.s32 %s95, 1
    %p99 = scmp.eq.s32.totalorder %s14, 1
    %p100 = scmp.ne.s32.totalorder %s95, %s97
    %p101 = scmp.eq.s32.totalorder %s14, 0
    %p102 = por %p100, %p101
    %p103 = scmp.ne.s32.totalorder %s95, %s97
    %p104 = scmp.eq.s32.totalorder %s19, 1
    %p105 = por %p103, %p104
    %p106 = scmp.ne.s32.totalorder %s97, %s98
    %p107 = scmp.eq.s32.totalorder %s19, 0
    %p108 = por %p106, %p107
    %p109 = scmp.ne.s32.totalorder %s97, %s98
    %p110 = scmp.eq.s32.totalorder %s20, 1
    %p111 = por %p109, %p110
    %p113 = scmp.ne.s32.totalorder %s98, %s112
    %p114 = scmp.eq.s32.totalorder %s20, 0
    %p115 = por %p113, %p114
    %s117 = sadd.s32 %s116, 1
    %p120 = scmp.eq.s32.totalorder %s14, 1
    %p121 = scmp.ne.s32.totalorder %s116, %s118
    %p122 = scmp.eq.s32.totalorder %s14, 0
    %p123 = por %p121, %p122
    %p124 = scmp.ne.s32.totalorder %s116, %s118
    %p125 = scmp.eq.s32.totalorder %s19, 1
    %p126 = por %p124, %p125
    %p127 = scmp.ne.s32.totalorder %s118, %s119
    %p128 = scmp.eq.s32.totalorder %s19, 0
    %p129 = por %p127, %p128
    %p130 = scmp.ne.s32.totalorder %s118, %s119
    %p131 = scmp.eq.s32.totalorder %s20, 1
    %p132 = por %p130, %p131
    %p134 = scmp.ne.s32.totalorder %s119, %s133
    %p135 = scmp.eq.s32.totalorder %s20, 0
    %p136 = por %p134, %p135
    %s137 = ssub.s32 %s14, %s21
    %p138 = scmp.eq.s32.totalorder %s137, 0
    %s140 = sadd.s32 %s139, 1
    %s141 = scalar_select %p138, %s139, %s140
    %p144 = pneg %p138
    %p145 = scmp.eq.s32.totalorder %s14, 1
    %p146 = por %p144, %p145
    %p147 = scmp.ne.s32.totalorder %s139, %s142
    %p148 = scmp.eq.s32.totalorder %s14, 0
    %p149 = por %p147, %p148
    %p150 = scmp.ne.s32.totalorder %s139, %s142
    %p151 = scmp.eq.s32.totalorder %s19, 1
    %p152 = por %p150, %p151
    %p153 = scmp.ne.s32.totalorder %s142, %s143
    %p154 = scmp.eq.s32.totalorder %s19, 0
    %p155 = por %p153, %p154
    %p156 = scmp.ne.s32.totalorder %s142, %s143
    %p157 = scmp.eq.s32.totalorder %s20, 1
    %p158 = por %p156, %p157
    %p160 = scmp.ne.s32.totalorder %s143, %s159
    %p161 = scmp.eq.s32.totalorder %s20, 0
    %p162 = por %p160, %p161
    %s163 = ssub.s32 %s14, %s21
    %p164 = scmp.eq.s32.totalorder %s163, 0
    %s166 = sadd.s32 %s165, 1
    %s167 = scalar_select %p164, %s165, %s166
    %p170 = pneg %p164
    %p171 = scmp.eq.s32.totalorder %s14, 1
    %p172 = por %p170, %p171
    %p173 = scmp.ne.s32.totalorder %s165, %s168
    %p174 = scmp.eq.s32.totalorder %s14, 0
    %p175 = por %p173, %p174
    %p176 = scmp.ne.s32.totalorder %s165, %s168
    %p177 = scmp.eq.s32.totalorder %s19, 1
    %p178 = por %p176, %p177
    %p179 = scmp.ne.s32.totalorder %s168, %s169
    %p180 = scmp.eq.s32.totalorder %s19, 0
    %p181 = por %p179, %p180
    %p182 = scmp.ne.s32.totalorder %s168, %s169
    %p183 = scmp.eq.s32.totalorder %s20, 1
    %p184 = por %p182, %p183
    %p186 = scmp.ne.s32.totalorder %s169, %s185
    %p187 = scmp.eq.s32.totalorder %s20, 0
    %p188 = por %p186, %p187
    %s189 = ssub.s32 %s14, %s21
    %p190 = scmp.eq.s32.totalorder %s189, 0
    %s192 = sadd.s32 %s191, 1
    %s193 = scalar_select %p190, %s191, %s192
    %p196 = pneg %p190
    %p197 = scmp.eq.s32.totalorder %s14, 1
    %p198 = por %p196, %p197
    %p199 = scmp.ne.s32.totalorder %s191, %s194
    %p200 = scmp.eq.s32.totalorder %s14, 0
    %p201 = por %p199, %p200
    %p202 = scmp.ne.s32.totalorder %s191, %s194
    %p203 = scmp.eq.s32.totalorder %s19, 1
    %p204 = por %p202, %p203
    %p205 = scmp.ne.s32.totalorder %s194, %s195
    %p206 = scmp.eq.s32.totalorder %s19, 0
    %p207 = por %p205, %p206
    %p208 = scmp.ne.s32.totalorder %s194, %s195
    %p209 = scmp.eq.s32.totalorder %s20, 1
    %p210 = por %p208, %p209
    %p212 = scmp.ne.s32.totalorder %s195, %s211
    %p213 = scmp.eq.s32.totalorder %s20, 0
    %p214 = por %p212, %p213
    %p215 = scmp.le.s32.totalorder 1, %s14
    %p216 = scmp.lt.s32.totalorder %s14, 3
    %p217 = pnand %p215, %p216
    %p218 = pneg %p217
    // Predicated region
    $region9: #{basic_block_forward.3} parent=5 // pred_check
      _
    $region10: #{basic_block_forward.3} parent=5 // pred_check_branch
      %220 = sbr.rel (%p217) target = $region12
    $region11: #{basic_block_forward.3} parent=5 // pred_region
      %s221 = ssub.s32 %s14, 1
      // Predicated region
      $region13: #{basic_block_forward.3} parent=11 // pred_check
        %p222 = pneg %p87
      $region14: #{basic_block_forward.3} parent=11 // pred_check_branch
        %224 = sbr.rel (%p222) target = $region16
      $region15: #{basic_block_forward.3} parent=11 // pred_region
        _
      $region16: #{basic_block_forward.3} parent=11 // pred_fallthru
        _
      // Predicated region
      $region17: #{basic_block_forward.3} parent=11 // pred_check
        %p225 = pneg %p108
      $region18: #{basic_block_forward.3} parent=11 // pred_check_branch
        %227 = sbr.rel (%p225) target = $region20
      $region19: #{basic_block_forward.3} parent=11 // pred_region
        _
      $region20: #{basic_block_forward.3} parent=11 // pred_fallthru
        _
      // Predicated region
      $region21: #{basic_block_forward.3} parent=11 // pred_check
        %p228 = pneg %p129
      $region22: #{basic_block_forward.3} parent=11 // pred_check_branch
        %230 = sbr.rel (%p228) target = $region24
      $region23: #{basic_block_forward.3} parent=11 // pred_region
        _
      $region24: #{basic_block_forward.3} parent=11 // pred_fallthru
        _
    $region12: #{basic_block_forward.3} parent=5 // pred_fallthru
      _
    %p231 = scmp.lt.s32.totalorder %s14, 2
    // Predicated region
    $region25: #{basic_block_forward.3} parent=5 // pred_check
      %p232 = pneg %p231
    $region26: #{basic_block_forward.3} parent=5 // pred_check_branch
      %234 = sbr.rel (%p232) target = $region28
    $region27: #{basic_block_forward.3} parent=5 // pred_region
      // Predicated region
      $region29: #{basic_block_forward.3} parent=27 // pred_check
        %p235 = pneg %p34
      $region30: #{basic_block_forward.3} parent=27 // pred_check_branch
        %237 = sbr.rel (%p235) target = $region32
      $region31: #{basic_block_forward.3} parent=27 // pred_region
        %p238 = scmp.lt.s32.totalorder %s14, 1
        %s239 = scalar_select %p238, %s14, 1
        %s240 = smul.addr %s239, 32
        %s241 = smul.addr %s240, 8
        %s242 = scalar_lea.vmem %s0, %s241
      $region32: #{basic_block_forward.3} parent=27 // pred_fallthru
        _
      // Predicated region
      $region33: #{basic_block_forward.3} parent=27 // pred_check
        %p243 = pneg %p60
      $region34: #{basic_block_forward.3} parent=27 // pred_check_branch
        %245 = sbr.rel (%p243) target = $region36
      $region35: #{basic_block_forward.3} parent=27 // pred_region
        %p246 = scmp.lt.s32.totalorder %s14, 1
        %s247 = scalar_select %p246, %s14, 1
        %s248 = smul.addr %s247, 54
        %s249 = smul.addr %s248, 8
        %s250 = scalar_lea.vmem %s1, %s249
      $region36: #{basic_block_forward.3} parent=27 // pred_fallthru
        _
    $region28: #{basic_block_forward.3} parent=5 // pred_fallthru
      _
    %p251 = scmp.le.s32.totalorder 1, %s14
    %p252 = scmp.lt.s32.totalorder %s14, 3
    %p253 = pnand %p251, %p252
    %p254 = pneg %p253
    // Predicated region
    $region37: #{basic_block_forward.3} parent=5 // pred_check
      _
    $region38: #{basic_block_forward.3} parent=5 // pred_check_branch
      %256 = sbr.rel (%p253) target = $region40
    $region39: #{basic_block_forward.3} parent=5 // pred_region
      %s257 = ssub.s32 %s14, 1
      %p258 = scmp.lt.s32.totalorder %s19, 1
      %s259 = scalar_select %p258, %s19, 1
      %s260 = smul.addr %s259, 32
      %s261 = smul.addr %s260, 8
      %s262 = scalar_lea.vmem %s0, %s261
      %p263 = pneg %p40
      %p264 = pneg %p37
      %p265 = scmp.lt.s32.totalorder %s19, 1
      %s266 = scalar_select %p265, %s19, 1
      %s267 = smul.addr %s266, 54
      %s268 = smul.addr %s267, 8
      %s269 = scalar_lea.vmem %s1, %s268
      %p270 = pneg %p66
      %p271 = pneg %p63
      %p272 = pneg %p87
      %p273 = pneg %p84
      %p274 = pneg %p108
      %p275 = pneg %p105
      %p276 = pneg %p129
      %p277 = pneg %p126
      %p278 = pneg %p155
      %p279 = pneg %p152
      %p280 = scmp.lt.s32.totalorder %s19, 1
      %s281 = scalar_select %p280, %s19, 1
      %s282 = smul.addr %s281, 32
      %s283 = smul.addr %s282, 8
      %s284 = scalar_lea.vmem %s5, %s283
      %p285 = pneg %p181
      %p286 = pneg %p178
      %p287 = scmp.lt.s32.totalorder %s19, 1
      %s288 = scalar_select %p287, %s19, 1
      %s289 = scalar_lea.vmem %s6, %s288
      %p290 = pneg %p207
      %p291 = pneg %p204
      %p292 = scmp.lt.s32.totalorder %s19, 1
      %s293 = scalar_select %p292, %s19, 1
      %s294 = scalar_lea.vmem %s7, %s293
      %p295 = scmp.lt.s32.totalorder %s19, 1
      %s296 = scalar_select %p295, %s19, 1
      %s297 = smul.addr %s296, 32
      %s298 = smul.addr %s297, 8
      %s299 = scalar_lea.vmem %s0, %s298
      %p300 = scmp.lt.s32.totalorder %s19, 1
      %s301 = scalar_select %p300, %s19, 1
      %s302 = smul.addr %s301, 54
      %s303 = smul.addr %s302, 8
      %s304 = scalar_lea.vmem %s1, %s303
      %p305 = scmp.lt.s32.totalorder %s19, 1
      %s306 = scalar_select %p305, %s19, 1
      %s307 = smul.addr %s306, 32
      %s308 = smul.addr %s307, 8
      %s309 = scalar_lea.vmem %s5, %s308
      %p310 = scmp.lt.s32.totalorder %s19, 1
      %s311 = scalar_select %p310, %s19, 1
      %s312 = scalar_lea.vmem %s6, %s311
      %p313 = scmp.lt.s32.totalorder %s19, 1
      %s314 = scalar_select %p313, %s19, 1
      %s315 = scalar_lea.vmem %s7, %s314
      %v316 = vld [vmem:[%s299] sm:$0xff]
      %v317 = vld [vmem:[%s299 + $0x8] sm:$0xff]
      %v318 = vld [vmem:[%s299 + $0x10] sm:$0xff]
      %v319 = vld [vmem:[%s299 + $0x18] sm:$0xff]
      %v320 = vld [vmem:[%s299 + $0x20] sm:$0xff]
      %v321 = vld [vmem:[%s299 + $0x28] sm:$0xff]
      %v322 = vld [vmem:[%s299 + $0x30] sm:$0xff]
      %v323 = vld [vmem:[%s299 + $0x38] sm:$0xff]
      %v324 = vld [vmem:[%s299 + $0x40] sm:$0xff]
      %v325 = vld [vmem:[%s299 + $0x48] sm:$0xff]
      %v326 = vld [vmem:[%s299 + $0x50] sm:$0xff]
      %v327 = vld [vmem:[%s299 + $0x58] sm:$0xff]
      %v328 = vld [vmem:[%s299 + $0x60] sm:$0xff]
      %v329 = vld [vmem:[%s299 + $0x68] sm:$0xff]
      %v330 = vld [vmem:[%s299 + $0x70] sm:$0xff]
      %v331 = vld [vmem:[%s299 + $0x78] sm:$0xff]
      %v332 = vld [vmem:[%s299 + $0x80] sm:$0xff]
      %v333 = vld [vmem:[%s299 + $0x88] sm:$0xff]
      %v334 = vld [vmem:[%s299 + $0x90] sm:$0xff]
      %v335 = vld [vmem:[%s299 + $0x98] sm:$0xff]
      %v336 = vld [vmem:[%s299 + $0xa0] sm:$0xff]
      %v337 = vld [vmem:[%s299 + $0xa8] sm:$0xff]
      %v338 = vld [vmem:[%s299 + $0xb0] sm:$0xff]
      %v339 = vld [vmem:[%s299 + $0xb8] sm:$0xff]
      %v340 = vld [vmem:[%s299 + $0xc0] sm:$0xff]
      %v341 = vld [vmem:[%s299 + $0xc8] sm:$0xff]
      %v342 = vld [vmem:[%s299 + $0xd0] sm:$0xff]
      %v343 = vld [vmem:[%s299 + $0xd8] sm:$0xff]
      %v344 = vld [vmem:[%s299 + $0xe0] sm:$0xff]
      %v345 = vld [vmem:[%s299 + $0xe8] sm:$0xff]
      %v346 = vld [vmem:[%s299 + $0xf0] sm:$0xff]
      %v347 = vld [vmem:[%s299 + $0xf8] sm:$0xff]
      %v348 = vld [vmem:[%s2] sm:$0x1]
      %v350 = vperm.slane %v348, 0
      %v352 = vmul.f32 %v316, %v350
      %v353 = vmul.f32 %v317, %v350
      %v354 = vmul.f32 %v318, %v350
      %v355 = vmul.f32 %v319, %v350
      %v356 = vmul.f32 %v320, %v350
      %v357 = vmul.f32 %v321, %v350
      %v358 = vmul.f32 %v322, %v350
      %v359 = vmul.f32 %v323, %v350
      %v360 = vmul.f32 %v324, %v350
      %v361 = vmul.f32 %v325, %v350
      %v362 = vmul.f32 %v326, %v350
      %v363 = vmul.f32 %v327, %v350
      %v364 = vmul.f32 %v328, %v350
      %v365 = vmul.f32 %v329, %v350
      %v366 = vmul.f32 %v330, %v350
      %v367 = vmul.f32 %v331, %v350
      %v368 = vmul.f32 %v332, %v350
      %v369 = vmul.f32 %v333, %v350
      %v370 = vmul.f32 %v334, %v350
      %v371 = vmul.f32 %v335, %v350
      %v372 = vmul.f32 %v336, %v350
      %v373 = vmul.f32 %v337, %v350
      %v374 = vmul.f32 %v338, %v350
      %v375 = vmul.f32 %v339, %v350
      %v376 = vmul.f32 %v340, %v350
      %v377 = vmul.f32 %v341, %v350
      %v378 = vmul.f32 %v342, %v350
      %v379 = vmul.f32 %v343, %v350
      %v380 = vmul.f32 %v344, %v350
      %v381 = vmul.f32 %v345, %v350
      %v382 = vmul.f32 %v346, %v350
      %v383 = vmul.f32 %v347, %v350
      %v384 = vld [vmem:[%s3] sm:$0x1]
      %v386 = vperm.slane %v384, 0
      %v388 = vadd.f32 %v352, %v386
      %v389 = vadd.f32 %v353, %v386
      %v390 = vadd.f32 %v354, %v386
      %v391 = vadd.f32 %v355, %v386
      %v392 = vadd.f32 %v356, %v386
      %v393 = vadd.f32 %v357, %v386
      %v394 = vadd.f32 %v358, %v386
      %v395 = vadd.f32 %v359, %v386
      %v396 = vadd.f32 %v360, %v386
      %v397 = vadd.f32 %v361, %v386
      %v398 = vadd.f32 %v362, %v386
      %v399 = vadd.f32 %v363, %v386
      %v400 = vadd.f32 %v364, %v386
      %v401 = vadd.f32 %v365, %v386
      %v402 = vadd.f32 %v366, %v386
      %v403 = vadd.f32 %v367, %v386
      %v404 = vadd.f32 %v368, %v386
      %v405 = vadd.f32 %v369, %v386
      %v406 = vadd.f32 %v370, %v386
      %v407 = vadd.f32 %v371, %v386
      %v408 = vadd.f32 %v372, %v386
      %v409 = vadd.f32 %v373, %v386
      %v410 = vadd.f32 %v374, %v386
      %v411 = vadd.f32 %v375, %v386
      %v412 = vadd.f32 %v376, %v386
      %v413 = vadd.f32 %v377, %v386
      %v414 = vadd.f32 %v378, %v386
      %v415 = vadd.f32 %v379, %v386
      %v416 = vadd.f32 %v380, %v386
      %v417 = vadd.f32 %v381, %v386
      %v418 = vadd.f32 %v382, %v386
      %v419 = vadd.f32 %v383, %v386
      %420 = vst [vmem:[#allocation2] sm:$0xff] 0.0
      %421 = vst [vmem:[#allocation2 + $0x8] sm:$0xff] 0.0
      %422 = vst [vmem:[#allocation2 + $0x10] sm:$0x3] 0.0
      %423 = vst [vmem:[#allocation2 + $0x18] sm:$0xff] 0.0
      %424 = vst [vmem:[#allocation2 + $0x20] sm:$0xff] 0.0
      %425 = vst [vmem:[#allocation2 + $0x28] sm:$0x3] 0.0
      %426 = vst [vmem:[#allocation2 + $0x30] sm:$0xff] 0.0
      %427 = vst [vmem:[#allocation2 + $0x38] sm:$0xff] 0.0
      %428 = vst [vmem:[#allocation2 + $0x40] sm:$0x3] 0.0
      %429 = vst [vmem:[#allocation2 + $0x48] sm:$0xff] 0.0
      %430 = vst [vmem:[#allocation2 + $0x50] sm:$0xff] 0.0
      %431 = vst [vmem:[#allocation2 + $0x58] sm:$0x3] 0.0
      %432 = vst [vmem:[#allocation2 + $0x60] sm:$0xff] 0.0
      %433 = vst [vmem:[#allocation2 + $0x68] sm:$0xff] 0.0
      %434 = vst [vmem:[#allocation2 + $0x70] sm:$0x3] 0.0
      %435 = vst [vmem:[#allocation2 + $0x78] sm:$0xff] 0.0
      %436 = vst [vmem:[#allocation2 + $0x80] sm:$0xff] 0.0
      %437 = vst [vmem:[#allocation2 + $0x88] sm:$0x3] 0.0
      %438 = vst [vmem:[#allocation2 + $0x90] sm:$0xff] 0.0
      %439 = vst [vmem:[#allocation2 + $0x98] sm:$0xff] 0.0
      %440 = vst [vmem:[#allocation2 + $0xa0] sm:$0x3] 0.0
      %441 = vst [vmem:[#allocation2 + $0xa8] sm:$0xff] 0.0
      %442 = vst [vmem:[#allocation2 + $0xb0] sm:$0xff] 0.0
      %443 = vst [vmem:[#allocation2 + $0xb8] sm:$0x3] 0.0
      %444 = vst [vmem:[#allocation2 + $0xc0] sm:$0xff] 0.0
      %445 = vst [vmem:[#allocation2 + $0xc8] sm:$0xff] 0.0
      %446 = vst [vmem:[#allocation2 + $0xd0] sm:$0x3] 0.0
      %447 = vst [vmem:[#allocation2 + $0xd8] sm:$0xff] 0.0
      %448 = vst [vmem:[#allocation2 + $0xe0] sm:$0xff] 0.0
      %449 = vst [vmem:[#allocation2 + $0xe8] sm:$0x3] 0.0
      %450 = vst [vmem:[#allocation2 + $0xf0] sm:$0xff] 0.0
      %451 = vst [vmem:[#allocation2 + $0xf8] sm:$0xff] 0.0
      %452 = vst [vmem:[#allocation2 + $0x100] sm:$0x3] 0.0
      %453 = vst [vmem:[#allocation2 + $0x108] sm:$0xff] 0.0
      %454 = vst [vmem:[#allocation2 + $0x110] sm:$0xff] 0.0
      %455 = vst [vmem:[#allocation2 + $0x118] sm:$0x3] 0.0
      %456 = vst [vmem:[#allocation2 + $0x120] sm:$0xff] 0.0
      %457 = vst [vmem:[#allocation2 + $0x128] sm:$0xff] 0.0
      %458 = vst [vmem:[#allocation2 + $0x130] sm:$0x3] 0.0
      %459 = vst [vmem:[#allocation2 + $0x138] sm:$0xff] 0.0
      %460 = vst [vmem:[#allocation2 + $0x140] sm:$0xff] 0.0
      %461 = vst [vmem:[#allocation2 + $0x148] sm:$0x3] 0.0
      %462 = vst [vmem:[#allocation2 + $0x150] sm:$0xff] 0.0
      %463 = vst [vmem:[#allocation2 + $0x158] sm:$0xff] 0.0
      %464 = vst [vmem:[#allocation2 + $0x160] sm:$0x3] 0.0
      %465 = vst [vmem:[#allocation2 + $0x168] sm:$0xff] 0.0
      %466 = vst [vmem:[#allocation2 + $0x170] sm:$0xff] 0.0
      %467 = vst [vmem:[#allocation2 + $0x178] sm:$0x3] 0.0
      %468 = vst [vmem:[#allocation2 + $0x180] sm:$0xff] 0.0
      %469 = vst [vmem:[#allocation2 + $0x188] sm:$0xff] 0.0
      %470 = vst [vmem:[#allocation2 + $0x190] sm:$0x3] 0.0
      %471 = vst [vmem:[#allocation2 + $0x198] sm:$0xff] 0.0
      %472 = vst [vmem:[#allocation2 + $0x1a0] sm:$0xff] 0.0
      %473 = vst [vmem:[#allocation2 + $0x1a8] sm:$0x3] 0.0
      %s474 = scalar_lea.vmem [#allocation2], 24
      %475 = vst [vmem:[%s474 + $0x1] sm:$0xff] %v388
      %476 = vst [vmem:[%s474 + $0x9] sm:$0xff] %v389
      %477 = vst [vmem:[%s474 + $0x19] sm:$0xff] %v390
      %478 = vst [vmem:[%s474 + $0x21] sm:$0xff] %v391
      %479 = vst [vmem:[%s474 + $0x31] sm:$0xff] %v392
      %480 = vst [vmem:[%s474 + $0x39] sm:$0xff] %v393
      %481 = vst [vmem:[%s474 + $0x49] sm:$0xff] %v394
      %482 = vst [vmem:[%s474 + $0x51] sm:$0xff] %v395
      %483 = vst [vmem:[%s474 + $0x61] sm:$0xff] %v396
      %484 = vst [vmem:[%s474 + $0x69] sm:$0xff] %v397
      %485 = vst [vmem:[%s474 + $0x79] sm:$0xff] %v398
      %486 = vst [vmem:[%s474 + $0x81] sm:$0xff] %v399
      %487 = vst [vmem:[%s474 + $0x91] sm:$0xff] %v400
      %488 = vst [vmem:[%s474 + $0x99] sm:$0xff] %v401
      %489 = vst [vmem:[%s474 + $0xa9] sm:$0xff] %v402
      %490 = vst [vmem:[%s474 + $0xb1] sm:$0xff] %v403
      %491 = vst [vmem:[%s474 + $0xc1] sm:$0xff] %v404
      %492 = vst [vmem:[%s474 + $0xc9] sm:$0xff] %v405
      %493 = vst [vmem:[%s474 + $0xd9] sm:$0xff] %v406
      %494 = vst [vmem:[%s474 + $0xe1] sm:$0xff] %v407
      %495 = vst [vmem:[%s474 + $0xf1] sm:$0xff] %v408
      %496 = vst [vmem:[%s474 + $0xf9] sm:$0xff] %v409
      %497 = vst [vmem:[%s474 + $0x109] sm:$0xff] %v410
      %498 = vst [vmem:[%s474 + $0x111] sm:$0xff] %v411
      %499 = vst [vmem:[%s474 + $0x121] sm:$0xff] %v412
      %500 = vst [vmem:[%s474 + $0x129] sm:$0xff] %v413
      %501 = vst [vmem:[%s474 + $0x139] sm:$0xff] %v414
      %502 = vst [vmem:[%s474 + $0x141] sm:$0xff] %v415
      %503 = vst [vmem:[%s474 + $0x151] sm:$0xff] %v416
      %504 = vst [vmem:[%s474 + $0x159] sm:$0xff] %v417
      %505 = vst [vmem:[%s474 + $0x169] sm:$0xff] %v418
      %506 = vst [vmem:[%s474 + $0x171] sm:$0xff] %v419
      %v507 = vld [vmem:[#allocation2] sm:$0xff]
      %v508 = vld [vmem:[#allocation2 + $0x8] sm:$0xff]
      %v509 = vld [vmem:[#allocation2 + $0x18] sm:$0xff]
      %v510 = vld [vmem:[#allocation2 + $0x20] sm:$0xff]
      %v511 = vld [vmem:[#allocation2 + $0x30] sm:$0xff]
      %v512 = vld [vmem:[#allocation2 + $0x38] sm:$0xff]
      %v513 = vld [vmem:[#allocation2 + $0x48] sm:$0xff]
      %v514 = vld [vmem:[#allocation2 + $0x50] sm:$0xff]
      %v515 = vld [vmem:[#allocation2 + $0x60] sm:$0xff]
      %v516 = vld [vmem:[#allocation2 + $0x68] sm:$0xff]
      %v517 = vld [vmem:[#allocation2 + $0x78] sm:$0xff]
      %v518 = vld [vmem:[#allocation2 + $0x80] sm:$0xff]
      %v519 = vld [vmem:[#allocation2 + $0x90] sm:$0xff]
      %v520 = vld [vmem:[#allocation2 + $0x98] sm:$0xff]
      %v521 = vld [vmem:[#allocation2 + $0xa8] sm:$0xff]
      %v522 = vld [vmem:[#allocation2 + $0xb0] sm:$0xff]
      %v523 = vld [vmem:[#allocation2 + $0xc0] sm:$0xff]
      %v524 = vld [vmem:[#allocation2 + $0xc8] sm:$0xff]
      %v525 = vld [vmem:[#allocation2 + $0xd8] sm:$0xff]
      %v526 = vld [vmem:[#allocation2 + $0xe0] sm:$0xff]
      %v527 = vld [vmem:[#allocation2 + $0xf0] sm:$0xff]
      %v528 = vld [vmem:[#allocation2 + $0xf8] sm:$0xff]
      %v529 = vld [vmem:[#allocation2 + $0x108] sm:$0xff]
      %v530 = vld [vmem:[#allocation2 + $0x110] sm:$0xff]
      %v531 = vld [vmem:[#allocation2 + $0x120] sm:$0xff]
      %v532 = vld [vmem:[#allocation2 + $0x128] sm:$0xff]
      %v533 = vld [vmem:[#allocation2 + $0x138] sm:$0xff]
      %v534 = vld [vmem:[#allocation2 + $0x140] sm:$0xff]
      %v535 = vld [vmem:[#allocation2 + $0x150] sm:$0xff]
      %v536 = vld [vmem:[#allocation2 + $0x158] sm:$0xff]
      %v537 = vld [vmem:[#allocation2 + $0x168] sm:$0xff]
      %v538 = vld [vmem:[#allocation2 + $0x170] sm:$0xff]
      %v539 = vld [vmem:[#allocation2 + $0x1] sm:$0xff]
      %v540 = vld [vmem:[#allocation2 + $0x9] sm:$0xff]
      %v541 = vld [vmem:[#allocation2 + $0x19] sm:$0xff]
      %v542 = vld [vmem:[#allocation2 + $0x21] sm:$0xff]
      %v543 = vld [vmem:[#allocation2 + $0x31] sm:$0xff]
      %v544 = vld [vmem:[#allocation2 + $0x39] sm:$0xff]
      %v545 = vld [vmem:[#allocation2 + $0x49] sm:$0xff]
      %v546 = vld [vmem:[#allocation2 + $0x51] sm:$0xff]
      %v547 = vld [vmem:[#allocation2 + $0x61] sm:$0xff]
      %v548 = vld [vmem:[#allocation2 + $0x69] sm:$0xff]
      %v549 = vld [vmem:[#allocation2 + $0x79] sm:$0xff]
      %v550 = vld [vmem:[#allocation2 + $0x81] sm:$0xff]
      %v551 = vld [vmem:[#allocation2 + $0x91] sm:$0xff]
      %v552 = vld [vmem:[#allocation2 + $0x99] sm:$0xff]
      %v553 = vld [vmem:[#allocation2 + $0xa9] sm:$0xff]
      %v554 = vld [vmem:[#allocation2 + $0xb1] sm:$0xff]
      %v555 = vld [vmem:[#allocation2 + $0xc1] sm:$0xff]
      %v556 = vld [vmem:[#allocation2 + $0xc9] sm:$0xff]
      %v557 = vld [vmem:[#allocation2 + $0xd9] sm:$0xff]
      %v558 = vld [vmem:[#allocation2 + $0xe1] sm:$0xff]
      %v559 = vld [vmem:[#allocation2 + $0xf1] sm:$0xff]
      %v560 = vld [vmem:[#allocation2 + $0xf9] sm:$0xff]
      %v561 = vld [vmem:[#allocation2 + $0x109] sm:$0xff]
      %v562 = vld [vmem:[#allocation2 + $0x111] sm:$0xff]
      %v563 = vld [vmem:[#allocation2 + $0x121] sm:$0xff]
      %v564 = vld [vmem:[#allocation2 + $0x129] sm:$0xff]
      %v565 = vld [vmem:[#allocation2 + $0x139] sm:$0xff]
      %v566 = vld [vmem:[#allocation2 + $0x141] sm:$0xff]
      %v567 = vld [vmem:[#allocation2 + $0x151] sm:$0xff]
      %v568 = vld [vmem:[#allocation2 + $0x159] sm:$0xff]
      %v569 = vld [vmem:[#allocation2 + $0x169] sm:$0xff]
      %v570 = vld [vmem:[#allocation2 + $0x171] sm:$0xff]
      %v571 = vld [vmem:[#allocation2 + $0x2] sm:$0xff]
      %v572 = vld [vmem:[#allocation2 + $0xa] sm:$0xff]
      %v573 = vld [vmem:[#allocation2 + $0x1a] sm:$0xff]
      %v574 = vld [vmem:[#allocation2 + $0x22] sm:$0xff]
      %v575 = vld [vmem:[#allocation2 + $0x32] sm:$0xff]
      %v576 = vld [vmem:[#allocation2 + $0x3a] sm:$0xff]
      %v577 = vld [vmem:[#allocation2 + $0x4a] sm:$0xff]
      %v578 = vld [vmem:[#allocation2 + $0x52] sm:$0xff]
      %v579 = vld [vmem:[#allocation2 + $0x62] sm:$0xff]
      %v580 = vld [vmem:[#allocation2 + $0x6a] sm:$0xff]
      %v581 = vld [vmem:[#allocation2 + $0x7a] sm:$0xff]
      %v582 = vld [vmem:[#allocation2 + $0x82] sm:$0xff]
      %v583 = vld [vmem:[#allocation2 + $0x92] sm:$0xff]
      %v584 = vld [vmem:[#allocation2 + $0x9a] sm:$0xff]
      %v585 = vld [vmem:[#allocation2 + $0xaa] sm:$0xff]
      %v586 = vld [vmem:[#allocation2 + $0xb2] sm:$0xff]
      %v587 = vld [vmem:[#allocation2 + $0xc2] sm:$0xff]
      %v588 = vld [vmem:[#allocation2 + $0xca] sm:$0xff]
      %v589 = vld [vmem:[#allocation2 + $0xda] sm:$0xff]
      %v590 = vld [vmem:[#allocation2 + $0xe2] sm:$0xff]
      %v591 = vld [vmem:[#allocation2 + $0xf2] sm:$0xff]
      %v592 = vld [vmem:[#allocation2 + $0xfa] sm:$0xff]
      %v593 = vld [vmem:[#allocation2 + $0x10a] sm:$0xff]
      %v594 = vld [vmem:[#allocation2 + $0x112] sm:$0xff]
      %v595 = vld [vmem:[#allocation2 + $0x122] sm:$0xff]
      %v596 = vld [vmem:[#allocation2 + $0x12a] sm:$0xff]
      %v597 = vld [vmem:[#allocation2 + $0x13a] sm:$0xff]
      %v598 = vld [vmem:[#allocation2 + $0x142] sm:$0xff]
      %v599 = vld [vmem:[#allocation2 + $0x152] sm:$0xff]
      %v600 = vld [vmem:[#allocation2 + $0x15a] sm:$0xff]
      %v601 = vld [vmem:[#allocation2 + $0x16a] sm:$0xff]
      %v602 = vld [vmem:[#allocation2 + $0x172] sm:$0xff]
      %v603 = vld [vmem:[%s4] sm:$0xff]
      %v604 = vld [vmem:[%s4 + $0x8] sm:$0xff]
      %v605 = vld [vmem:[%s4 + $0x10] sm:$0xff]
      %v606 = vld [vmem:[%s4 + $0x18] sm:$0xff]
      %v607 = vld [vmem:[%s4 + $0x20] sm:$0xff]
      %v608 = vld [vmem:[%s4 + $0x28] sm:$0xff]
      %v609 = vld [vmem:[%s4 + $0x30] sm:$0xff]
      %v610 = vld [vmem:[%s4 + $0x38] sm:$0xff]
      %v611 = vld [vmem:[%s4 + $0x40] sm:$0xff]
      %v612 = vld [vmem:[%s4 + $0x48] sm:$0xff]
      %v613 = vld [vmem:[%s4 + $0x50] sm:$0xff]
      %v614 = vld [vmem:[%s4 + $0x58] sm:$0xff]
      %v615 = vld [vmem:[%s4 + $0x60] sm:$0xff]
      %v616 = vld [vmem:[%s4 + $0x68] sm:$0xff]
      %v617 = vld [vmem:[%s4 + $0x70] sm:$0xff]
      %v618 = vld [vmem:[%s4 + $0x78] sm:$0xff]
      %v619 = vld [vmem:[%s4 + $0x80] sm:$0xff]
      %v620 = vld [vmem:[%s4 + $0x88] sm:$0xff]
      %v621 = vld [vmem:[%s4 + $0x90] sm:$0xff]
      %v622 = vld [vmem:[%s4 + $0x98] sm:$0xff]
      %v623 = vld [vmem:[%s4 + $0xa0] sm:$0xff]
      %v624 = vld [vmem:[%s4 + $0xa8] sm:$0xff]
      %v625 = vld [vmem:[%s4 + $0xb0] sm:$0xff]
      %v626 = vld [vmem:[%s4 + $0xb8] sm:$0xff]
      %v627 = vld [vmem:[%s4 + $0xc0] sm:$0xff]
      %v628 = vld [vmem:[%s4 + $0xc8] sm:$0xff]
      %v629 = vld [vmem:[%s4 + $0xd0] sm:$0xff]
      %v630 = vld [vmem:[%s4 + $0xd8] sm:$0xff]
      %v631 = vld [vmem:[%s4 + $0xe0] sm:$0xff]
      %v632 = vld [vmem:[%s4 + $0xe8] sm:$0xff]
      %v633 = vld [vmem:[%s4 + $0xf0] sm:$0xff]
      %v634 = vld [vmem:[%s4 + $0xf8] sm:$0xff]
      %v635 = vld [vmem:[%s4 + $0x100] sm:$0xff]
      %v636 = vld [vmem:[%s4 + $0x108] sm:$0xff]
      %v637 = vld [vmem:[%s4 + $0x110] sm:$0xff]
      %v638 = vld [vmem:[%s4 + $0x118] sm:$0xff]
      %v639 = vld [vmem:[%s4 + $0x120] sm:$0xff]
      %v640 = vld [vmem:[%s4 + $0x128] sm:$0xff]
      %v641 = vld [vmem:[%s4 + $0x130] sm:$0xff]
      %v642 = vld [vmem:[%s4 + $0x138] sm:$0xff]
      %v643 = vld [vmem:[%s4 + $0x140] sm:$0xff]
      %v644 = vld [vmem:[%s4 + $0x148] sm:$0xff]
      %v645 = vld [vmem:[%s4 + $0x150] sm:$0xff]
      %v646 = vld [vmem:[%s4 + $0x158] sm:$0xff]
      %v647 = vld [vmem:[%s4 + $0x160] sm:$0xff]
      %v648 = vld [vmem:[%s4 + $0x168] sm:$0xff]
      %v649 = vld [vmem:[%s4 + $0x170] sm:$0xff]
      %v650 = vld [vmem:[%s4 + $0x178] sm:$0xff]
      %v651 = vld [vmem:[%s474] sm:$0xff]
      %v652 = vld [vmem:[%s474 + $0x8] sm:$0xff]
      %v653 = vld [vmem:[%s474 + $0x18] sm:$0xff]
      %v654 = vld [vmem:[%s474 + $0x20] sm:$0xff]
      %v655 = vld [vmem:[%s474 + $0x30] sm:$0xff]
      %v656 = vld [vmem:[%s474 + $0x38] sm:$0xff]
      %v657 = vld [vmem:[%s474 + $0x48] sm:$0xff]
      %v658 = vld [vmem:[%s474 + $0x50] sm:$0xff]
      %v659 = vld [vmem:[%s474 + $0x60] sm:$0xff]
      %v660 = vld [vmem:[%s474 + $0x68] sm:$0xff]
      %v661 = vld [vmem:[%s474 + $0x78] sm:$0xff]
      %v662 = vld [vmem:[%s474 + $0x80] sm:$0xff]
      %v663 = vld [vmem:[%s474 + $0x90] sm:$0xff]
      %v664 = vld [vmem:[%s474 + $0x98] sm:$0xff]
      %v665 = vld [vmem:[%s474 + $0xa8] sm:$0xff]
      %v666 = vld [vmem:[%s474 + $0xb0] sm:$0xff]
      %v667 = vld [vmem:[%s474 + $0xc0] sm:$0xff]
      %v668 = vld [vmem:[%s474 + $0xc8] sm:$0xff]
      %v669 = vld [vmem:[%s474 + $0xd8] sm:$0xff]
      %v670 = vld [vmem:[%s474 + $0xe0] sm:$0xff]
      %v671 = vld [vmem:[%s474 + $0xf0] sm:$0xff]
      %v672 = vld [vmem:[%s474 + $0xf8] sm:$0xff]
      %v673 = vld [vmem:[%s474 + $0x108] sm:$0xff]
      %v674 = vld [vmem:[%s474 + $0x110] sm:$0xff]
      %v675 = vld [vmem:[%s474 + $0x120] sm:$0xff]
      %v676 = vld [vmem:[%s474 + $0x128] sm:$0xff]
      %v677 = vld [vmem:[%s474 + $0x138] sm:$0xff]
      %v678 = vld [vmem:[%s474 + $0x140] sm:$0xff]
      %v679 = vld [vmem:[%s474 + $0x150] sm:$0xff]
      %v680 = vld [vmem:[%s474 + $0x158] sm:$0xff]
      %v681 = vld [vmem:[%s474 + $0x168] sm:$0xff]
      %v682 = vld [vmem:[%s474 + $0x170] sm:$0xff]
      %v683 = vld [vmem:[%s474 + $0x1] sm:$0xff]
      %v684 = vld [vmem:[%s474 + $0x9] sm:$0xff]
      %v685 = vld [vmem:[%s474 + $0x19] sm:$0xff]
      %v686 = vld [vmem:[%s474 + $0x21] sm:$0xff]
      %v687 = vld [vmem:[%s474 + $0x31] sm:$0xff]
      %v688 = vld [vmem:[%s474 + $0x39] sm:$0xff]
      %v689 = vld [vmem:[%s474 + $0x49] sm:$0xff]
      %v690 = vld [vmem:[%s474 + $0x51] sm:$0xff]
      %v691 = vld [vmem:[%s474 + $0x61] sm:$0xff]
      %v692 = vld [vmem:[%s474 + $0x69] sm:$0xff]
      %v693 = vld [vmem:[%s474 + $0x79] sm:$0xff]
      %v694 = vld [vmem:[%s474 + $0x81] sm:$0xff]
      %v695 = vld [vmem:[%s474 + $0x91] sm:$0xff]
      %v696 = vld [vmem:[%s474 + $0x99] sm:$0xff]
      %v697 = vld [vmem:[%s474 + $0xa9] sm:$0xff]
      %v698 = vld [vmem:[%s474 + $0xb1] sm:$0xff]
      %v699 = vld [vmem:[%s474 + $0xc1] sm:$0xff]
      %v700 = vld [vmem:[%s474 + $0xc9] sm:$0xff]
      %v701 = vld [vmem:[%s474 + $0xd9] sm:$0xff]
      %v702 = vld [vmem:[%s474 + $0xe1] sm:$0xff]
      %v703 = vld [vmem:[%s474 + $0xf1] sm:$0xff]
      %v704 = vld [vmem:[%s474 + $0xf9] sm:$0xff]
      %v705 = vld [vmem:[%s474 + $0x109] sm:$0xff]
      %v706 = vld [vmem:[%s474 + $0x111] sm:$0xff]
      %v707 = vld [vmem:[%s474 + $0x121] sm:$0xff]
      %v708 = vld [vmem:[%s474 + $0x129] sm:$0xff]
      %v709 = vld [vmem:[%s474 + $0x139] sm:$0xff]
      %v710 = vld [vmem:[%s474 + $0x141] sm:$0xff]
      %v711 = vld [vmem:[%s474 + $0x151] sm:$0xff]
      %v712 = vld [vmem:[%s474 + $0x159] sm:$0xff]
      %v713 = vld [vmem:[%s474 + $0x169] sm:$0xff]
      %v714 = vld [vmem:[%s474 + $0x171] sm:$0xff]
      %v715 = vld [vmem:[%s474 + $0x2] sm:$0xff]
      %v716 = vld [vmem:[%s474 + $0xa] sm:$0xff]
      %v717 = vld [vmem:[%s474 + $0x1a] sm:$0xff]
      %v718 = vld [vmem:[%s474 + $0x22] sm:$0xff]
      %v719 = vld [vmem:[%s474 + $0x32] sm:$0xff]
      %v720 = vld [vmem:[%s474 + $0x3a] sm:$0xff]
      %v721 = vld [vmem:[%s474 + $0x4a] sm:$0xff]
      %v722 = vld [vmem:[%s474 + $0x52] sm:$0xff]
      %v723 = vld [vmem:[%s474 + $0x62] sm:$0xff]
      %v724 = vld [vmem:[%s474 + $0x6a] sm:$0xff]
      %v725 = vld [vmem:[%s474 + $0x7a] sm:$0xff]
      %v726 = vld [vmem:[%s474 + $0x82] sm:$0xff]
      %v727 = vld [vmem:[%s474 + $0x92] sm:$0xff]
      %v728 = vld [vmem:[%s474 + $0x9a] sm:$0xff]
      %v729 = vld [vmem:[%s474 + $0xaa] sm:$0xff]
      %v730 = vld [vmem:[%s474 + $0xb2] sm:$0xff]
      %v731 = vld [vmem:[%s474 + $0xc2] sm:$0xff]
      %v732 = vld [vmem:[%s474 + $0xca] sm:$0xff]
      %v733 = vld [vmem:[%s474 + $0xda] sm:$0xff]
      %v734 = vld [vmem:[%s474 + $0xe2] sm:$0xff]
      %v735 = vld [vmem:[%s474 + $0xf2] sm:$0xff]
      %v736 = vld [vmem:[%s474 + $0xfa] sm:$0xff]
      %v737 = vld [vmem:[%s474 + $0x10a] sm:$0xff]
      %v738 = vld [vmem:[%s474 + $0x112] sm:$0xff]
      %v739 = vld [vmem:[%s474 + $0x122] sm:$0xff]
      %v740 = vld [vmem:[%s474 + $0x12a] sm:$0xff]
      %v741 = vld [vmem:[%s474 + $0x13a] sm:$0xff]
      %v742 = vld [vmem:[%s474 + $0x142] sm:$0xff]
      %v743 = vld [vmem:[%s474 + $0x152] sm:$0xff]
      %v744 = vld [vmem:[%s474 + $0x15a] sm:$0xff]
      %v745 = vld [vmem:[%s474 + $0x16a] sm:$0xff]
      %v746 = vld [vmem:[%s474 + $0x172] sm:$0xff]
      %s747 = scalar_lea.vmem %s4, 384
      %v748 = vld [vmem:[%s747] sm:$0xff]
      %v749 = vld [vmem:[%s747 + $0x8] sm:$0xff]
      %v750 = vld [vmem:[%s747 + $0x10] sm:$0xff]
      %v751 = vld [vmem:[%s747 + $0x18] sm:$0xff]
      %v752 = vld [vmem:[%s747 + $0x20] sm:$0xff]
      %v753 = vld [vmem:[%s747 + $0x28] sm:$0xff]
      %v754 = vld [vmem:[%s747 + $0x30] sm:$0xff]
      %v755 = vld [vmem:[%s747 + $0x38] sm:$0xff]
      %v756 = vld [vmem:[%s747 + $0x40] sm:$0xff]
      %v757 = vld [vmem:[%s747 + $0x48] sm:$0xff]
      %v758 = vld [vmem:[%s747 + $0x50] sm:$0xff]
      %v759 = vld [vmem:[%s747 + $0x58] sm:$0xff]
      %v760 = vld [vmem:[%s747 + $0x60] sm:$0xff]
      %v761 = vld [vmem:[%s747 + $0x68] sm:$0xff]
      %v762 = vld [vmem:[%s747 + $0x70] sm:$0xff]
      %v763 = vld [vmem:[%s747 + $0x78] sm:$0xff]
      %v764 = vld [vmem:[%s747 + $0x80] sm:$0xff]
      %v765 = vld [vmem:[%s747 + $0x88] sm:$0xff]
      %v766 = vld [vmem:[%s747 + $0x90] sm:$0xff]
      %v767 = vld [vmem:[%s747 + $0x98] sm:$0xff]
      %v768 = vld [vmem:[%s747 + $0xa0] sm:$0xff]
      %v769 = vld [vmem:[%s747 + $0xa8] sm:$0xff]
      %v770 = vld [vmem:[%s747 + $0xb0] sm:$0xff]
      %v771 = vld [vmem:[%s747 + $0xb8] sm:$0xff]
      %v772 = vld [vmem:[%s747 + $0xc0] sm:$0xff]
      %v773 = vld [vmem:[%s747 + $0xc8] sm:$0xff]
      %v774 = vld [vmem:[%s747 + $0xd0] sm:$0xff]
      %v775 = vld [vmem:[%s747 + $0xd8] sm:$0xff]
      %v776 = vld [vmem:[%s747 + $0xe0] sm:$0xff]
      %v777 = vld [vmem:[%s747 + $0xe8] sm:$0xff]
      %v778 = vld [vmem:[%s747 + $0xf0] sm:$0xff]
      %v779 = vld [vmem:[%s747 + $0xf8] sm:$0xff]
      %v780 = vld [vmem:[%s747 + $0x100] sm:$0xff]
      %v781 = vld [vmem:[%s747 + $0x108] sm:$0xff]
      %v782 = vld [vmem:[%s747 + $0x110] sm:$0xff]
      %v783 = vld [vmem:[%s747 + $0x118] sm:$0xff]
      %v784 = vld [vmem:[%s747 + $0x120] sm:$0xff]
      %v785 = vld [vmem:[%s747 + $0x128] sm:$0xff]
      %v786 = vld [vmem:[%s747 + $0x130] sm:$0xff]
      %v787 = vld [vmem:[%s747 + $0x138] sm:$0xff]
      %v788 = vld [vmem:[%s747 + $0x140] sm:$0xff]
      %v789 = vld [vmem:[%s747 + $0x148] sm:$0xff]
      %v790 = vld [vmem:[%s747 + $0x150] sm:$0xff]
      %v791 = vld [vmem:[%s747 + $0x158] sm:$0xff]
      %v792 = vld [vmem:[%s747 + $0x160] sm:$0xff]
      %v793 = vld [vmem:[%s747 + $0x168] sm:$0xff]
      %v794 = vld [vmem:[%s747 + $0x170] sm:$0xff]
      %v795 = vld [vmem:[%s747 + $0x178] sm:$0xff]
      %796 = vmatpush.msra.mxu0 %v763
      %797 = vmatpush.msra.mxu0 %v762
      %798 = vmatpush.msra.mxu0 %v761
      %799 = vmatpush.msra.mxu0 %v760
      %800 = vmatpush.msra.mxu0 %v759
      %801 = vmatpush.msra.mxu0 %v758
      %802 = vmatpush.msra.mxu0 %v757
      %803 = vmatpush.msra.mxu0 %v756
      %804 = vmatpush.msra.mxu0 %v755
      %805 = vmatpush.msra.mxu0 %v754
      %806 = vmatpush.msra.mxu0 %v753
      %807 = vmatpush.msra.mxu0 %v752
      %808 = vmatpush.msra.mxu0 %v751
      %809 = vmatpush.msra.mxu0 %v750
      %810 = vmatpush.msra.mxu0 %v749
      %811 = vmatpush.msra.mxu0 %v748
      %812 = vmatmul.f32.gmra.mxu0 %v651
      %v813 = vpop.f32.mrf.mxu0
      %v814 = vadd.f32 0.0, %v813
      %815 = vmatmul.f32.gmra.mxu0 %v652
      %v816 = vpop.f32.mrf.mxu0
      %v817 = vadd.f32 0.0, %v816
      %818 = vmatmul.f32.gmra.mxu0 %v653
      %v819 = vpop.f32.mrf.mxu0
      %v820 = vadd.f32 0.0, %v819
      %821 = vmatmul.f32.gmra.mxu0 %v654
      %v822 = vpop.f32.mrf.mxu0
      %v823 = vadd.f32 0.0, %v822
      %824 = vmatmul.f32.gmra.mxu0 %v655
      %v825 = vpop.f32.mrf.mxu0
      %v826 = vadd.f32 0.0, %v825
      %827 = vmatmul.f32.gmra.mxu0 %v656
      %v828 = vpop.f32.mrf.mxu0
      %v829 = vadd.f32 0.0, %v828
      %830 = vmatmul.f32.gmra.mxu0 %v657
      %v831 = vpop.f32.mrf.mxu0
      %v832 = vadd.f32 0.0, %v831
      %833 = vmatmul.f32.gmra.mxu0 %v658
      %v834 = vpop.f32.mrf.mxu0
      %v835 = vadd.f32 0.0, %v834
      %836 = vmatmul.f32.gmra.mxu0 %v659
      %v837 = vpop.f32.mrf.mxu0
      %v838 = vadd.f32 0.0, %v837
      %839 = vmatmul.f32.gmra.mxu0 %v660
      %v840 = vpop.f32.mrf.mxu0
      %v841 = vadd.f32 0.0, %v840
      %842 = vmatmul.f32.gmra.mxu0 %v661
      %v843 = vpop.f32.mrf.mxu0
      %v844 = vadd.f32 0.0, %v843
      %845 = vmatmul.f32.gmra.mxu0 %v662
      %v846 = vpop.f32.mrf.mxu0
      %v847 = vadd.f32 0.0, %v846
      %848 = vmatmul.f32.gmra.mxu0 %v663
      %v849 = vpop.f32.mrf.mxu0
      %v850 = vadd.f32 0.0, %v849
      %851 = vmatmul.f32.gmra.mxu0 %v664
      %v852 = vpop.f32.mrf.mxu0
      %v853 = vadd.f32 0.0, %v852
      %854 = vmatmul.f32.gmra.mxu0 %v665
      %v855 = vpop.f32.mrf.mxu0
      %v856 = vadd.f32 0.0, %v855
      %857 = vmatmul.f32.gmra.mxu0 %v666
      %v858 = vpop.f32.mrf.mxu0
      %v859 = vadd.f32 0.0, %v858
      %860 = vmatmul.f32.gmra.mxu0 %v667
      %v861 = vpop.f32.mrf.mxu0
      %v862 = vadd.f32 0.0, %v861
      %863 = vmatmul.f32.gmra.mxu0 %v668
      %v864 = vpop.f32.mrf.mxu0
      %v865 = vadd.f32 0.0, %v864
      %866 = vmatmul.f32.gmra.mxu0 %v669
      %v867 = vpop.f32.mrf.mxu0
      %v868 = vadd.f32 0.0, %v867
      %869 = vmatmul.f32.gmra.mxu0 %v670
      %v870 = vpop.f32.mrf.mxu0
      %v871 = vadd.f32 0.0, %v870
      %872 = vmatmul.f32.gmra.mxu0 %v671
      %v873 = vpop.f32.mrf.mxu0
      %v874 = vadd.f32 0.0, %v873
      %875 = vmatmul.f32.gmra.mxu0 %v672
      %v876 = vpop.f32.mrf.mxu0
      %v877 = vadd.f32 0.0, %v876
      %878 = vmatmul.f32.gmra.mxu0 %v673
      %v879 = vpop.f32.mrf.mxu0
      %v880 = vadd.f32 0.0, %v879
      %881 = vmatmul.f32.gmra.mxu0 %v674
      %v882 = vpop.f32.mrf.mxu0
      %v883 = vadd.f32 0.0, %v882
      %884 = vmatmul.f32.gmra.mxu0 %v675
      %v885 = vpop.f32.mrf.mxu0
      %v886 = vadd.f32 0.0, %v885
      %887 = vmatmul.f32.gmra.mxu0 %v676
      %v888 = vpop.f32.mrf.mxu0
      %v889 = vadd.f32 0.0, %v888
      %890 = vmatmul.f32.gmra.mxu0 %v677
      %v891 = vpop.f32.mrf.mxu0
      %v892 = vadd.f32 0.0, %v891
      %893 = vmatmul.f32.gmra.mxu0 %v678
      %v894 = vpop.f32.mrf.mxu0
      %v895 = vadd.f32 0.0, %v894
      %896 = vmatmul.f32.gmra.mxu0 %v679
      %v897 = vpop.f32.mrf.mxu0
      %v898 = vadd.f32 0.0, %v897
      %899 = vmatmul.f32.gmra.mxu0 %v680
      %v900 = vpop.f32.mrf.mxu0
      %v901 = vadd.f32 0.0, %v900
      %902 = vmatmul.f32.gmra.mxu0 %v681
      %v903 = vpop.f32.mrf.mxu0
      %v904 = vadd.f32 0.0, %v903
      %905 = vmatmul.f32.gmra.mxu0 %v682
      %v906 = vpop.f32.mrf.mxu0
      %v907 = vadd.f32 0.0, %v906
      %908 = vdwg.mxu0
      %909 = vmatpush.msra.mxu0 %v779
      %910 = vmatpush.msra.mxu0 %v778
      %911 = vmatpush.msra.mxu0 %v777
      %912 = vmatpush.msra.mxu0 %v776
      %913 = vmatpush.msra.mxu0 %v775
      %914 = vmatpush.msra.mxu0 %v774
      %915 = vmatpush.msra.mxu0 %v773
      %916 = vmatpush.msra.mxu0 %v772
      %917 = vmatpush.msra.mxu0 %v771
      %918 = vmatpush.msra.mxu0 %v770
      %919 = vmatpush.msra.mxu0 %v769
      %920 = vmatpush.msra.mxu0 %v768
      %921 = vmatpush.msra.mxu0 %v767
      %922 = vmatpush.msra.mxu0 %v766
      %923 = vmatpush.msra.mxu0 %v765
      %924 = vmatpush.msra.mxu0 %v764
      %925 = vmatmul.f32.gmra.mxu0 %v683
      %v926 = vpop.f32.mrf.mxu0
      %v927 = vadd.f32 %v814, %v926
      %928 = vmatmul.f32.gmra.mxu0 %v684
      %v929 = vpop.f32.mrf.mxu0
      %v930 = vadd.f32 %v817, %v929
      %931 = vmatmul.f32.gmra.mxu0 %v685
      %v932 = vpop.f32.mrf.mxu0
      %v933 = vadd.f32 %v820, %v932
      %934 = vmatmul.f32.gmra.mxu0 %v686
      %v935 = vpop.f32.mrf.mxu0
      %v936 = vadd.f32 %v823, %v935
      %937 = vmatmul.f32.gmra.mxu0 %v687
      %v938 = vpop.f32.mrf.mxu0
      %v939 = vadd.f32 %v826, %v938
      %940 = vmatmul.f32.gmra.mxu0 %v688
      %v941 = vpop.f32.mrf.mxu0
      %v942 = vadd.f32 %v829, %v941
      %943 = vmatmul.f32.gmra.mxu0 %v689
      %v944 = vpop.f32.mrf.mxu0
      %v945 = vadd.f32 %v832, %v944
      %946 = vmatmul.f32.gmra.mxu0 %v690
      %v947 = vpop.f32.mrf.mxu0
      %v948 = vadd.f32 %v835, %v947
      %949 = vmatmul.f32.gmra.mxu0 %v691
      %v950 = vpop.f32.mrf.mxu0
      %v951 = vadd.f32 %v838, %v950
      %952 = vmatmul.f32.gmra.mxu0 %v692
      %v953 = vpop.f32.mrf.mxu0
      %v954 = vadd.f32 %v841, %v953
      %955 = vmatmul.f32.gmra.mxu0 %v693
      %v956 = vpop.f32.mrf.mxu0
      %v957 = vadd.f32 %v844, %v956
      %958 = vmatmul.f32.gmra.mxu0 %v694
      %v959 = vpop.f32.mrf.mxu0
      %v960 = vadd.f32 %v847, %v959
      %961 = vmatmul.f32.gmra.mxu0 %v695
      %v962 = vpop.f32.mrf.mxu0
      %v963 = vadd.f32 %v850, %v962
      %964 = vmatmul.f32.gmra.mxu0 %v696
      %v965 = vpop.f32.mrf.mxu0
      %v966 = vadd.f32 %v853, %v965
      %967 = vmatmul.f32.gmra.mxu0 %v697
      %v968 = vpop.f32.mrf.mxu0
      %v969 = vadd.f32 %v856, %v968
      %970 = vmatmul.f32.gmra.mxu0 %v698
      %v971 = vpop.f32.mrf.mxu0
      %v972 = vadd.f32 %v859, %v971
      %973 = vmatmul.f32.gmra.mxu0 %v699
      %v974 = vpop.f32.mrf.mxu0
      %v975 = vadd.f32 %v862, %v974
      %976 = vmatmul.f32.gmra.mxu0 %v700
      %v977 = vpop.f32.mrf.mxu0
      %v978 = vadd.f32 %v865, %v977
      %979 = vmatmul.f32.gmra.mxu0 %v701
      %v980 = vpop.f32.mrf.mxu0
      %v981 = vadd.f32 %v868, %v980
      %982 = vmatmul.f32.gmra.mxu0 %v702
      %v983 = vpop.f32.mrf.mxu0
      %v984 = vadd.f32 %v871, %v983
      %985 = vmatmul.f32.gmra.mxu0 %v703
      %v986 = vpop.f32.mrf.mxu0
      %v987 = vadd.f32 %v874, %v986
      %988 = vmatmul.f32.gmra.mxu0 %v704
      %v989 = vpop.f32.mrf.mxu0
      %v990 = vadd.f32 %v877, %v989
      %991 = vmatmul.f32.gmra.mxu0 %v705
      %v992 = vpop.f32.mrf.mxu0
      %v993 = vadd.f32 %v880, %v992
      %994 = vmatmul.f32.gmra.mxu0 %v706
      %v995 = vpop.f32.mrf.mxu0
      %v996 = vadd.f32 %v883, %v995
      %997 = vmatmul.f32.gmra.mxu0 %v707
      %v998 = vpop.f32.mrf.mxu0
      %v999 = vadd.f32 %v886, %v998
      %1000 = vmatmul.f32.gmra.mxu0 %v708
      %v1001 = vpop.f32.mrf.mxu0
      %v1002 = vadd.f32 %v889, %v1001
      %1003 = vmatmul.f32.gmra.mxu0 %v709
      %v1004 = vpop.f32.mrf.mxu0
      %v1005 = vadd.f32 %v892, %v1004
      %1006 = vmatmul.f32.gmra.mxu0 %v710
      %v1007 = vpop.f32.mrf.mxu0
      %v1008 = vadd.f32 %v895, %v1007
      %1009 = vmatmul.f32.gmra.mxu0 %v711
      %v1010 = vpop.f32.mrf.mxu0
      %v1011 = vadd.f32 %v898, %v1010
      %1012 = vmatmul.f32.gmra.mxu0 %v712
      %v1013 = vpop.f32.mrf.mxu0
      %v1014 = vadd.f32 %v901, %v1013
      %1015 = vmatmul.f32.gmra.mxu0 %v713
      %v1016 = vpop.f32.mrf.mxu0
      %v1017 = vadd.f32 %v904, %v1016
      %1018 = vmatmul.f32.gmra.mxu0 %v714
      %v1019 = vpop.f32.mrf.mxu0
      %v1020 = vadd.f32 %v907, %v1019
      %1021 = vdwg.mxu0
      %1022 = vmatpush.msra.mxu0 %v795
      %1023 = vmatpush.msra.mxu0 %v794
      %1024 = vmatpush.msra.mxu0 %v793
      %1025 = vmatpush.msra.mxu0 %v792
      %1026 = vmatpush.msra.mxu0 %v791
      %1027 = vmatpush.msra.mxu0 %v790
      %1028 = vmatpush.msra.mxu0 %v789
      %1029 = vmatpush.msra.mxu0 %v788
      %1030 = vmatpush.msra.mxu0 %v787
      %1031 = vmatpush.msra.mxu0 %v786
      %1032 = vmatpush.msra.mxu0 %v785
      %1033 = vmatpush.msra.mxu0 %v784
      %1034 = vmatpush.msra.mxu0 %v783
      %1035 = vmatpush.msra.mxu0 %v782
      %1036 = vmatpush.msra.mxu0 %v781
      %1037 = vmatpush.msra.mxu0 %v780
      %1038 = vmatmul.f32.gmra.mxu0 %v715
      %v1039 = vpop.f32.mrf.mxu0
      %v1040 = vadd.f32 %v927, %v1039
      %1041 = vmatmul.f32.gmra.mxu0 %v716
      %v1042 = vpop.f32.mrf.mxu0
      %v1043 = vadd.f32 %v930, %v1042
      %1044 = vmatmul.f32.gmra.mxu0 %v717
      %v1045 = vpop.f32.mrf.mxu0
      %v1046 = vadd.f32 %v933, %v1045
      %1047 = vmatmul.f32.gmra.mxu0 %v718
      %v1048 = vpop.f32.mrf.mxu0
      %v1049 = vadd.f32 %v936, %v1048
      %1050 = vmatmul.f32.gmra.mxu0 %v719
      %v1051 = vpop.f32.mrf.mxu0
      %v1052 = vadd.f32 %v939, %v1051
      %1053 = vmatmul.f32.gmra.mxu0 %v720
      %v1054 = vpop.f32.mrf.mxu0
      %v1055 = vadd.f32 %v942, %v1054
      %1056 = vmatmul.f32.gmra.mxu0 %v721
      %v1057 = vpop.f32.mrf.mxu0
      %v1058 = vadd.f32 %v945, %v1057
      %1059 = vmatmul.f32.gmra.mxu0 %v722
      %v1060 = vpop.f32.mrf.mxu0
      %v1061 = vadd.f32 %v948, %v1060
      %1062 = vmatmul.f32.gmra.mxu0 %v723
      %v1063 = vpop.f32.mrf.mxu0
      %v1064 = vadd.f32 %v951, %v1063
      %1065 = vmatmul.f32.gmra.mxu0 %v724
      %v1066 = vpop.f32.mrf.mxu0
      %v1067 = vadd.f32 %v954, %v1066
      %1068 = vmatmul.f32.gmra.mxu0 %v725
      %v1069 = vpop.f32.mrf.mxu0
      %v1070 = vadd.f32 %v957, %v1069
      %1071 = vmatmul.f32.gmra.mxu0 %v726
      %v1072 = vpop.f32.mrf.mxu0
      %v1073 = vadd.f32 %v960, %v1072
      %1074 = vmatmul.f32.gmra.mxu0 %v727
      %v1075 = vpop.f32.mrf.mxu0
      %v1076 = vadd.f32 %v963, %v1075
      %1077 = vmatmul.f32.gmra.mxu0 %v728
      %v1078 = vpop.f32.mrf.mxu0
      %v1079 = vadd.f32 %v966, %v1078
      %1080 = vmatmul.f32.gmra.mxu0 %v729
      %v1081 = vpop.f32.mrf.mxu0
      %v1082 = vadd.f32 %v969, %v1081
      %1083 = vmatmul.f32.gmra.mxu0 %v730
      %v1084 = vpop.f32.mrf.mxu0
      %v1085 = vadd.f32 %v972, %v1084
      %1086 = vmatmul.f32.gmra.mxu0 %v731
      %v1087 = vpop.f32.mrf.mxu0
      %v1088 = vadd.f32 %v975, %v1087
      %1089 = vmatmul.f32.gmra.mxu0 %v732
      %v1090 = vpop.f32.mrf.mxu0
      %v1091 = vadd.f32 %v978, %v1090
      %1092 = vmatmul.f32.gmra.mxu0 %v733
      %v1093 = vpop.f32.mrf.mxu0
      %v1094 = vadd.f32 %v981, %v1093
      %1095 = vmatmul.f32.gmra.mxu0 %v734
      %v1096 = vpop.f32.mrf.mxu0
      %v1097 = vadd.f32 %v984, %v1096
      %1098 = vmatmul.f32.gmra.mxu0 %v735
      %v1099 = vpop.f32.mrf.mxu0
      %v1100 = vadd.f32 %v987, %v1099
      %1101 = vmatmul.f32.gmra.mxu0 %v736
      %v1102 = vpop.f32.mrf.mxu0
      %v1103 = vadd.f32 %v990, %v1102
      %1104 = vmatmul.f32.gmra.mxu0 %v737
      %v1105 = vpop.f32.mrf.mxu0
      %v1106 = vadd.f32 %v993, %v1105
      %1107 = vmatmul.f32.gmra.mxu0 %v738
      %v1108 = vpop.f32.mrf.mxu0
      %v1109 = vadd.f32 %v996, %v1108
      %1110 = vmatmul.f32.gmra.mxu0 %v739
      %v1111 = vpop.f32.mrf.mxu0
      %v1112 = vadd.f32 %v999, %v1111
      %1113 = vmatmul.f32.gmra.mxu0 %v740
      %v1114 = vpop.f32.mrf.mxu0
      %v1115 = vadd.f32 %v1002, %v1114
      %1116 = vmatmul.f32.gmra.mxu0 %v741
      %v1117 = vpop.f32.mrf.mxu0
      %v1118 = vadd.f32 %v1005, %v1117
      %1119 = vmatmul.f32.gmra.mxu0 %v742
      %v1120 = vpop.f32.mrf.mxu0
      %v1121 = vadd.f32 %v1008, %v1120
      %1122 = vmatmul.f32.gmra.mxu0 %v743
      %v1123 = vpop.f32.mrf.mxu0
      %v1124 = vadd.f32 %v1011, %v1123
      %1125 = vmatmul.f32.gmra.mxu0 %v744
      %v1126 = vpop.f32.mrf.mxu0
      %v1127 = vadd.f32 %v1014, %v1126
      %1128 = vmatmul.f32.gmra.mxu0 %v745
      %v1129 = vpop.f32.mrf.mxu0
      %v1130 = vadd.f32 %v1017, %v1129
      %1131 = vmatmul.f32.gmra.mxu0 %v746
      %v1132 = vpop.f32.mrf.mxu0
      %v1133 = vadd.f32 %v1020, %v1132
      %1134 = vdwg.mxu0
      %1135 = vmatpush.msra.mxu0 %v618
      %1136 = vmatpush.msra.mxu0 %v617
      %1137 = vmatpush.msra.mxu0 %v616
      %1138 = vmatpush.msra.mxu0 %v615
      %1139 = vmatpush.msra.mxu0 %v614
      %1140 = vmatpush.msra.mxu0 %v613
      %1141 = vmatpush.msra.mxu0 %v612
      %1142 = vmatpush.msra.mxu0 %v611
      %1143 = vmatpush.msra.mxu0 %v610
      %1144 = vmatpush.msra.mxu0 %v609
      %1145 = vmatpush.msra.mxu0 %v608
      %1146 = vmatpush.msra.mxu0 %v607
      %1147 = vmatpush.msra.mxu0 %v606
      %1148 = vmatpush.msra.mxu0 %v605
      %1149 = vmatpush.msra.mxu0 %v604
      %1150 = vmatpush.msra.mxu0 %v603
      %1151 = vmatmul.f32.gmra.mxu0 %v507
      %v1152 = vpop.f32.mrf.mxu0
      %v1153 = vadd.f32 %v1040, %v1152
      %1154 = vmatmul.f32.gmra.mxu0 %v508
      %v1155 = vpop.f32.mrf.mxu0
      %v1156 = vadd.f32 %v1043, %v1155
      %1157 = vmatmul.f32.gmra.mxu0 %v509
      %v1158 = vpop.f32.mrf.mxu0
      %v1159 = vadd.f32 %v1046, %v1158
      %1160 = vmatmul.f32.gmra.mxu0 %v510
      %v1161 = vpop.f32.mrf.mxu0
      %v1162 = vadd.f32 %v1049, %v1161
      %1163 = vmatmul.f32.gmra.mxu0 %v511
      %v1164 = vpop.f32.mrf.mxu0
      %v1165 = vadd.f32 %v1052, %v1164
      %1166 = vmatmul.f32.gmra.mxu0 %v512
      %v1167 = vpop.f32.mrf.mxu0
      %v1168 = vadd.f32 %v1055, %v1167
      %1169 = vmatmul.f32.gmra.mxu0 %v513
      %v1170 = vpop.f32.mrf.mxu0
      %v1171 = vadd.f32 %v1058, %v1170
      %1172 = vmatmul.f32.gmra.mxu0 %v514
      %v1173 = vpop.f32.mrf.mxu0
      %v1174 = vadd.f32 %v1061, %v1173
      %1175 = vmatmul.f32.gmra.mxu0 %v515
      %v1176 = vpop.f32.mrf.mxu0
      %v1177 = vadd.f32 %v1064, %v1176
      %1178 = vmatmul.f32.gmra.mxu0 %v516
      %v1179 = vpop.f32.mrf.mxu0
      %v1180 = vadd.f32 %v1067, %v1179
      %1181 = vmatmul.f32.gmra.mxu0 %v517
      %v1182 = vpop.f32.mrf.mxu0
      %v1183 = vadd.f32 %v1070, %v1182
      %1184 = vmatmul.f32.gmra.mxu0 %v518
      %v1185 = vpop.f32.mrf.mxu0
      %v1186 = vadd.f32 %v1073, %v1185
      %1187 = vmatmul.f32.gmra.mxu0 %v519
      %v1188 = vpop.f32.mrf.mxu0
      %v1189 = vadd.f32 %v1076, %v1188
      %1190 = vmatmul.f32.gmra.mxu0 %v520
      %v1191 = vpop.f32.mrf.mxu0
      %v1192 = vadd.f32 %v1079, %v1191
      %1193 = vmatmul.f32.gmra.mxu0 %v521
      %v1194 = vpop.f32.mrf.mxu0
      %v1195 = vadd.f32 %v1082, %v1194
      %1196 = vmatmul.f32.gmra.mxu0 %v522
      %v1197 = vpop.f32.mrf.mxu0
      %v1198 = vadd.f32 %v1085, %v1197
      %1199 = vmatmul.f32.gmra.mxu0 %v523
      %v1200 = vpop.f32.mrf.mxu0
      %v1201 = vadd.f32 %v1088, %v1200
      %1202 = vmatmul.f32.gmra.mxu0 %v524
      %v1203 = vpop.f32.mrf.mxu0
      %v1204 = vadd.f32 %v1091, %v1203
      %1205 = vmatmul.f32.gmra.mxu0 %v525
      %v1206 = vpop.f32.mrf.mxu0
      %v1207 = vadd.f32 %v1094, %v1206
      %1208 = vmatmul.f32.gmra.mxu0 %v526
      %v1209 = vpop.f32.mrf.mxu0
      %v1210 = vadd.f32 %v1097, %v1209
      %1211 = vmatmul.f32.gmra.mxu0 %v527
      %v1212 = vpop.f32.mrf.mxu0
      %v1213 = vadd.f32 %v1100, %v1212
      %1214 = vmatmul.f32.gmra.mxu0 %v528
      %v1215 = vpop.f32.mrf.mxu0
      %v1216 = vadd.f32 %v1103, %v1215
      %1217 = vmatmul.f32.gmra.mxu0 %v529
      %v1218 = vpop.f32.mrf.mxu0
      %v1219 = vadd.f32 %v1106, %v1218
      %1220 = vmatmul.f32.gmra.mxu0 %v530
      %v1221 = vpop.f32.mrf.mxu0
      %v1222 = vadd.f32 %v1109, %v1221
      %1223 = vmatmul.f32.gmra.mxu0 %v531
      %v1224 = vpop.f32.mrf.mxu0
      %v1225 = vadd.f32 %v1112, %v1224
      %1226 = vmatmul.f32.gmra.mxu0 %v532
      %v1227 = vpop.f32.mrf.mxu0
      %v1228 = vadd.f32 %v1115, %v1227
      %1229 = vmatmul.f32.gmra.mxu0 %v533
      %v1230 = vpop.f32.mrf.mxu0
      %v1231 = vadd.f32 %v1118, %v1230
      %1232 = vmatmul.f32.gmra.mxu0 %v534
      %v1233 = vpop.f32.mrf.mxu0
      %v1234 = vadd.f32 %v1121, %v1233
      %1235 = vmatmul.f32.gmra.mxu0 %v535
      %v1236 = vpop.f32.mrf.mxu0
      %v1237 = vadd.f32 %v1124, %v1236
      %1238 = vmatmul.f32.gmra.mxu0 %v536
      %v1239 = vpop.f32.mrf.mxu0
      %v1240 = vadd.f32 %v1127, %v1239
      %1241 = vmatmul.f32.gmra.mxu0 %v537
      %v1242 = vpop.f32.mrf.mxu0
      %v1243 = vadd.f32 %v1130, %v1242
      %1244 = vmatmul.f32.gmra.mxu0 %v538
      %v1245 = vpop.f32.mrf.mxu0
      %v1246 = vadd.f32 %v1133, %v1245
      %1247 = vdwg.mxu0
      %1248 = vmatpush.msra.mxu0 %v634
      %1249 = vmatpush.msra.mxu0 %v633
      %1250 = vmatpush.msra.mxu0 %v632
      %1251 = vmatpush.msra.mxu0 %v631
      %1252 = vmatpush.msra.mxu0 %v630
      %1253 = vmatpush.msra.mxu0 %v629
      %1254 = vmatpush.msra.mxu0 %v628
      %1255 = vmatpush.msra.mxu0 %v627
      %1256 = vmatpush.msra.mxu0 %v626
      %1257 = vmatpush.msra.mxu0 %v625
      %1258 = vmatpush.msra.mxu0 %v624
      %1259 = vmatpush.msra.mxu0 %v623
      %1260 = vmatpush.msra.mxu0 %v622
      %1261 = vmatpush.msra.mxu0 %v621
      %1262 = vmatpush.msra.mxu0 %v620
      %1263 = vmatpush.msra.mxu0 %v619
      %1264 = vmatmul.f32.gmra.mxu0 %v539
      %v1265 = vpop.f32.mrf.mxu0
      %v1266 = vadd.f32 %v1153, %v1265
      %1267 = vmatmul.f32.gmra.mxu0 %v540
      %v1268 = vpop.f32.mrf.mxu0
      %v1269 = vadd.f32 %v1156, %v1268
      %1270 = vmatmul.f32.gmra.mxu0 %v541
      %v1271 = vpop.f32.mrf.mxu0
      %v1272 = vadd.f32 %v1159, %v1271
      %1273 = vmatmul.f32.gmra.mxu0 %v542
      %v1274 = vpop.f32.mrf.mxu0
      %v1275 = vadd.f32 %v1162, %v1274
      %1276 = vmatmul.f32.gmra.mxu0 %v543
      %v1277 = vpop.f32.mrf.mxu0
      %v1278 = vadd.f32 %v1165, %v1277
      %1279 = vmatmul.f32.gmra.mxu0 %v544
      %v1280 = vpop.f32.mrf.mxu0
      %v1281 = vadd.f32 %v1168, %v1280
      %1282 = vmatmul.f32.gmra.mxu0 %v545
      %v1283 = vpop.f32.mrf.mxu0
      %v1284 = vadd.f32 %v1171, %v1283
      %1285 = vmatmul.f32.gmra.mxu0 %v546
      %v1286 = vpop.f32.mrf.mxu0
      %v1287 = vadd.f32 %v1174, %v1286
      %1288 = vmatmul.f32.gmra.mxu0 %v547
      %v1289 = vpop.f32.mrf.mxu0
      %v1290 = vadd.f32 %v1177, %v1289
      %1291 = vmatmul.f32.gmra.mxu0 %v548
      %v1292 = vpop.f32.mrf.mxu0
      %v1293 = vadd.f32 %v1180, %v1292
      %1294 = vmatmul.f32.gmra.mxu0 %v549
      %v1295 = vpop.f32.mrf.mxu0
      %v1296 = vadd.f32 %v1183, %v1295
      %1297 = vmatmul.f32.gmra.mxu0 %v550
      %v1298 = vpop.f32.mrf.mxu0
      %v1299 = vadd.f32 %v1186, %v1298
      %1300 = vmatmul.f32.gmra.mxu0 %v551
      %v1301 = vpop.f32.mrf.mxu0
      %v1302 = vadd.f32 %v1189, %v1301
      %1303 = vmatmul.f32.gmra.mxu0 %v552
      %v1304 = vpop.f32.mrf.mxu0
      %v1305 = vadd.f32 %v1192, %v1304
      %1306 = vmatmul.f32.gmra.mxu0 %v553
      %v1307 = vpop.f32.mrf.mxu0
      %v1308 = vadd.f32 %v1195, %v1307
      %1309 = vmatmul.f32.gmra.mxu0 %v554
      %v1310 = vpop.f32.mrf.mxu0
      %v1311 = vadd.f32 %v1198, %v1310
      %1312 = vmatmul.f32.gmra.mxu0 %v555
      %v1313 = vpop.f32.mrf.mxu0
      %v1314 = vadd.f32 %v1201, %v1313
      %1315 = vmatmul.f32.gmra.mxu0 %v556
      %v1316 = vpop.f32.mrf.mxu0
      %v1317 = vadd.f32 %v1204, %v1316
      %1318 = vmatmul.f32.gmra.mxu0 %v557
      %v1319 = vpop.f32.mrf.mxu0
      %v1320 = vadd.f32 %v1207, %v1319
      %1321 = vmatmul.f32.gmra.mxu0 %v558
      %v1322 = vpop.f32.mrf.mxu0
      %v1323 = vadd.f32 %v1210, %v1322
      %1324 = vmatmul.f32.gmra.mxu0 %v559
      %v1325 = vpop.f32.mrf.mxu0
      %v1326 = vadd.f32 %v1213, %v1325
      %1327 = vmatmul.f32.gmra.mxu0 %v560
      %v1328 = vpop.f32.mrf.mxu0
      %v1329 = vadd.f32 %v1216, %v1328
      %1330 = vmatmul.f32.gmra.mxu0 %v561
      %v1331 = vpop.f32.mrf.mxu0
      %v1332 = vadd.f32 %v1219, %v1331
      %1333 = vmatmul.f32.gmra.mxu0 %v562
      %v1334 = vpop.f32.mrf.mxu0
      %v1335 = vadd.f32 %v1222, %v1334
      %1336 = vmatmul.f32.gmra.mxu0 %v563
      %v1337 = vpop.f32.mrf.mxu0
      %v1338 = vadd.f32 %v1225, %v1337
      %1339 = vmatmul.f32.gmra.mxu0 %v564
      %v1340 = vpop.f32.mrf.mxu0
      %v1341 = vadd.f32 %v1228, %v1340
      %1342 = vmatmul.f32.gmra.mxu0 %v565
      %v1343 = vpop.f32.mrf.mxu0
      %v1344 = vadd.f32 %v1231, %v1343
      %1345 = vmatmul.f32.gmra.mxu0 %v566
      %v1346 = vpop.f32.mrf.mxu0
      %v1347 = vadd.f32 %v1234, %v1346
      %1348 = vmatmul.f32.gmra.mxu0 %v567
      %v1349 = vpop.f32.mrf.mxu0
      %v1350 = vadd.f32 %v1237, %v1349
      %1351 = vmatmul.f32.gmra.mxu0 %v568
      %v1352 = vpop.f32.mrf.mxu0
      %v1353 = vadd.f32 %v1240, %v1352
      %1354 = vmatmul.f32.gmra.mxu0 %v569
      %v1355 = vpop.f32.mrf.mxu0
      %v1356 = vadd.f32 %v1243, %v1355
      %1357 = vmatmul.f32.gmra.mxu0 %v570
      %v1358 = vpop.f32.mrf.mxu0
      %v1359 = vadd.f32 %v1246, %v1358
      %1360 = vdwg.mxu0
      %1361 = vmatpush.msra.mxu0 %v650
      %1362 = vmatpush.msra.mxu0 %v649
      %1363 = vmatpush.msra.mxu0 %v648
      %1364 = vmatpush.msra.mxu0 %v647
      %1365 = vmatpush.msra.mxu0 %v646
      %1366 = vmatpush.msra.mxu0 %v645
      %1367 = vmatpush.msra.mxu0 %v644
      %1368 = vmatpush.msra.mxu0 %v643
      %1369 = vmatpush.msra.mxu0 %v642
      %1370 = vmatpush.msra.mxu0 %v641
      %1371 = vmatpush.msra.mxu0 %v640
      %1372 = vmatpush.msra.mxu0 %v639
      %1373 = vmatpush.msra.mxu0 %v638
      %1374 = vmatpush.msra.mxu0 %v637
      %1375 = vmatpush.msra.mxu0 %v636
      %1376 = vmatpush.msra.mxu0 %v635
      %1377 = vmatmul.f32.gmra.mxu0 %v571
      %v1378 = vpop.f32.mrf.mxu0
      %v1379 = vadd.f32 %v1266, %v1378
      %1380 = vmatmul.f32.gmra.mxu0 %v572
      %v1381 = vpop.f32.mrf.mxu0
      %v1382 = vadd.f32 %v1269, %v1381
      %1383 = vmatmul.f32.gmra.mxu0 %v573
      %v1384 = vpop.f32.mrf.mxu0
      %v1385 = vadd.f32 %v1272, %v1384
      %1386 = vmatmul.f32.gmra.mxu0 %v574
      %v1387 = vpop.f32.mrf.mxu0
      %v1388 = vadd.f32 %v1275, %v1387
      %1389 = vmatmul.f32.gmra.mxu0 %v575
      %v1390 = vpop.f32.mrf.mxu0
      %v1391 = vadd.f32 %v1278, %v1390
      %1392 = vmatmul.f32.gmra.mxu0 %v576
      %v1393 = vpop.f32.mrf.mxu0
      %v1394 = vadd.f32 %v1281, %v1393
      %1395 = vmatmul.f32.gmra.mxu0 %v577
      %v1396 = vpop.f32.mrf.mxu0
      %v1397 = vadd.f32 %v1284, %v1396
      %1398 = vmatmul.f32.gmra.mxu0 %v578
      %v1399 = vpop.f32.mrf.mxu0
      %v1400 = vadd.f32 %v1287, %v1399
      %1401 = vmatmul.f32.gmra.mxu0 %v579
      %v1402 = vpop.f32.mrf.mxu0
      %v1403 = vadd.f32 %v1290, %v1402
      %1404 = vmatmul.f32.gmra.mxu0 %v580
      %v1405 = vpop.f32.mrf.mxu0
      %v1406 = vadd.f32 %v1293, %v1405
      %1407 = vmatmul.f32.gmra.mxu0 %v581
      %v1408 = vpop.f32.mrf.mxu0
      %v1409 = vadd.f32 %v1296, %v1408
      %1410 = vmatmul.f32.gmra.mxu0 %v582
      %v1411 = vpop.f32.mrf.mxu0
      %v1412 = vadd.f32 %v1299, %v1411
      %1413 = vmatmul.f32.gmra.mxu0 %v583
      %v1414 = vpop.f32.mrf.mxu0
      %v1415 = vadd.f32 %v1302, %v1414
      %1416 = vmatmul.f32.gmra.mxu0 %v584
      %v1417 = vpop.f32.mrf.mxu0
      %v1418 = vadd.f32 %v1305, %v1417
      %1419 = vmatmul.f32.gmra.mxu0 %v585
      %v1420 = vpop.f32.mrf.mxu0
      %v1421 = vadd.f32 %v1308, %v1420
      %1422 = vmatmul.f32.gmra.mxu0 %v586
      %v1423 = vpop.f32.mrf.mxu0
      %v1424 = vadd.f32 %v1311, %v1423
      %1425 = vmatmul.f32.gmra.mxu0 %v587
      %v1426 = vpop.f32.mrf.mxu0
      %v1427 = vadd.f32 %v1314, %v1426
      %1428 = vmatmul.f32.gmra.mxu0 %v588
      %v1429 = vpop.f32.mrf.mxu0
      %v1430 = vadd.f32 %v1317, %v1429
      %1431 = vmatmul.f32.gmra.mxu0 %v589
      %v1432 = vpop.f32.mrf.mxu0
      %v1433 = vadd.f32 %v1320, %v1432
      %1434 = vmatmul.f32.gmra.mxu0 %v590
      %v1435 = vpop.f32.mrf.mxu0
      %v1436 = vadd.f32 %v1323, %v1435
      %1437 = vmatmul.f32.gmra.mxu0 %v591
      %v1438 = vpop.f32.mrf.mxu0
      %v1439 = vadd.f32 %v1326, %v1438
      %1440 = vmatmul.f32.gmra.mxu0 %v592
      %v1441 = vpop.f32.mrf.mxu0
      %v1442 = vadd.f32 %v1329, %v1441
      %1443 = vmatmul.f32.gmra.mxu0 %v593
      %v1444 = vpop.f32.mrf.mxu0
      %v1445 = vadd.f32 %v1332, %v1444
      %1446 = vmatmul.f32.gmra.mxu0 %v594
      %v1447 = vpop.f32.mrf.mxu0
      %v1448 = vadd.f32 %v1335, %v1447
      %1449 = vmatmul.f32.gmra.mxu0 %v595
      %v1450 = vpop.f32.mrf.mxu0
      %v1451 = vadd.f32 %v1338, %v1450
      %1452 = vmatmul.f32.gmra.mxu0 %v596
      %v1453 = vpop.f32.mrf.mxu0
      %v1454 = vadd.f32 %v1341, %v1453
      %1455 = vmatmul.f32.gmra.mxu0 %v597
      %v1456 = vpop.f32.mrf.mxu0
      %v1457 = vadd.f32 %v1344, %v1456
      %1458 = vmatmul.f32.gmra.mxu0 %v598
      %v1459 = vpop.f32.mrf.mxu0
      %v1460 = vadd.f32 %v1347, %v1459
      %1461 = vmatmul.f32.gmra.mxu0 %v599
      %v1462 = vpop.f32.mrf.mxu0
      %v1463 = vadd.f32 %v1350, %v1462
      %1464 = vmatmul.f32.gmra.mxu0 %v600
      %v1465 = vpop.f32.mrf.mxu0
      %v1466 = vadd.f32 %v1353, %v1465
      %1467 = vmatmul.f32.gmra.mxu0 %v601
      %v1468 = vpop.f32.mrf.mxu0
      %v1469 = vadd.f32 %v1356, %v1468
      %1470 = vmatmul.f32.gmra.mxu0 %v602
      %v1471 = vpop.f32.mrf.mxu0
      %v1472 = vadd.f32 %v1359, %v1471
      %1473 = vdwg.mxu0
      %s1474 = scalar_lea.vmem [#allocation2], 48
      %v1475 = vld [vmem:[%s1474] sm:$0xff]
      %v1476 = vld [vmem:[%s1474 + $0x8] sm:$0xff]
      %v1477 = vld [vmem:[%s1474 + $0x18] sm:$0xff]
      %v1478 = vld [vmem:[%s1474 + $0x20] sm:$0xff]
      %v1479 = vld [vmem:[%s1474 + $0x30] sm:$0xff]
      %v1480 = vld [vmem:[%s1474 + $0x38] sm:$0xff]
      %v1481 = vld [vmem:[%s1474 + $0x48] sm:$0xff]
      %v1482 = vld [vmem:[%s1474 + $0x50] sm:$0xff]
      %v1483 = vld [vmem:[%s1474 + $0x60] sm:$0xff]
      %v1484 = vld [vmem:[%s1474 + $0x68] sm:$0xff]
      %v1485 = vld [vmem:[%s1474 + $0x78] sm:$0xff]
      %v1486 = vld [vmem:[%s1474 + $0x80] sm:$0xff]
      %v1487 = vld [vmem:[%s1474 + $0x90] sm:$0xff]
      %v1488 = vld [vmem:[%s1474 + $0x98] sm:$0xff]
      %v1489 = vld [vmem:[%s1474 + $0xa8] sm:$0xff]
      %v1490 = vld [vmem:[%s1474 + $0xb0] sm:$0xff]
      %v1491 = vld [vmem:[%s1474 + $0xc0] sm:$0xff]
      %v1492 = vld [vmem:[%s1474 + $0xc8] sm:$0xff]
      %v1493 = vld [vmem:[%s1474 + $0xd8] sm:$0xff]
      %v1494 = vld [vmem:[%s1474 + $0xe0] sm:$0xff]
      %v1495 = vld [vmem:[%s1474 + $0xf0] sm:$0xff]
      %v1496 = vld [vmem:[%s1474 + $0xf8] sm:$0xff]
      %v1497 = vld [vmem:[%s1474 + $0x108] sm:$0xff]
      %v1498 = vld [vmem:[%s1474 + $0x110] sm:$0xff]
      %v1499 = vld [vmem:[%s1474 + $0x120] sm:$0xff]
      %v1500 = vld [vmem:[%s1474 + $0x128] sm:$0xff]
      %v1501 = vld [vmem:[%s1474 + $0x138] sm:$0xff]
      %v1502 = vld [vmem:[%s1474 + $0x140] sm:$0xff]
      %v1503 = vld [vmem:[%s1474 + $0x150] sm:$0xff]
      %v1504 = vld [vmem:[%s1474 + $0x158] sm:$0xff]
      %v1505 = vld [vmem:[%s1474 + $0x168] sm:$0xff]
      %v1506 = vld [vmem:[%s1474 + $0x170] sm:$0xff]
      %v1507 = vld [vmem:[%s1474 + $0x1] sm:$0xff]
      %v1508 = vld [vmem:[%s1474 + $0x9] sm:$0xff]
      %v1509 = vld [vmem:[%s1474 + $0x19] sm:$0xff]
      %v1510 = vld [vmem:[%s1474 + $0x21] sm:$0xff]
      %v1511 = vld [vmem:[%s1474 + $0x31] sm:$0xff]
      %v1512 = vld [vmem:[%s1474 + $0x39] sm:$0xff]
      %v1513 = vld [vmem:[%s1474 + $0x49] sm:$0xff]
      %v1514 = vld [vmem:[%s1474 + $0x51] sm:$0xff]
      %v1515 = vld [vmem:[%s1474 + $0x61] sm:$0xff]
      %v1516 = vld [vmem:[%s1474 + $0x69] sm:$0xff]
      %v1517 = vld [vmem:[%s1474 + $0x79] sm:$0xff]
      %v1518 = vld [vmem:[%s1474 + $0x81] sm:$0xff]
      %v1519 = vld [vmem:[%s1474 + $0x91] sm:$0xff]
      %v1520 = vld [vmem:[%s1474 + $0x99] sm:$0xff]
      %v1521 = vld [vmem:[%s1474 + $0xa9] sm:$0xff]
      %v1522 = vld [vmem:[%s1474 + $0xb1] sm:$0xff]
      %v1523 = vld [vmem:[%s1474 + $0xc1] sm:$0xff]
      %v1524 = vld [vmem:[%s1474 + $0xc9] sm:$0xff]
      %v1525 = vld [vmem:[%s1474 + $0xd9] sm:$0xff]
      %v1526 = vld [vmem:[%s1474 + $0xe1] sm:$0xff]
      %v1527 = vld [vmem:[%s1474 + $0xf1] sm:$0xff]
      %v1528 = vld [vmem:[%s1474 + $0xf9] sm:$0xff]
      %v1529 = vld [vmem:[%s1474 + $0x109] sm:$0xff]
      %v1530 = vld [vmem:[%s1474 + $0x111] sm:$0xff]
      %v1531 = vld [vmem:[%s1474 + $0x121] sm:$0xff]
      %v1532 = vld [vmem:[%s1474 + $0x129] sm:$0xff]
      %v1533 = vld [vmem:[%s1474 + $0x139] sm:$0xff]
      %v1534 = vld [vmem:[%s1474 + $0x141] sm:$0xff]
      %v1535 = vld [vmem:[%s1474 + $0x151] sm:$0xff]
      %v1536 = vld [vmem:[%s1474 + $0x159] sm:$0xff]
      %v1537 = vld [vmem:[%s1474 + $0x169] sm:$0xff]
      %v1538 = vld [vmem:[%s1474 + $0x171] sm:$0xff]
      %v1539 = vld [vmem:[%s1474 + $0x2] sm:$0xff]
      %v1540 = vld [vmem:[%s1474 + $0xa] sm:$0xff]
      %v1541 = vld [vmem:[%s1474 + $0x1a] sm:$0xff]
      %v1542 = vld [vmem:[%s1474 + $0x22] sm:$0xff]
      %v1543 = vld [vmem:[%s1474 + $0x32] sm:$0xff]
      %v1544 = vld [vmem:[%s1474 + $0x3a] sm:$0xff]
      %v1545 = vld [vmem:[%s1474 + $0x4a] sm:$0xff]
      %v1546 = vld [vmem:[%s1474 + $0x52] sm:$0xff]
      %v1547 = vld [vmem:[%s1474 + $0x62] sm:$0xff]
      %v1548 = vld [vmem:[%s1474 + $0x6a] sm:$0xff]
      %v1549 = vld [vmem:[%s1474 + $0x7a] sm:$0xff]
      %v1550 = vld [vmem:[%s1474 + $0x82] sm:$0xff]
      %v1551 = vld [vmem:[%s1474 + $0x92] sm:$0xff]
      %v1552 = vld [vmem:[%s1474 + $0x9a] sm:$0xff]
      %v1553 = vld [vmem:[%s1474 + $0xaa] sm:$0xff]
      %v1554 = vld [vmem:[%s1474 + $0xb2] sm:$0xff]
      %v1555 = vld [vmem:[%s1474 + $0xc2] sm:$0xff]
      %v1556 = vld [vmem:[%s1474 + $0xca] sm:$0xff]
      %v1557 = vld [vmem:[%s1474 + $0xda] sm:$0xff]
      %v1558 = vld [vmem:[%s1474 + $0xe2] sm:$0xff]
      %v1559 = vld [vmem:[%s1474 + $0xf2] sm:$0xff]
      %v1560 = vld [vmem:[%s1474 + $0xfa] sm:$0xff]
      %v1561 = vld [vmem:[%s1474 + $0x10a] sm:$0xff]
      %v1562 = vld [vmem:[%s1474 + $0x112] sm:$0xff]
      %v1563 = vld [vmem:[%s1474 + $0x122] sm:$0xff]
      %v1564 = vld [vmem:[%s1474 + $0x12a] sm:$0xff]
      %v1565 = vld [vmem:[%s1474 + $0x13a] sm:$0xff]
      %v1566 = vld [vmem:[%s1474 + $0x142] sm:$0xff]
      %v1567 = vld [vmem:[%s1474 + $0x152] sm:$0xff]
      %v1568 = vld [vmem:[%s1474 + $0x15a] sm:$0xff]
      %v1569 = vld [vmem:[%s1474 + $0x16a] sm:$0xff]
      %v1570 = vld [vmem:[%s1474 + $0x172] sm:$0xff]
      %s1571 = scalar_lea.vmem %s4, 768
      %v1572 = vld [vmem:[%s1571] sm:$0xff]
      %v1573 = vld [vmem:[%s1571 + $0x8] sm:$0xff]
      %v1574 = vld [vmem:[%s1571 + $0x10] sm:$0xff]
      %v1575 = vld [vmem:[%s1571 + $0x18] sm:$0xff]
      %v1576 = vld [vmem:[%s1571 + $0x20] sm:$0xff]
      %v1577 = vld [vmem:[%s1571 + $0x28] sm:$0xff]
      %v1578 = vld [vmem:[%s1571 + $0x30] sm:$0xff]
      %v1579 = vld [vmem:[%s1571 + $0x38] sm:$0xff]
      %v1580 = vld [vmem:[%s1571 + $0x40] sm:$0xff]
      %v1581 = vld [vmem:[%s1571 + $0x48] sm:$0xff]
      %v1582 = vld [vmem:[%s1571 + $0x50] sm:$0xff]
      %v1583 = vld [vmem:[%s1571 + $0x58] sm:$0xff]
      %v1584 = vld [vmem:[%s1571 + $0x60] sm:$0xff]
      %v1585 = vld [vmem:[%s1571 + $0x68] sm:$0xff]
      %v1586 = vld [vmem:[%s1571 + $0x70] sm:$0xff]
      %v1587 = vld [vmem:[%s1571 + $0x78] sm:$0xff]
      %v1588 = vld [vmem:[%s1571 + $0x80] sm:$0xff]
      %v1589 = vld [vmem:[%s1571 + $0x88] sm:$0xff]
      %v1590 = vld [vmem:[%s1571 + $0x90] sm:$0xff]
      %v1591 = vld [vmem:[%s1571 + $0x98] sm:$0xff]
      %v1592 = vld [vmem:[%s1571 + $0xa0] sm:$0xff]
      %v1593 = vld [vmem:[%s1571 + $0xa8] sm:$0xff]
      %v1594 = vld [vmem:[%s1571 + $0xb0] sm:$0xff]
      %v1595 = vld [vmem:[%s1571 + $0xb8] sm:$0xff]
      %v1596 = vld [vmem:[%s1571 + $0xc0] sm:$0xff]
      %v1597 = vld [vmem:[%s1571 + $0xc8] sm:$0xff]
      %v1598 = vld [vmem:[%s1571 + $0xd0] sm:$0xff]
      %v1599 = vld [vmem:[%s1571 + $0xd8] sm:$0xff]
      %v1600 = vld [vmem:[%s1571 + $0xe0] sm:$0xff]
      %v1601 = vld [vmem:[%s1571 + $0xe8] sm:$0xff]
      %v1602 = vld [vmem:[%s1571 + $0xf0] sm:$0xff]
      %v1603 = vld [vmem:[%s1571 + $0xf8] sm:$0xff]
      %v1604 = vld [vmem:[%s1571 + $0x100] sm:$0xff]
      %v1605 = vld [vmem:[%s1571 + $0x108] sm:$0xff]
      %v1606 = vld [vmem:[%s1571 + $0x110] sm:$0xff]
      %v1607 = vld [vmem:[%s1571 + $0x118] sm:$0xff]
      %v1608 = vld [vmem:[%s1571 + $0x120] sm:$0xff]
      %v1609 = vld [vmem:[%s1571 + $0x128] sm:$0xff]
      %v1610 = vld [vmem:[%s1571 + $0x130] sm:$0xff]
      %v1611 = vld [vmem:[%s1571 + $0x138] sm:$0xff]
      %v1612 = vld [vmem:[%s1571 + $0x140] sm:$0xff]
      %v1613 = vld [vmem:[%s1571 + $0x148] sm:$0xff]
      %v1614 = vld [vmem:[%s1571 + $0x150] sm:$0xff]
      %v1615 = vld [vmem:[%s1571 + $0x158] sm:$0xff]
      %v1616 = vld [vmem:[%s1571 + $0x160] sm:$0xff]
      %v1617 = vld [vmem:[%s1571 + $0x168] sm:$0xff]
      %v1618 = vld [vmem:[%s1571 + $0x170] sm:$0xff]
      %v1619 = vld [vmem:[%s1571 + $0x178] sm:$0xff]
      %1620 = vmatpush.msra.mxu0 %v1587
      %1621 = vmatpush.msra.mxu0 %v1586
      %1622 = vmatpush.msra.mxu0 %v1585
      %1623 = vmatpush.msra.mxu0 %v1584
      %1624 = vmatpush.msra.mxu0 %v1583
      %1625 = vmatpush.msra.mxu0 %v1582
      %1626 = vmatpush.msra.mxu0 %v1581
      %1627 = vmatpush.msra.mxu0 %v1580
      %1628 = vmatpush.msra.mxu0 %v1579
      %1629 = vmatpush.msra.mxu0 %v1578
      %1630 = vmatpush.msra.mxu0 %v1577
      %1631 = vmatpush.msra.mxu0 %v1576
      %1632 = vmatpush.msra.mxu0 %v1575
      %1633 = vmatpush.msra.mxu0 %v1574
      %1634 = vmatpush.msra.mxu0 %v1573
      %1635 = vmatpush.msra.mxu0 %v1572
      %1636 = vmatmul.f32.gmra.mxu0 %v1475
      %v1637 = vpop.f32.mrf.mxu0
      %v1638 = vadd.f32 0.0, %v1637
      %1639 = vmatmul.f32.gmra.mxu0 %v1476
      %v1640 = vpop.f32.mrf.mxu0
      %v1641 = vadd.f32 0.0, %v1640
      %1642 = vmatmul.f32.gmra.mxu0 %v1477
      %v1643 = vpop.f32.mrf.mxu0
      %v1644 = vadd.f32 0.0, %v1643
      %1645 = vmatmul.f32.gmra.mxu0 %v1478
      %v1646 = vpop.f32.mrf.mxu0
      %v1647 = vadd.f32 0.0, %v1646
      %1648 = vmatmul.f32.gmra.mxu0 %v1479
      %v1649 = vpop.f32.mrf.mxu0
      %v1650 = vadd.f32 0.0, %v1649
      %1651 = vmatmul.f32.gmra.mxu0 %v1480
      %v1652 = vpop.f32.mrf.mxu0
      %v1653 = vadd.f32 0.0, %v1652
      %1654 = vmatmul.f32.gmra.mxu0 %v1481
      %v1655 = vpop.f32.mrf.mxu0
      %v1656 = vadd.f32 0.0, %v1655
      %1657 = vmatmul.f32.gmra.mxu0 %v1482
      %v1658 = vpop.f32.mrf.mxu0
      %v1659 = vadd.f32 0.0, %v1658
      %1660 = vmatmul.f32.gmra.mxu0 %v1483
      %v1661 = vpop.f32.mrf.mxu0
      %v1662 = vadd.f32 0.0, %v1661
      %1663 = vmatmul.f32.gmra.mxu0 %v1484
      %v1664 = vpop.f32.mrf.mxu0
      %v1665 = vadd.f32 0.0, %v1664
      %1666 = vmatmul.f32.gmra.mxu0 %v1485
      %v1667 = vpop.f32.mrf.mxu0
      %v1668 = vadd.f32 0.0, %v1667
      %1669 = vmatmul.f32.gmra.mxu0 %v1486
      %v1670 = vpop.f32.mrf.mxu0
      %v1671 = vadd.f32 0.0, %v1670
      %1672 = vmatmul.f32.gmra.mxu0 %v1487
      %v1673 = vpop.f32.mrf.mxu0
      %v1674 = vadd.f32 0.0, %v1673
      %1675 = vmatmul.f32.gmra.mxu0 %v1488
      %v1676 = vpop.f32.mrf.mxu0
      %v1677 = vadd.f32 0.0, %v1676
      %1678 = vmatmul.f32.gmra.mxu0 %v1489
      %v1679 = vpop.f32.mrf.mxu0
      %v1680 = vadd.f32 0.0, %v1679
      %1681 = vmatmul.f32.gmra.mxu0 %v1490
      %v1682 = vpop.f32.mrf.mxu0
      %v1683 = vadd.f32 0.0, %v1682
      %1684 = vmatmul.f32.gmra.mxu0 %v1491
      %v1685 = vpop.f32.mrf.mxu0
      %v1686 = vadd.f32 0.0, %v1685
      %1687 = vmatmul.f32.gmra.mxu0 %v1492
      %v1688 = vpop.f32.mrf.mxu0
      %v1689 = vadd.f32 0.0, %v1688
      %1690 = vmatmul.f32.gmra.mxu0 %v1493
      %v1691 = vpop.f32.mrf.mxu0
      %v1692 = vadd.f32 0.0, %v1691
      %1693 = vmatmul.f32.gmra.mxu0 %v1494
      %v1694 = vpop.f32.mrf.mxu0
      %v1695 = vadd.f32 0.0, %v1694
      %1696 = vmatmul.f32.gmra.mxu0 %v1495
      %v1697 = vpop.f32.mrf.mxu0
      %v1698 = vadd.f32 0.0, %v1697
      %1699 = vmatmul.f32.gmra.mxu0 %v1496
      %v1700 = vpop.f32.mrf.mxu0
      %v1701 = vadd.f32 0.0, %v1700
      %1702 = vmatmul.f32.gmra.mxu0 %v1497
      %v1703 = vpop.f32.mrf.mxu0
      %v1704 = vadd.f32 0.0, %v1703
      %1705 = vmatmul.f32.gmra.mxu0 %v1498
      %v1706 = vpop.f32.mrf.mxu0
      %v1707 = vadd.f32 0.0, %v1706
      %1708 = vmatmul.f32.gmra.mxu0 %v1499
      %v1709 = vpop.f32.mrf.mxu0
      %v1710 = vadd.f32 0.0, %v1709
      %1711 = vmatmul.f32.gmra.mxu0 %v1500
      %v1712 = vpop.f32.mrf.mxu0
      %v1713 = vadd.f32 0.0, %v1712
      %1714 = vmatmul.f32.gmra.mxu0 %v1501
      %v1715 = vpop.f32.mrf.mxu0
      %v1716 = vadd.f32 0.0, %v1715
      %1717 = vmatmul.f32.gmra.mxu0 %v1502
      %v1718 = vpop.f32.mrf.mxu0
      %v1719 = vadd.f32 0.0, %v1718
      %1720 = vmatmul.f32.gmra.mxu0 %v1503
      %v1721 = vpop.f32.mrf.mxu0
      %v1722 = vadd.f32 0.0, %v1721
      %1723 = vmatmul.f32.gmra.mxu0 %v1504
      %v1724 = vpop.f32.mrf.mxu0
      %v1725 = vadd.f32 0.0, %v1724
      %1726 = vmatmul.f32.gmra.mxu0 %v1505
      %v1727 = vpop.f32.mrf.mxu0
      %v1728 = vadd.f32 0.0, %v1727
      %1729 = vmatmul.f32.gmra.mxu0 %v1506
      %v1730 = vpop.f32.mrf.mxu0
      %v1731 = vadd.f32 0.0, %v1730
      %1732 = vdwg.mxu0
      %1733 = vmatpush.msra.mxu0 %v1603
      %1734 = vmatpush.msra.mxu0 %v1602
      %1735 = vmatpush.msra.mxu0 %v1601
      %1736 = vmatpush.msra.mxu0 %v1600
      %1737 = vmatpush.msra.mxu0 %v1599
      %1738 = vmatpush.msra.mxu0 %v1598
      %1739 = vmatpush.msra.mxu0 %v1597
      %1740 = vmatpush.msra.mxu0 %v1596
      %1741 = vmatpush.msra.mxu0 %v1595
      %1742 = vmatpush.msra.mxu0 %v1594
      %1743 = vmatpush.msra.mxu0 %v1593
      %1744 = vmatpush.msra.mxu0 %v1592
      %1745 = vmatpush.msra.mxu0 %v1591
      %1746 = vmatpush.msra.mxu0 %v1590
      %1747 = vmatpush.msra.mxu0 %v1589
      %1748 = vmatpush.msra.mxu0 %v1588
      %1749 = vmatmul.f32.gmra.mxu0 %v1507
      %v1750 = vpop.f32.mrf.mxu0
      %v1751 = vadd.f32 %v1638, %v1750
      %1752 = vmatmul.f32.gmra.mxu0 %v1508
      %v1753 = vpop.f32.mrf.mxu0
      %v1754 = vadd.f32 %v1641, %v1753
      %1755 = vmatmul.f32.gmra.mxu0 %v1509
      %v1756 = vpop.f32.mrf.mxu0
      %v1757 = vadd.f32 %v1644, %v1756
      %1758 = vmatmul.f32.gmra.mxu0 %v1510
      %v1759 = vpop.f32.mrf.mxu0
      %v1760 = vadd.f32 %v1647, %v1759
      %1761 = vmatmul.f32.gmra.mxu0 %v1511
      %v1762 = vpop.f32.mrf.mxu0
      %v1763 = vadd.f32 %v1650, %v1762
      %1764 = vmatmul.f32.gmra.mxu0 %v1512
      %v1765 = vpop.f32.mrf.mxu0
      %v1766 = vadd.f32 %v1653, %v1765
      %1767 = vmatmul.f32.gmra.mxu0 %v1513
      %v1768 = vpop.f32.mrf.mxu0
      %v1769 = vadd.f32 %v1656, %v1768
      %1770 = vmatmul.f32.gmra.mxu0 %v1514
      %v1771 = vpop.f32.mrf.mxu0
      %v1772 = vadd.f32 %v1659, %v1771
      %1773 = vmatmul.f32.gmra.mxu0 %v1515
      %v1774 = vpop.f32.mrf.mxu0
      %v1775 = vadd.f32 %v1662, %v1774
      %1776 = vmatmul.f32.gmra.mxu0 %v1516
      %v1777 = vpop.f32.mrf.mxu0
      %v1778 = vadd.f32 %v1665, %v1777
      %1779 = vmatmul.f32.gmra.mxu0 %v1517
      %v1780 = vpop.f32.mrf.mxu0
      %v1781 = vadd.f32 %v1668, %v1780
      %1782 = vmatmul.f32.gmra.mxu0 %v1518
      %v1783 = vpop.f32.mrf.mxu0
      %v1784 = vadd.f32 %v1671, %v1783
      %1785 = vmatmul.f32.gmra.mxu0 %v1519
      %v1786 = vpop.f32.mrf.mxu0
      %v1787 = vadd.f32 %v1674, %v1786
      %1788 = vmatmul.f32.gmra.mxu0 %v1520
      %v1789 = vpop.f32.mrf.mxu0
      %v1790 = vadd.f32 %v1677, %v1789
      %1791 = vmatmul.f32.gmra.mxu0 %v1521
      %v1792 = vpop.f32.mrf.mxu0
      %v1793 = vadd.f32 %v1680, %v1792
      %1794 = vmatmul.f32.gmra.mxu0 %v1522
      %v1795 = vpop.f32.mrf.mxu0
      %v1796 = vadd.f32 %v1683, %v1795
      %1797 = vmatmul.f32.gmra.mxu0 %v1523
      %v1798 = vpop.f32.mrf.mxu0
      %v1799 = vadd.f32 %v1686, %v1798
      %1800 = vmatmul.f32.gmra.mxu0 %v1524
      %v1801 = vpop.f32.mrf.mxu0
      %v1802 = vadd.f32 %v1689, %v1801
      %1803 = vmatmul.f32.gmra.mxu0 %v1525
      %v1804 = vpop.f32.mrf.mxu0
      %v1805 = vadd.f32 %v1692, %v1804
      %1806 = vmatmul.f32.gmra.mxu0 %v1526
      %v1807 = vpop.f32.mrf.mxu0
      %v1808 = vadd.f32 %v1695, %v1807
      %1809 = vmatmul.f32.gmra.mxu0 %v1527
      %v1810 = vpop.f32.mrf.mxu0
      %v1811 = vadd.f32 %v1698, %v1810
      %1812 = vmatmul.f32.gmra.mxu0 %v1528
      %v1813 = vpop.f32.mrf.mxu0
      %v1814 = vadd.f32 %v1701, %v1813
      %1815 = vmatmul.f32.gmra.mxu0 %v1529
      %v1816 = vpop.f32.mrf.mxu0
      %v1817 = vadd.f32 %v1704, %v1816
      %1818 = vmatmul.f32.gmra.mxu0 %v1530
      %v1819 = vpop.f32.mrf.mxu0
      %v1820 = vadd.f32 %v1707, %v1819
      %1821 = vmatmul.f32.gmra.mxu0 %v1531
      %v1822 = vpop.f32.mrf.mxu0
      %v1823 = vadd.f32 %v1710, %v1822
      %1824 = vmatmul.f32.gmra.mxu0 %v1532
      %v1825 = vpop.f32.mrf.mxu0
      %v1826 = vadd.f32 %v1713, %v1825
      %1827 = vmatmul.f32.gmra.mxu0 %v1533
      %v1828 = vpop.f32.mrf.mxu0
      %v1829 = vadd.f32 %v1716, %v1828
      %1830 = vmatmul.f32.gmra.mxu0 %v1534
      %v1831 = vpop.f32.mrf.mxu0
      %v1832 = vadd.f32 %v1719, %v1831
      %1833 = vmatmul.f32.gmra.mxu0 %v1535
      %v1834 = vpop.f32.mrf.mxu0
      %v1835 = vadd.f32 %v1722, %v1834
      %1836 = vmatmul.f32.gmra.mxu0 %v1536
      %v1837 = vpop.f32.mrf.mxu0
      %v1838 = vadd.f32 %v1725, %v1837
      %1839 = vmatmul.f32.gmra.mxu0 %v1537
      %v1840 = vpop.f32.mrf.mxu0
      %v1841 = vadd.f32 %v1728, %v1840
      %1842 = vmatmul.f32.gmra.mxu0 %v1538
      %v1843 = vpop.f32.mrf.mxu0
      %v1844 = vadd.f32 %v1731, %v1843
      %1845 = vdwg.mxu0
      %1846 = vmatpush.msra.mxu0 %v1619
      %1847 = vmatpush.msra.mxu0 %v1618
      %1848 = vmatpush.msra.mxu0 %v1617
      %1849 = vmatpush.msra.mxu0 %v1616
      %1850 = vmatpush.msra.mxu0 %v1615
      %1851 = vmatpush.msra.mxu0 %v1614
      %1852 = vmatpush.msra.mxu0 %v1613
      %1853 = vmatpush.msra.mxu0 %v1612
      %1854 = vmatpush.msra.mxu0 %v1611
      %1855 = vmatpush.msra.mxu0 %v1610
      %1856 = vmatpush.msra.mxu0 %v1609
      %1857 = vmatpush.msra.mxu0 %v1608
      %1858 = vmatpush.msra.mxu0 %v1607
      %1859 = vmatpush.msra.mxu0 %v1606
      %1860 = vmatpush.msra.mxu0 %v1605
      %1861 = vmatpush.msra.mxu0 %v1604
      %1862 = vmatmul.f32.gmra.mxu0 %v1539
      %v1863 = vpop.f32.mrf.mxu0
      %v1864 = vadd.f32 %v1751, %v1863
      %1865 = vmatmul.f32.gmra.mxu0 %v1540
      %v1866 = vpop.f32.mrf.mxu0
      %v1867 = vadd.f32 %v1754, %v1866
      %1868 = vmatmul.f32.gmra.mxu0 %v1541
      %v1869 = vpop.f32.mrf.mxu0
      %v1870 = vadd.f32 %v1757, %v1869
      %1871 = vmatmul.f32.gmra.mxu0 %v1542
      %v1872 = vpop.f32.mrf.mxu0
      %v1873 = vadd.f32 %v1760, %v1872
      %1874 = vmatmul.f32.gmra.mxu0 %v1543
      %v1875 = vpop.f32.mrf.mxu0
      %v1876 = vadd.f32 %v1763, %v1875
      %1877 = vmatmul.f32.gmra.mxu0 %v1544
      %v1878 = vpop.f32.mrf.mxu0
      %v1879 = vadd.f32 %v1766, %v1878
      %1880 = vmatmul.f32.gmra.mxu0 %v1545
      %v1881 = vpop.f32.mrf.mxu0
      %v1882 = vadd.f32 %v1769, %v1881
      %1883 = vmatmul.f32.gmra.mxu0 %v1546
      %v1884 = vpop.f32.mrf.mxu0
      %v1885 = vadd.f32 %v1772, %v1884
      %1886 = vmatmul.f32.gmra.mxu0 %v1547
      %v1887 = vpop.f32.mrf.mxu0
      %v1888 = vadd.f32 %v1775, %v1887
      %1889 = vmatmul.f32.gmra.mxu0 %v1548
      %v1890 = vpop.f32.mrf.mxu0
      %v1891 = vadd.f32 %v1778, %v1890
      %1892 = vmatmul.f32.gmra.mxu0 %v1549
      %v1893 = vpop.f32.mrf.mxu0
      %v1894 = vadd.f32 %v1781, %v1893
      %1895 = vmatmul.f32.gmra.mxu0 %v1550
      %v1896 = vpop.f32.mrf.mxu0
      %v1897 = vadd.f32 %v1784, %v1896
      %1898 = vmatmul.f32.gmra.mxu0 %v1551
      %v1899 = vpop.f32.mrf.mxu0
      %v1900 = vadd.f32 %v1787, %v1899
      %1901 = vmatmul.f32.gmra.mxu0 %v1552
      %v1902 = vpop.f32.mrf.mxu0
      %v1903 = vadd.f32 %v1790, %v1902
      %1904 = vmatmul.f32.gmra.mxu0 %v1553
      %v1905 = vpop.f32.mrf.mxu0
      %v1906 = vadd.f32 %v1793, %v1905
      %1907 = vmatmul.f32.gmra.mxu0 %v1554
      %v1908 = vpop.f32.mrf.mxu0
      %v1909 = vadd.f32 %v1796, %v1908
      %1910 = vmatmul.f32.gmra.mxu0 %v1555
      %v1911 = vpop.f32.mrf.mxu0
      %v1912 = vadd.f32 %v1799, %v1911
      %1913 = vmatmul.f32.gmra.mxu0 %v1556
      %v1914 = vpop.f32.mrf.mxu0
      %v1915 = vadd.f32 %v1802, %v1914
      %1916 = vmatmul.f32.gmra.mxu0 %v1557
      %v1917 = vpop.f32.mrf.mxu0
      %v1918 = vadd.f32 %v1805, %v1917
      %1919 = vmatmul.f32.gmra.mxu0 %v1558
      %v1920 = vpop.f32.mrf.mxu0
      %v1921 = vadd.f32 %v1808, %v1920
      %1922 = vmatmul.f32.gmra.mxu0 %v1559
      %v1923 = vpop.f32.mrf.mxu0
      %v1924 = vadd.f32 %v1811, %v1923
      %1925 = vmatmul.f32.gmra.mxu0 %v1560
      %v1926 = vpop.f32.mrf.mxu0
      %v1927 = vadd.f32 %v1814, %v1926
      %1928 = vmatmul.f32.gmra.mxu0 %v1561
      %v1929 = vpop.f32.mrf.mxu0
      %v1930 = vadd.f32 %v1817, %v1929
      %1931 = vmatmul.f32.gmra.mxu0 %v1562
      %v1932 = vpop.f32.mrf.mxu0
      %v1933 = vadd.f32 %v1820, %v1932
      %1934 = vmatmul.f32.gmra.mxu0 %v1563
      %v1935 = vpop.f32.mrf.mxu0
      %v1936 = vadd.f32 %v1823, %v1935
      %1937 = vmatmul.f32.gmra.mxu0 %v1564
      %v1938 = vpop.f32.mrf.mxu0
      %v1939 = vadd.f32 %v1826, %v1938
      %1940 = vmatmul.f32.gmra.mxu0 %v1565
      %v1941 = vpop.f32.mrf.mxu0
      %v1942 = vadd.f32 %v1829, %v1941
      %1943 = vmatmul.f32.gmra.mxu0 %v1566
      %v1944 = vpop.f32.mrf.mxu0
      %v1945 = vadd.f32 %v1832, %v1944
      %1946 = vmatmul.f32.gmra.mxu0 %v1567
      %v1947 = vpop.f32.mrf.mxu0
      %v1948 = vadd.f32 %v1835, %v1947
      %1949 = vmatmul.f32.gmra.mxu0 %v1568
      %v1950 = vpop.f32.mrf.mxu0
      %v1951 = vadd.f32 %v1838, %v1950
      %1952 = vmatmul.f32.gmra.mxu0 %v1569
      %v1953 = vpop.f32.mrf.mxu0
      %v1954 = vadd.f32 %v1841, %v1953
      %1955 = vmatmul.f32.gmra.mxu0 %v1570
      %v1956 = vpop.f32.mrf.mxu0
      %v1957 = vadd.f32 %v1844, %v1956
      %1958 = vdwg.mxu0
      %v1959 = vadd.f32 %v1379, %v1864
      %v1960 = vadd.f32 %v1382, %v1867
      %v1961 = vadd.f32 %v1385, %v1870
      %v1962 = vadd.f32 %v1388, %v1873
      %v1963 = vadd.f32 %v1391, %v1876
      %v1964 = vadd.f32 %v1394, %v1879
      %v1965 = vadd.f32 %v1397, %v1882
      %v1966 = vadd.f32 %v1400, %v1885
      %v1967 = vadd.f32 %v1403, %v1888
      %v1968 = vadd.f32 %v1406, %v1891
      %v1969 = vadd.f32 %v1409, %v1894
      %v1970 = vadd.f32 %v1412, %v1897
      %v1971 = vadd.f32 %v1415, %v1900
      %v1972 = vadd.f32 %v1418, %v1903
      %v1973 = vadd.f32 %v1421, %v1906
      %v1974 = vadd.f32 %v1424, %v1909
      %v1975 = vadd.f32 %v1427, %v1912
      %v1976 = vadd.f32 %v1430, %v1915
      %v1977 = vadd.f32 %v1433, %v1918
      %v1978 = vadd.f32 %v1436, %v1921
      %v1979 = vadd.f32 %v1439, %v1924
      %v1980 = vadd.f32 %v1442, %v1927
      %v1981 = vadd.f32 %v1445, %v1930
      %v1982 = vadd.f32 %v1448, %v1933
      %v1983 = vadd.f32 %v1451, %v1936
      %v1984 = vadd.f32 %v1454, %v1939
      %v1985 = vadd.f32 %v1457, %v1942
      %v1986 = vadd.f32 %v1460, %v1945
      %v1987 = vadd.f32 %v1463, %v1948
      %v1988 = vadd.f32 %v1466, %v1951
      %v1989 = vadd.f32 %v1469, %v1954
      %v1990 = vadd.f32 %v1472, %v1957
      %s1991 = scalar_lea.vmem %s304, 24
      %v1992 = vld [vmem:[%s1991 + $0x1] sm:$0xff]
      %v1993 = vld [vmem:[%s1991 + $0x9] sm:$0xff]
      %v1994 = vld [vmem:[%s1991 + $0x19] sm:$0xff]
      %v1995 = vld [vmem:[%s1991 + $0x21] sm:$0xff]
      %v1996 = vld [vmem:[%s1991 + $0x31] sm:$0xff]
      %v1997 = vld [vmem:[%s1991 + $0x39] sm:$0xff]
      %v1998 = vld [vmem:[%s1991 + $0x49] sm:$0xff]
      %v1999 = vld [vmem:[%s1991 + $0x51] sm:$0xff]
      %v2000 = vld [vmem:[%s1991 + $0x61] sm:$0xff]
      %v2001 = vld [vmem:[%s1991 + $0x69] sm:$0xff]
      %v2002 = vld [vmem:[%s1991 + $0x79] sm:$0xff]
      %v2003 = vld [vmem:[%s1991 + $0x81] sm:$0xff]
      %v2004 = vld [vmem:[%s1991 + $0x91] sm:$0xff]
      %v2005 = vld [vmem:[%s1991 + $0x99] sm:$0xff]
      %v2006 = vld [vmem:[%s1991 + $0xa9] sm:$0xff]
      %v2007 = vld [vmem:[%s1991 + $0xb1] sm:$0xff]
      %v2008 = vld [vmem:[%s1991 + $0xc1] sm:$0xff]
      %v2009 = vld [vmem:[%s1991 + $0xc9] sm:$0xff]
      %v2010 = vld [vmem:[%s1991 + $0xd9] sm:$0xff]
      %v2011 = vld [vmem:[%s1991 + $0xe1] sm:$0xff]
      %v2012 = vld [vmem:[%s1991 + $0xf1] sm:$0xff]
      %v2013 = vld [vmem:[%s1991 + $0xf9] sm:$0xff]
      %v2014 = vld [vmem:[%s1991 + $0x109] sm:$0xff]
      %v2015 = vld [vmem:[%s1991 + $0x111] sm:$0xff]
      %v2016 = vld [vmem:[%s1991 + $0x121] sm:$0xff]
      %v2017 = vld [vmem:[%s1991 + $0x129] sm:$0xff]
      %v2018 = vld [vmem:[%s1991 + $0x139] sm:$0xff]
      %v2019 = vld [vmem:[%s1991 + $0x141] sm:$0xff]
      %v2020 = vld [vmem:[%s1991 + $0x151] sm:$0xff]
      %v2021 = vld [vmem:[%s1991 + $0x159] sm:$0xff]
      %v2022 = vld [vmem:[%s1991 + $0x169] sm:$0xff]
      %v2023 = vld [vmem:[%s1991 + $0x171] sm:$0xff]
      %v2024 = vadd.f32 %v1959, %v1992
      %v2025 = vadd.f32 %v1960, %v1993
      %v2026 = vadd.f32 %v1961, %v1994
      %v2027 = vadd.f32 %v1962, %v1995
      %v2028 = vadd.f32 %v1963, %v1996
      %v2029 = vadd.f32 %v1964, %v1997
      %v2030 = vadd.f32 %v1965, %v1998
      %v2031 = vadd.f32 %v1966, %v1999
      %v2032 = vadd.f32 %v1967, %v2000
      %v2033 = vadd.f32 %v1968, %v2001
      %v2034 = vadd.f32 %v1969, %v2002
      %v2035 = vadd.f32 %v1970, %v2003
      %v2036 = vadd.f32 %v1971, %v2004
      %v2037 = vadd.f32 %v1972, %v2005
      %v2038 = vadd.f32 %v1973, %v2006
      %v2039 = vadd.f32 %v1974, %v2007
      %v2040 = vadd.f32 %v1975, %v2008
      %v2041 = vadd.f32 %v1976, %v2009
      %v2042 = vadd.f32 %v1977, %v2010
      %v2043 = vadd.f32 %v1978, %v2011
      %v2044 = vadd.f32 %v1979, %v2012
      %v2045 = vadd.f32 %v1980, %v2013
      %v2046 = vadd.f32 %v1981, %v2014
      %v2047 = vadd.f32 %v1982, %v2015
      %v2048 = vadd.f32 %v1983, %v2016
      %v2049 = vadd.f32 %v1984, %v2017
      %v2050 = vadd.f32 %v1985, %v2018
      %v2051 = vadd.f32 %v1986, %v2019
      %v2052 = vadd.f32 %v1987, %v2020
      %v2053 = vadd.f32 %v1988, %v2021
      %v2054 = vadd.f32 %v1989, %v2022
      %v2055 = vadd.f32 %v1990, %v2023
      %v2056 = vadd.f32 %v2024, %v2025
      %v2057 = vadd.f32 %v2056, %v2026
      %v2058 = vadd.f32 %v2057, %v2027
      %v2059 = vadd.f32 %v2058, %v2028
      %v2060 = vadd.f32 %v2059, %v2029
      %v2061 = vadd.f32 %v2060, %v2030
      %v2062 = vadd.f32 %v2061, %v2031
      %v2063 = vadd.f32 %v2062, %v2032
      %v2064 = vadd.f32 %v2063, %v2033
      %v2065 = vadd.f32 %v2064, %v2034
      %v2066 = vadd.f32 %v2065, %v2035
      %v2067 = vadd.f32 %v2066, %v2036
      %v2068 = vadd.f32 %v2067, %v2037
      %v2069 = vadd.f32 %v2068, %v2038
      %v2070 = vadd.f32 %v2069, %v2039
      %v2071 = vadd.f32 %v2070, %v2040
      %v2072 = vadd.f32 %v2071, %v2041
      %v2073 = vadd.f32 %v2072, %v2042
      %v2074 = vadd.f32 %v2073, %v2043
      %v2075 = vadd.f32 %v2074, %v2044
      %v2076 = vadd.f32 %v2075, %v2045
      %v2077 = vadd.f32 %v2076, %v2046
      %v2078 = vadd.f32 %v2077, %v2047
      %v2079 = vadd.f32 %v2078, %v2048
      %v2080 = vadd.f32 %v2079, %v2049
      %v2081 = vadd.f32 %v2080, %v2050
      %v2082 = vadd.f32 %v2081, %v2051
      %v2083 = vadd.f32 %v2082, %v2052
      %v2084 = vadd.f32 %v2083, %v2053
      %v2085 = vadd.f32 %v2084, %v2054
      %v2086 = vadd.f32 %v2085, %v2055
      %v2087 = vrot.slane %v2086, 4
      %v2088 = vadd.f32 %v2086, %v2087
      %v2089 = vrot.slane %v2088, 2
      %v2090 = vadd.f32 %v2088, %v2089
      %v2091 = vrot.slane %v2090, 1
      %v2092 = vadd.f32 %v2090, %v2091
      %2093 = vst [vmem:[%s312] sm:$0x1] %v2092
      %v2094 = vmul.f32 %v2024, %v2024
      %v2095 = vmul.f32 %v2025, %v2025
      %v2096 = vmul.f32 %v2026, %v2026
      %v2097 = vmul.f32 %v2027, %v2027
      %v2098 = vmul.f32 %v2028, %v2028
      %v2099 = vmul.f32 %v2029, %v2029
      %v2100 = vmul.f32 %v2030, %v2030
      %v2101 = vmul.f32 %v2031, %v2031
      %v2102 = vmul.f32 %v2032, %v2032
      %v2103 = vmul.f32 %v2033, %v2033
      %v2104 = vmul.f32 %v2034, %v2034
      %v2105 = vmul.f32 %v2035, %v2035
      %v2106 = vmul.f32 %v2036, %v2036
      %v2107 = vmul.f32 %v2037, %v2037
      %v2108 = vmul.f32 %v2038, %v2038
      %v2109 = vmul.f32 %v2039, %v2039
      %v2110 = vmul.f32 %v2040, %v2040
      %v2111 = vmul.f32 %v2041, %v2041
      %v2112 = vmul.f32 %v2042, %v2042
      %v2113 = vmul.f32 %v2043, %v2043
      %v2114 = vmul.f32 %v2044, %v2044
      %v2115 = vmul.f32 %v2045, %v2045
      %v2116 = vmul.f32 %v2046, %v2046
      %v2117 = vmul.f32 %v2047, %v2047
      %v2118 = vmul.f32 %v2048, %v2048
      %v2119 = vmul.f32 %v2049, %v2049
      %v2120 = vmul.f32 %v2050, %v2050
      %v2121 = vmul.f32 %v2051, %v2051
      %v2122 = vmul.f32 %v2052, %v2052
      %v2123 = vmul.f32 %v2053, %v2053
      %v2124 = vmul.f32 %v2054, %v2054
      %v2125 = vmul.f32 %v2055, %v2055
      %v2126 = vadd.f32 %v2094, %v2095
      %v2127 = vadd.f32 %v2126, %v2096
      %v2128 = vadd.f32 %v2127, %v2097
      %v2129 = vadd.f32 %v2128, %v2098
      %v2130 = vadd.f32 %v2129, %v2099
      %v2131 = vadd.f32 %v2130, %v2100
      %v2132 = vadd.f32 %v2131, %v2101
      %v2133 = vadd.f32 %v2132, %v2102
      %v2134 = vadd.f32 %v2133, %v2103
      %v2135 = vadd.f32 %v2134, %v2104
      %v2136 = vadd.f32 %v2135, %v2105
      %v2137 = vadd.f32 %v2136, %v2106
      %v2138 = vadd.f32 %v2137, %v2107
      %v2139 = vadd.f32 %v2138, %v2108
      %v2140 = vadd.f32 %v2139, %v2109
      %v2141 = vadd.f32 %v2140, %v2110
      %v2142 = vadd.f32 %v2141, %v2111
      %v2143 = vadd.f32 %v2142, %v2112
      %v2144 = vadd.f32 %v2143, %v2113
      %v2145 = vadd.f32 %v2144, %v2114
      %v2146 = vadd.f32 %v2145, %v2115
      %v2147 = vadd.f32 %v2146, %v2116
      %v2148 = vadd.f32 %v2147, %v2117
      %v2149 = vadd.f32 %v2148, %v2118
      %v2150 = vadd.f32 %v2149, %v2119
      %v2151 = vadd.f32 %v2150, %v2120
      %v2152 = vadd.f32 %v2151, %v2121
      %v2153 = vadd.f32 %v2152, %v2122
      %v2154 = vadd.f32 %v2153, %v2123
      %v2155 = vadd.f32 %v2154, %v2124
      %v2156 = vadd.f32 %v2155, %v2125
      %v2157 = vrot.slane %v2156, 4
      %v2158 = vadd.f32 %v2156, %v2157
      %v2159 = vrot.slane %v2158, 2
      %v2160 = vadd.f32 %v2158, %v2159
      %v2161 = vrot.slane %v2160, 1
      %v2162 = vadd.f32 %v2160, %v2161
      %2163 = vst [vmem:[%s315] sm:$0x1] %v2162
      %2164 = vst [vmem:[%s309] sm:$0xff] %v2024
      %2165 = vst [vmem:[%s309 + $0x8] sm:$0xff] %v2025
      %2166 = vst [vmem:[%s309 + $0x10] sm:$0xff] %v2026
      %2167 = vst [vmem:[%s309 + $0x18] sm:$0xff] %v2027
      %2168 = vst [vmem:[%s309 + $0x20] sm:$0xff] %v2028
      %2169 = vst [vmem:[%s309 + $0x28] sm:$0xff] %v2029
      %2170 = vst [vmem:[%s309 + $0x30] sm:$0xff] %v2030
      %2171 = vst [vmem:[%s309 + $0x38] sm:$0xff] %v2031
      %2172 = vst [vmem:[%s309 + $0x40] sm:$0xff] %v2032
      %2173 = vst [vmem:[%s309 + $0x48] sm:$0xff] %v2033
      %2174 = vst [vmem:[%s309 + $0x50] sm:$0xff] %v2034
      %2175 = vst [vmem:[%s309 + $0x58] sm:$0xff] %v2035
      %2176 = vst [vmem:[%s309 + $0x60] sm:$0xff] %v2036
      %2177 = vst [vmem:[%s309 + $0x68] sm:$0xff] %v2037
      %2178 = vst [vmem:[%s309 + $0x70] sm:$0xff] %v2038
      %2179 = vst [vmem:[%s309 + $0x78] sm:$0xff] %v2039
      %2180 = vst [vmem:[%s309 + $0x80] sm:$0xff] %v2040
      %2181 = vst [vmem:[%s309 + $0x88] sm:$0xff] %v2041
      %2182 = vst [vmem:[%s309 + $0x90] sm:$0xff] %v2042
      %2183 = vst [vmem:[%s309 + $0x98] sm:$0xff] %v2043
      %2184 = vst [vmem:[%s309 + $0xa0] sm:$0xff] %v2044
      %2185 = vst [vmem:[%s309 + $0xa8] sm:$0xff] %v2045
      %2186 = vst [vmem:[%s309 + $0xb0] sm:$0xff] %v2046
      %2187 = vst [vmem:[%s309 + $0xb8] sm:$0xff] %v2047
      %2188 = vst [vmem:[%s309 + $0xc0] sm:$0xff] %v2048
      %2189 = vst [vmem:[%s309 + $0xc8] sm:$0xff] %v2049
      %2190 = vst [vmem:[%s309 + $0xd0] sm:$0xff] %v2050
      %2191 = vst [vmem:[%s309 + $0xd8] sm:$0xff] %v2051
      %2192 = vst [vmem:[%s309 + $0xe0] sm:$0xff] %v2052
      %2193 = vst [vmem:[%s309 + $0xe8] sm:$0xff] %v2053
      %2194 = vst [vmem:[%s309 + $0xf0] sm:$0xff] %v2054
      %2195 = vst [vmem:[%s309 + $0xf8] sm:$0xff] %v2055
      %p2196 = scmp.lt.s32.totalorder %s19, 1
      %s2197 = scalar_select %p2196, %s19, 1
      %s2198 = smul.addr %s2197, 32
      %s2199 = smul.addr %s2198, 8
      %s2200 = scalar_lea.vmem %s5, %s2199
      %p2201 = scmp.lt.s32.totalorder %s19, 1
      %s2202 = scalar_select %p2201, %s19, 1
      %s2203 = scalar_lea.vmem %s6, %s2202
      %p2204 = scmp.lt.s32.totalorder %s19, 1
      %s2205 = scalar_select %p2204, %s19, 1
      %s2206 = scalar_lea.vmem %s7, %s2205
      // Predicated region
      $region41: #{basic_block_forward.3} parent=39 // pred_check
        %p2207 = pneg %p152
      $region42: #{basic_block_forward.3} parent=39 // pred_check_branch
        %2209 = sbr.rel (%p2207) target = $region44
      $region43: #{basic_block_forward.3} parent=39 // pred_region
        _
      $region44: #{basic_block_forward.3} parent=39 // pred_fallthru
        _
      // Predicated region
      $region45: #{basic_block_forward.3} parent=39 // pred_check
        %p2210 = pneg %p178
      $region46: #{basic_block_forward.3} parent=39 // pred_check_branch
        %2212 = sbr.rel (%p2210) target = $region48
      $region47: #{basic_block_forward.3} parent=39 // pred_region
        _
      $region48: #{basic_block_forward.3} parent=39 // pred_fallthru
        _
      // Predicated region
      $region49: #{basic_block_forward.3} parent=39 // pred_check
        %p2213 = pneg %p204
      $region50: #{basic_block_forward.3} parent=39 // pred_check_branch
        %2215 = sbr.rel (%p2213) target = $region52
      $region51: #{basic_block_forward.3} parent=39 // pred_region
        _
      $region52: #{basic_block_forward.3} parent=39 // pred_fallthru
        _
    $region40: #{basic_block_forward.3} parent=5 // pred_fallthru
      _
    %p2216 = scmp.le.s32.totalorder 2, %s14
    // Predicated region
    $region53: #{basic_block_forward.3} parent=5 // pred_check
      %p2217 = pneg %p2216
    $region54: #{basic_block_forward.3} parent=5 // pred_check_branch
      %2219 = sbr.rel (%p2217) target = $region56
    $region55: #{basic_block_forward.3} parent=5 // pred_region
      %s2220 = ssub.s32 %s14, 2
      // Predicated region
      $region57: #{basic_block_forward.3} parent=55 // pred_check
        %p2221 = pneg %p158
      $region58: #{basic_block_forward.3} parent=55 // pred_check_branch
        %2223 = sbr.rel (%p2221) target = $region60
      $region59: #{basic_block_forward.3} parent=55 // pred_region
        %p2224 = scmp.lt.s32.totalorder %s20, 1
        %s2225 = scalar_select %p2224, %s20, 1
        %s2226 = smul.addr %s2225, 32
        %s2227 = smul.addr %s2226, 8
        %s2228 = scalar_lea.vmem %s5, %s2227
      $region60: #{basic_block_forward.3} parent=55 // pred_fallthru
        _
      // Predicated region
      $region61: #{basic_block_forward.3} parent=55 // pred_check
        %p2229 = pneg %p184
      $region62: #{basic_block_forward.3} parent=55 // pred_check_branch
        %2231 = sbr.rel (%p2229) target = $region64
      $region63: #{basic_block_forward.3} parent=55 // pred_region
        %p2232 = scmp.lt.s32.totalorder %s20, 1
        %s2233 = scalar_select %p2232, %s20, 1
        %s2234 = scalar_lea.vmem %s6, %s2233
      $region64: #{basic_block_forward.3} parent=55 // pred_fallthru
        _
      // Predicated region
      $region65: #{basic_block_forward.3} parent=55 // pred_check
        %p2235 = pneg %p210
      $region66: #{basic_block_forward.3} parent=55 // pred_check_branch
        %2237 = sbr.rel (%p2235) target = $region68
      $region67: #{basic_block_forward.3} parent=55 // pred_region
        %p2238 = scmp.lt.s32.totalorder %s20, 1
        %s2239 = scalar_select %p2238, %s20, 1
        %s2240 = scalar_lea.vmem %s7, %s2239
      $region68: #{basic_block_forward.3} parent=55 // pred_fallthru
        _
    $region56: #{basic_block_forward.3} parent=5 // pred_fallthru
      _
  $region6: #{basic_block_forward.3} parent=0 // loop_footer
    %s18 = sadd.s32 1, %s14
  $region7: #{basic_block_forward.3} parent=0 // loop_footer_branch
    %13 = sbr.rel target = $region3
  $region8: #{basic_block_forward.3} parent=0 // loop_exit
    _

</llo_original>
